<compile_context>
chip_gen: v5e
topology: v5e:2x2
jax: 0.10.0
libtpu: 0.0.40
codegen_flags: <defaults>
</compile_context>

<pallas_src>
import jax
import jax.numpy as jnp
from jax.experimental import pallas as pl
from jax.experimental.pallas import tpu as pltpu


# -----------------------------------------------------------------------------
# Kernel
# -----------------------------------------------------------------------------
def _make_kernel(num_heads: int, tq: int):
    f32 = jnp.float32
    bf16 = jnp.bfloat16

    def bias_relu(h, b_ref):
        return jnp.maximum(h + b_ref[...], 0.0)

    def affine_relu(h, s_ref, b_ref):
        # folded BatchNorm (eval) + ReLU (scale could not be folded upstream
        # because of the attention residual).
        return jnp.maximum(h * s_ref[...] + b_ref[...], 0.0)

    def mhsa(t, wqkv_ref, bqkv_ref, wo_ref, bo_ref):
        # t: (N, E) f32.  Softmax scale already folded into the Q columns.
        n, e = t.shape
        hd = e // num_heads

        wqkv = wqkv_ref[...]                    # (E, 3E) bf16
        bqkv = bqkv_ref[...]                    # (1, 3E) f32
        wo = wo_ref[...]                        # (E, E)  bf16
        bo = bo_ref[...]                        # (1, E)  f32

        # Fused QKV projection: one wide bf16 MXU pass, f32 accumulation.
        qkv = jnp.dot(t.astype(bf16), wqkv,
                      preferred_element_type=f32) + bqkv          # (N, 3E) f32
        q = qkv[:, :e].astype(bf16)
        k = qkv[:, e:2 * e].astype(bf16)
        v = qkv[:, 2 * e:].astype(bf16)

        blocks = []
        for r0 in range(0, n, tq):                    # query-tile loop (static)
            r1 = min(r0 + tq, n)
            q_blk = q[r0:r1, :]                       # (tq, E) bf16
            acc = jnp.zeros((r1 - r0, e), f32)
            for head in range(num_heads):
                lo, hi = head * hd, (head + 1) * hd
                # (tq, N) score tile; bf16 operands, f32 accumulation.
                sc = jnp.einsum('qd,kd->qk', q_blk[:, lo:hi], k[:, lo:hi],
                                preferred_element_type=f32)
                m = jnp.max(sc, axis=-1, keepdims=True)
                p = jnp.exp(sc - m)
                l = jnp.sum(p, axis=-1, keepdims=True)
                # Deferred normalization: un-normalized p @ v, then one
                # (tq, hd) scale by the EUP reciprocal.
                o_h = jnp.dot(p.astype(bf16), v[:, lo:hi],
                              preferred_element_type=f32)            # (tq, hd)
                o_h = o_h * pl.reciprocal(l, approx=True)
                # Accumulate through the output projection (no lane concat).
                acc = acc + jnp.dot(o_h.astype(bf16), wo[lo:hi, :],
                                    preferred_element_type=f32)
            blocks.append(acc + bo)
        if len(blocks) == 1:
            return blocks[0]
        return jnp.concatenate(blocks, axis=0)        # sublane concat only

    def kernel(x_ref,
               w1, b1,
               w2, a1_wqkv, a1_bqkv, a1_wo, a1_bo, s2, b2,
               w3, a2_wqkv, a2_bqkv, a2_wo, a2_bo, s3, b3,
               w4, a3_wqkv, a3_bqkv, a3_wo, a3_bo, s4, b4,
               w5, b5, w6, b6, w7, b7,
               o_ref):
        x = x_ref[0].astype(f32)                                   # (N, 8)

        # conv1 (bn1 scale folded into w1) + beta + relu
        h = bias_relu(jnp.dot(x, w1[...], preferred_element_type=f32), b1)

        # conv2 -> attn1 (+residual) -> bn2 -> relu
        t = jnp.dot(h, w2[...], preferred_element_type=f32)
        t = t + mhsa(t, a1_wqkv, a1_bqkv, a1_wo, a1_bo)
        h = affine_relu(t, s2, b2)

        # conv3 -> attn2 (+residual) -> bn3 -> relu
        t = jnp.dot(h, w3[...], preferred_element_type=f32)
        t = t + mhsa(t, a2_wqkv, a2_bqkv, a2_wo, a2_bo)
        h = affine_relu(t, s3, b3)

        # conv4 -> attn3 (+residual) -> bn4 -> relu
        t = jnp.dot(h, w4[...], preferred_element_type=f32)        # (N, 128)
        t = t + mhsa(t, a3_wqkv, a3_bqkv, a3_wo, a3_bo)
        h = affine_relu(t, s4, b4)

        # conv5 (bn5 scale folded) + beta + relu
        h = bias_relu(jnp.dot(h, w5[...], preferred_element_type=f32), b5)

        # adaptive_max_pool1d(., 1) over the point dim
        feat = jnp.max(h, axis=0, keepdims=True)                   # (1, emb)

        # linear1 (bn6 scale folded) + beta + relu
        g = bias_relu(jnp.dot(feat, w6[...], preferred_element_type=f32), b6)

        # dropout: identity (eval) ; linear2 (+ bias)
        out = jnp.dot(g, w7[...], preferred_element_type=f32) + b7[...]

        o_ref[0] = out.astype(o_ref.dtype)

    return kernel


# -----------------------------------------------------------------------------
# Parameter preparation (fold BN scales / softmax scale, fuse QKV, pad w1,
# pre-cast attention weights to bf16)
# -----------------------------------------------------------------------------
def _prepare_params(params, *, num_heads, cin=3, cpad=8):
    (w1, s1, b1, w2,
     a1_wq, a1_bq, a1_wk, a1_bk, a1_wv, a1_bv, a1_wo, a1_bo, s2, b2,
     w3,
     a2_wq, a2_bq, a2_wk, a2_bk, a2_wv, a2_bv, a2_wo, a2_bo, s3, b3,
     w4,
     a3_wq, a3_bq, a3_wk, a3_bk, a3_wv, a3_bv, a3_wo, a3_bo, s4, b4,
     w5, s5, b5, w6, s6, b6, w7, b7) = params

    bf16 = jnp.bfloat16

    def fuse_qkv(wq, bq, wk, bk, wv, bv):
        e = wq.shape[0]
        scale = float(e // num_heads) ** (-0.5)
        wqkv = jnp.concatenate([wq * scale, wk, wv], axis=1)   # (E, 3E)
        bqkv = jnp.concatenate([bq * scale, bk, bv], axis=1)   # (1, 3E)
        # Weight in bf16 (half the DMA, native MXU path); bias stays f32
        # (added to the f32 accumulator).
        return wqkv.astype(bf16), bqkv

    # fold bn1 scale into conv1 weight and zero-pad input channels 3 -> 8
    w1f = jnp.pad(w1 * s1, ((0, cpad - cin), (0, 0)))

    a1_wqkv, a1_bqkv = fuse_qkv(a1_wq, a1_bq, a1_wk, a1_bk, a1_wv, a1_bv)
    a2_wqkv, a2_bqkv = fuse_qkv(a2_wq, a2_bq, a2_wk, a2_bk, a2_wv, a2_bv)
    a3_wqkv, a3_bqkv = fuse_qkv(a3_wq, a3_bq, a3_wk, a3_bk, a3_wv, a3_bv)

    w5f = w5 * s5        # fold bn5 scale
    w6f = w6 * s6        # fold bn6 scale

    return (w1f, b1,
            w2, a1_wqkv, a1_bqkv, a1_wo.astype(bf16), a1_bo, s2, b2,
            w3, a2_wqkv, a2_bqkv, a2_wo.astype(bf16), a2_bo, s3, b3,
            w4, a3_wqkv, a3_bqkv, a3_wo.astype(bf16), a3_bo, s4, b4,
            w5f, b5, w6f, b6, w7, b7)


# -----------------------------------------------------------------------------
# Wrapper
# -----------------------------------------------------------------------------
def mapointnet_forward(x_bcn, params, *, num_heads=8, tq=256):
    """x_bcn: (B, 3, N) float32 (PyTorch NCW layout). Returns (B, num_classes)."""
    B, cin, N = x_bcn.shape
    cpad = 8
    x = jnp.transpose(x_bcn, (0, 2, 1)).astype(jnp.float32)   # (B, N, 3)
    x = jnp.pad(x, ((0, 0), (0, 0), (0, cpad - cin)))         # (B, N, 8)

    prepared = _prepare_params(params, num_heads=num_heads, cin=cin, cpad=cpad)
    ncls = prepared[-1].shape[-1]
    tq_eff = min(tq, N)

    in_specs = [pl.BlockSpec((1, N, cpad), lambda b: (b, 0, 0))]
    # Grid-invariant parameters: same block index every grid step, so Pallas
    # does not re-DMA them; default double-buffering footprint is <1 MiB.
    for p in prepared:
        nd = p.ndim
        in_specs.append(pl.BlockSpec(p.shape, lambda b, nd=nd: (0,) * nd))

    out = pl.pallas_call(
        _make_kernel(num_heads, tq_eff),
        out_shape=jax.ShapeDtypeStruct((B, 1, ncls), jnp.float32),
        grid_spec=pltpu.PrefetchScalarGridSpec(
            num_scalar_prefetch=0,
            grid=(B,),
            in_specs=in_specs,
            out_specs=pl.BlockSpec((1, 1, ncls), lambda b: (b, 0, 0)),
        ),
        compiler_params=pltpu.CompilerParams(
            dimension_semantics=("parallel",),          # v7x: shard batch on 2 TCs
            vmem_limit_bytes=32 * 1024 * 1024),
    )(x, *prepared)
    return out.reshape(B, ncls)


# -----------------------------------------------------------------------------
# Deterministic parameter construction (synthetic weights, PyTorch-equivalent)
# -----------------------------------------------------------------------------
def init_params(key, emb_dims=128, num_classes=16):
    ks = iter(jax.random.split(key, 64))

    def lin(cin, cout, scale=0.1):
        return scale * jax.random.normal(next(ks), (cin, cout), jnp.float32)

    def bias(c, scale=0.05):
        return scale * jax.random.normal(next(ks), (1, c), jnp.float32)

    def bn_fold(c):
        # eval-mode BN with running_mean=0, running_var=1
        gamma = 1.0 + 0.1 * jax.random.normal(next(ks), (1, c), jnp.float32)
        beta = 0.1 * jax.random.normal(next(ks), (1, c), jnp.float32)
        eps = 1e-5
        scale = gamma / jnp.sqrt(1.0 + eps)
        return scale, beta

    def attn(e):
        p = []
        for _ in range(4):          # query, key, value, fc_out
            p.append(lin(e, e))
            p.append(bias(e))
        return p

    params = []
    params.append(lin(3, 64))                 # conv1
    params.extend(bn_fold(64))                # bn1
    params.append(lin(64, 64))                # conv2
    params.extend(attn(64))                   # attn1
    params.extend(bn_fold(64))                # bn2
    params.append(lin(64, 64))                # conv3
    params.extend(attn(64))                   # attn2
    params.extend(bn_fold(64))                # bn3
    params.append(lin(64, 128))               # conv4
    params.extend(attn(128))                  # attn3
    params.extend(bn_fold(128))               # bn4
    params.append(lin(128, emb_dims))         # conv5
    params.extend(bn_fold(emb_dims))          # bn5
    params.append(lin(emb_dims, 512))         # linear1 (no bias)
    params.extend(bn_fold(512))               # bn6
    params.append(lin(512, num_classes))      # linear2
    params.append(bias(num_classes))          # linear2 bias
    return params


# -----------------------------------------------------------------------------
# Pure-JAX f32 reference (for correctness check; no folding/fusion/bf16)
# -----------------------------------------------------------------------------
def reference_forward(x_bcn, params, num_heads=8):
    (w1, s1, b1, w2,
     a1_wq, a1_bq, a1_wk, a1_bk, a1_wv, a1_bv, a1_wo, a1_bo, s2, b2,
     w3,
     a2_wq, a2_bq, a2_wk, a2_bk, a2_wv, a2_bv, a2_wo, a2_bo, s3, b3,
     w4,
     a3_wq, a3_bq, a3_wk, a3_bk, a3_wv, a3_bv, a3_wo, a3_bo, s4, b4,
     w5, s5, b5, w6, s6, b6, w7, b7) = params

    x = jnp.transpose(x_bcn, (0, 2, 1)).astype(jnp.float32)   # (B, N, 3)

    def ar(h, s, b):
        return jnp.maximum(h * s + b, 0.0)

    def mhsa(t, wq, bq, wk, bk, wv, bv, wo, bo):
        B, N, E = t.shape
        hd = E // num_heads
        q = (t @ wq + bq).reshape(B, N, num_heads, hd).transpose(0, 2, 1, 3)
        k = (t @ wk + bk).reshape(B, N, num_heads, hd).transpose(0, 2, 1, 3)
        v = (t @ wv + bv).reshape(B, N, num_heads, hd).transpose(0, 2, 1, 3)
        sc = jnp.einsum('bhqd,bhkd->bhqk', q, k) * (float(hd) ** -0.5)
        p = jax.nn.softmax(sc, axis=-1)
        o = jnp.einsum('bhqk,bhkd->bhqd', p, v).transpose(0, 2, 1, 3).reshape(B, N, E)
        return o @ wo + bo

    h = ar(x @ w1, s1, b1)
    t = h @ w2; h = ar(mhsa(t, a1_wq, a1_bq, a1_wk, a1_bk, a1_wv, a1_bv, a1_wo, a1_bo) + t, s2, b2)
    t = h @ w3; h = ar(mhsa(t, a2_wq, a2_bq, a2_wk, a2_bk, a2_wv, a2_bv, a2_wo, a2_bo) + t, s3, b3)
    t = h @ w4; h = ar(mhsa(t, a3_wq, a3_bq, a3_wk, a3_bk, a3_wv, a3_bv, a3_wo, a3_bo) + t, s4, b4)
    h = ar(h @ w5, s5, b5)
    feat = jnp.max(h, axis=1)                      # (B, emb)
    g = ar(feat @ w6, s6, b6)
    return g @ w7 + b7


# -----------------------------------------------------------------------------
if __name__ == "__main__":
    key = jax.random.PRNGKey(0)
    k_x, k_p = jax.random.split(key)

    B, N = 2, 16
    emb_dims, num_classes = 128, 16

    x = jax.random.normal(k_x, (B, 3, N), jnp.float32)       # PyTorch NCW input
    params = init_params(k_p, emb_dims=emb_dims, num_classes=num_classes)

    out = jax.block_until_ready(mapointnet_forward(x, params))
    ref = jax.block_until_ready(reference_forward(x, params))

    assert out.shape == (B, num_classes)
    max_diff = jnp.max(jnp.abs(out - ref))
    # bf16 attention matmuls + approx reciprocal vs. pure-f32 reference.
    assert jnp.allclose(out, ref, atol=2e-2, rtol=2e-2), (
        f"max abs diff {max_diff}")

    print("KERNEL_OK")
</pallas_src>

<mosaic_0001>
module attributes {stable_mosaic.version = 11 : i64} {
  func.func @kernel(%arg0: i32, %arg1: memref<1x16x8xf32, #tpu.memory_space<vmem>>, %arg2: memref<8x64xf32, #tpu.memory_space<vmem>>, %arg3: memref<1x64xf32, #tpu.memory_space<vmem>>, %arg4: memref<64x64xf32, #tpu.memory_space<vmem>>, %arg5: memref<64x192xbf16, #tpu.memory_space<vmem>>, %arg6: memref<1x192xf32, #tpu.memory_space<vmem>>, %arg7: memref<64x64xbf16, #tpu.memory_space<vmem>>, %arg8: memref<1x64xf32, #tpu.memory_space<vmem>>, %arg9: memref<1x64xf32, #tpu.memory_space<vmem>>, %arg10: memref<1x64xf32, #tpu.memory_space<vmem>>, %arg11: memref<64x64xf32, #tpu.memory_space<vmem>>, %arg12: memref<64x192xbf16, #tpu.memory_space<vmem>>, %arg13: memref<1x192xf32, #tpu.memory_space<vmem>>, %arg14: memref<64x64xbf16, #tpu.memory_space<vmem>>, %arg15: memref<1x64xf32, #tpu.memory_space<vmem>>, %arg16: memref<1x64xf32, #tpu.memory_space<vmem>>, %arg17: memref<1x64xf32, #tpu.memory_space<vmem>>, %arg18: memref<64x128xf32, #tpu.memory_space<vmem>>, %arg19: memref<128x384xbf16, #tpu.memory_space<vmem>>, %arg20: memref<1x384xf32, #tpu.memory_space<vmem>>, %arg21: memref<128x128xbf16, #tpu.memory_space<vmem>>, %arg22: memref<1x128xf32, #tpu.memory_space<vmem>>, %arg23: memref<1x128xf32, #tpu.memory_space<vmem>>, %arg24: memref<1x128xf32, #tpu.memory_space<vmem>>, %arg25: memref<128x128xf32, #tpu.memory_space<vmem>>, %arg26: memref<1x128xf32, #tpu.memory_space<vmem>>, %arg27: memref<128x512xf32, #tpu.memory_space<vmem>>, %arg28: memref<1x512xf32, #tpu.memory_space<vmem>>, %arg29: memref<512x16xf32, #tpu.memory_space<vmem>>, %arg30: memref<1x16xf32, #tpu.memory_space<vmem>>, %arg31: memref<1x1x16xf32, #tpu.memory_space<vmem>>) attributes {dimension_semantics = [#tpu.dimension_semantics<parallel>], iteration_bounds = array<i64: 2>, scalar_prefetch = 0 : i64, scratch_operands = 0 : i64, tpu.core_type = #tpu.core_type<tc>, window_params = [{transform_indices = @transform_0, window_bounds = array<i64: 1, 16, 8>}, {pipeline_mode = #tpu.pipeline_mode<synchronous>, transform_indices = @transform_1, window_bounds = array<i64: 8, 64>}, {pipeline_mode = #tpu.pipeline_mode<synchronous>, transform_indices = @transform_2, window_bounds = array<i64: 1, 64>}, {pipeline_mode = #tpu.pipeline_mode<synchronous>, transform_indices = @transform_3, window_bounds = array<i64: 64, 64>}, {pipeline_mode = #tpu.pipeline_mode<synchronous>, transform_indices = @transform_4, window_bounds = array<i64: 64, 192>}, {pipeline_mode = #tpu.pipeline_mode<synchronous>, transform_indices = @transform_5, window_bounds = array<i64: 1, 192>}, {pipeline_mode = #tpu.pipeline_mode<synchronous>, transform_indices = @transform_6, window_bounds = array<i64: 64, 64>}, {pipeline_mode = #tpu.pipeline_mode<synchronous>, transform_indices = @transform_7, window_bounds = array<i64: 1, 64>}, {pipeline_mode = #tpu.pipeline_mode<synchronous>, transform_indices = @transform_8, window_bounds = array<i64: 1, 64>}, {pipeline_mode = #tpu.pipeline_mode<synchronous>, transform_indices = @transform_9, window_bounds = array<i64: 1, 64>}, {pipeline_mode = #tpu.pipeline_mode<synchronous>, transform_indices = @transform_10, window_bounds = array<i64: 64, 64>}, {pipeline_mode = #tpu.pipeline_mode<synchronous>, transform_indices = @transform_11, window_bounds = array<i64: 64, 192>}, {pipeline_mode = #tpu.pipeline_mode<synchronous>, transform_indices = @transform_12, window_bounds = array<i64: 1, 192>}, {pipeline_mode = #tpu.pipeline_mode<synchronous>, transform_indices = @transform_13, window_bounds = array<i64: 64, 64>}, {pipeline_mode = #tpu.pipeline_mode<synchronous>, transform_indices = @transform_14, window_bounds = array<i64: 1, 64>}, {pipeline_mode = #tpu.pipeline_mode<synchronous>, transform_indices = @transform_15, window_bounds = array<i64: 1, 64>}, {pipeline_mode = #tpu.pipeline_mode<synchronous>, transform_indices = @transform_16, window_bounds = array<i64: 1, 64>}, {pipeline_mode = #tpu.pipeline_mode<synchronous>, transform_indices = @transform_17, window_bounds = array<i64: 64, 128>}, {pipeline_mode = #tpu.pipeline_mode<synchronous>, transform_indices = @transform_18, window_bounds = array<i64: 128, 384>}, {pipeline_mode = #tpu.pipeline_mode<synchronous>, transform_indices = @transform_19, window_bounds = array<i64: 1, 384>}, {pipeline_mode = #tpu.pipeline_mode<synchronous>, transform_indices = @transform_20, window_bounds = array<i64: 128, 128>}, {pipeline_mode = #tpu.pipeline_mode<synchronous>, transform_indices = @transform_21, window_bounds = array<i64: 1, 128>}, {pipeline_mode = #tpu.pipeline_mode<synchronous>, transform_indices = @transform_22, window_bounds = array<i64: 1, 128>}, {pipeline_mode = #tpu.pipeline_mode<synchronous>, transform_indices = @transform_23, window_bounds = array<i64: 1, 128>}, {pipeline_mode = #tpu.pipeline_mode<synchronous>, transform_indices = @transform_24, window_bounds = array<i64: 128, 128>}, {pipeline_mode = #tpu.pipeline_mode<synchronous>, transform_indices = @transform_25, window_bounds = array<i64: 1, 128>}, {pipeline_mode = #tpu.pipeline_mode<synchronous>, transform_indices = @transform_26, window_bounds = array<i64: 128, 512>}, {pipeline_mode = #tpu.pipeline_mode<synchronous>, transform_indices = @transform_27, window_bounds = array<i64: 1, 512>}, {pipeline_mode = #tpu.pipeline_mode<synchronous>, transform_indices = @transform_28, window_bounds = array<i64: 512, 16>}, {pipeline_mode = #tpu.pipeline_mode<synchronous>, transform_indices = @transform_29, window_bounds = array<i64: 1, 16>}, {transform_indices = @transform_30, window_bounds = array<i64: 1, 1, 16>}]} {
    %c0 = arith.constant 0 : index
    %c0_0 = arith.constant 0 : index
    %c0_1 = arith.constant 0 : index
    %0 = vector.load %arg1[%c0, %c0_0, %c0_1] : memref<1x16x8xf32, #tpu.memory_space<vmem>>, vector<1x16x8xf32>
    %1 = vector.shape_cast %0 : vector<1x16x8xf32> to vector<16x8xf32>
    %c0_2 = arith.constant 0 : index
    %c0_3 = arith.constant 0 : index
    %2 = vector.load %arg2[%c0_2, %c0_3] : memref<8x64xf32, #tpu.memory_space<vmem>>, vector<8x64xf32>
    %cst = arith.constant dense<0.000000e+00> : vector<16x64xf32>
    %3 = tpu.matmul %1, %2, %cst {dimension_numbers = #tpu.dot_dimension_numbers<[1], [0], [0], [1], [0, 0, 1, 1], [], []>} : vector<16x8xf32>, vector<8x64xf32>, vector<16x64xf32> -> vector<16x64xf32>
    %c0_4 = arith.constant 0 : index
    %c0_5 = arith.constant 0 : index
    %4 = vector.load %arg3[%c0_4, %c0_5] : memref<1x64xf32, #tpu.memory_space<vmem>>, vector<1x64xf32>
    %5 = vector.broadcast %4 : vector<1x64xf32> to vector<16x64xf32>
    %6 = arith.addf %3, %5 : vector<16x64xf32>
    %cst_6 = arith.constant 0.000000e+00 : f32
    %7 = vector.broadcast %cst_6 : f32 to vector<16x64xf32>
    %8 = arith.maximumf %6, %7 : vector<16x64xf32>
    %c0_7 = arith.constant 0 : index
    %c0_8 = arith.constant 0 : index
    %9 = vector.load %arg4[%c0_7, %c0_8] : memref<64x64xf32, #tpu.memory_space<vmem>>, vector<64x64xf32>
    %cst_9 = arith.constant dense<0.000000e+00> : vector<16x64xf32>
    %10 = tpu.matmul %8, %9, %cst_9 {dimension_numbers = #tpu.dot_dimension_numbers<[1], [0], [0], [1], [0, 0, 1, 1], [], []>} : vector<16x64xf32>, vector<64x64xf32>, vector<16x64xf32> -> vector<16x64xf32>
    %c0_10 = arith.constant 0 : index
    %c0_11 = arith.constant 0 : index
    %11 = vector.load %arg5[%c0_10, %c0_11] : memref<64x192xbf16, #tpu.memory_space<vmem>>, vector<64x192xbf16>
    %c0_12 = arith.constant 0 : index
    %c0_13 = arith.constant 0 : index
    %12 = vector.load %arg6[%c0_12, %c0_13] : memref<1x192xf32, #tpu.memory_space<vmem>>, vector<1x192xf32>
    %c0_14 = arith.constant 0 : index
    %c0_15 = arith.constant 0 : index
    %13 = vector.load %arg7[%c0_14, %c0_15] : memref<64x64xbf16, #tpu.memory_space<vmem>>, vector<64x64xbf16>
    %c0_16 = arith.constant 0 : index
    %c0_17 = arith.constant 0 : index
    %14 = vector.load %arg8[%c0_16, %c0_17] : memref<1x64xf32, #tpu.memory_space<vmem>>, vector<1x64xf32>
    %15 = arith.truncf %10 : vector<16x64xf32> to vector<16x64xbf16>
    %cst_18 = arith.constant dense<0.000000e+00> : vector<16x192xf32>
    %16 = tpu.matmul %15, %11, %cst_18 {dimension_numbers = #tpu.dot_dimension_numbers<[1], [0], [0], [1], [0, 0, 1, 1], [], []>} : vector<16x64xbf16>, vector<64x192xbf16>, vector<16x192xf32> -> vector<16x192xf32>
    %17 = vector.broadcast %12 : vector<1x192xf32> to vector<16x192xf32>
    %18 = arith.addf %16, %17 : vector<16x192xf32>
    %19 = vector.extract_strided_slice %18 {offsets = [0, 0], sizes = [16, 64], strides = [1, 1]} : vector<16x192xf32> to vector<16x64xf32>
    %20 = arith.truncf %19 : vector<16x64xf32> to vector<16x64xbf16>
    %21 = vector.extract_strided_slice %18 {offsets = [0, 64], sizes = [16, 64], strides = [1, 1]} : vector<16x192xf32> to vector<16x64xf32>
    %22 = arith.truncf %21 : vector<16x64xf32> to vector<16x64xbf16>
    %23 = vector.extract_strided_slice %18 {offsets = [0, 128], sizes = [16, 64], strides = [1, 1]} : vector<16x192xf32> to vector<16x64xf32>
    %24 = arith.truncf %23 : vector<16x64xf32> to vector<16x64xbf16>
    %cst_19 = arith.constant 0.000000e+00 : f32
    %25 = vector.broadcast %cst_19 : f32 to vector<16x64xf32>
    %26 = vector.extract_strided_slice %20 {offsets = [0, 0], sizes = [16, 8], strides = [1, 1]} : vector<16x64xbf16> to vector<16x8xbf16>
    %27 = vector.extract_strided_slice %22 {offsets = [0, 0], sizes = [16, 8], strides = [1, 1]} : vector<16x64xbf16> to vector<16x8xbf16>
    "tpu.trace_start"() <{level = 10 : i32, message = "qd,kd->qk"}> : () -> ()
    %cst_20 = arith.constant dense<0.000000e+00> : vector<16x16xf32>
    %28 = tpu.matmul %26, %27, %cst_20 {dimension_numbers = #tpu.dot_dimension_numbers<[1], [1], [0], [0], [0, 0, 1, 0], [], []>} : vector<16x8xbf16>, vector<16x8xbf16>, vector<16x16xf32> -> vector<16x16xf32>
    "tpu.trace_stop"() : () -> ()
    %cst_21 = arith.constant dense<0xFF800000> : vector<16xf32>
    %29 = vector.multi_reduction <maximumf>, %28, %cst_21 [1] : vector<16x16xf32> to vector<16xf32>
    %30 = vector.shape_cast %29 : vector<16xf32> to vector<16x1xf32>
    %31 = vector.broadcast %30 : vector<16x1xf32> to vector<16x16xf32>
    %32 = arith.subf %28, %31 : vector<16x16xf32>
    %33 = math.exp %32 : vector<16x16xf32>
    %cst_22 = arith.constant dense<0.000000e+00> : vector<16xf32>
    %34 = vector.multi_reduction <add>, %33, %cst_22 [1] : vector<16x16xf32> to vector<16xf32>
    %35 = vector.shape_cast %34 : vector<16xf32> to vector<16x1xf32>
    %36 = arith.truncf %33 : vector<16x16xf32> to vector<16x16xbf16>
    %37 = vector.extract_strided_slice %24 {offsets = [0, 0], sizes = [16, 8], strides = [1, 1]} : vector<16x64xbf16> to vector<16x8xbf16>
    %cst_23 = arith.constant dense<0.000000e+00> : vector<16x8xf32>
    %38 = tpu.matmul %36, %37, %cst_23 {dimension_numbers = #tpu.dot_dimension_numbers<[1], [0], [0], [1], [0, 0, 1, 1], [], []>} : vector<16x16xbf16>, vector<16x8xbf16>, vector<16x8xf32> -> vector<16x8xf32>
    %39 = tpu.reciprocal %35 {approx = true} : vector<16x1xf32> -> vector<16x1xf32>
    %40 = vector.broadcast %39 : vector<16x1xf32> to vector<16x8xf32>
    %41 = arith.mulf %38, %40 : vector<16x8xf32>
    %42 = arith.truncf %41 : vector<16x8xf32> to vector<16x8xbf16>
    %43 = vector.extract_strided_slice %13 {offsets = [0, 0], sizes = [8, 64], strides = [1, 1]} : vector<64x64xbf16> to vector<8x64xbf16>
    %cst_24 = arith.constant dense<0.000000e+00> : vector<16x64xf32>
    %44 = tpu.matmul %42, %43, %cst_24 {dimension_numbers = #tpu.dot_dimension_numbers<[1], [0], [0], [1], [0, 0, 1, 1], [], []>} : vector<16x8xbf16>, vector<8x64xbf16>, vector<16x64xf32> -> vector<16x64xf32>
    %45 = arith.addf %25, %44 : vector<16x64xf32>
    %46 = vector.extract_strided_slice %20 {offsets = [0, 8], sizes = [16, 8], strides = [1, 1]} : vector<16x64xbf16> to vector<16x8xbf16>
    %47 = vector.extract_strided_slice %22 {offsets = [0, 8], sizes = [16, 8], strides = [1, 1]} : vector<16x64xbf16> to vector<16x8xbf16>
    "tpu.trace_start"() <{level = 10 : i32, message = "qd,kd->qk"}> : () -> ()
    %cst_25 = arith.constant dense<0.000000e+00> : vector<16x16xf32>
    %48 = tpu.matmul %46, %47, %cst_25 {dimension_numbers = #tpu.dot_dimension_numbers<[1], [1], [0], [0], [0, 0, 1, 0], [], []>} : vector<16x8xbf16>, vector<16x8xbf16>, vector<16x16xf32> -> vector<16x16xf32>
    "tpu.trace_stop"() : () -> ()
    %cst_26 = arith.constant dense<0xFF800000> : vector<16xf32>
    %49 = vector.multi_reduction <maximumf>, %48, %cst_26 [1] : vector<16x16xf32> to vector<16xf32>
    %50 = vector.shape_cast %49 : vector<16xf32> to vector<16x1xf32>
    %51 = vector.broadcast %50 : vector<16x1xf32> to vector<16x16xf32>
    %52 = arith.subf %48, %51 : vector<16x16xf32>
    %53 = math.exp %52 : vector<16x16xf32>
    %cst_27 = arith.constant dense<0.000000e+00> : vector<16xf32>
    %54 = vector.multi_reduction <add>, %53, %cst_27 [1] : vector<16x16xf32> to vector<16xf32>
    %55 = vector.shape_cast %54 : vector<16xf32> to vector<16x1xf32>
    %56 = arith.truncf %53 : vector<16x16xf32> to vector<16x16xbf16>
    %57 = vector.extract_strided_slice %24 {offsets = [0, 8], sizes = [16, 8], strides = [1, 1]} : vector<16x64xbf16> to vector<16x8xbf16>
    %cst_28 = arith.constant dense<0.000000e+00> : vector<16x8xf32>
    %58 = tpu.matmul %56, %57, %cst_28 {dimension_numbers = #tpu.dot_dimension_numbers<[1], [0], [0], [1], [0, 0, 1, 1], [], []>} : vector<16x16xbf16>, vector<16x8xbf16>, vector<16x8xf32> -> vector<16x8xf32>
    %59 = tpu.reciprocal %55 {approx = true} : vector<16x1xf32> -> vector<16x1xf32>
    %60 = vector.broadcast %59 : vector<16x1xf32> to vector<16x8xf32>
    %61 = arith.mulf %58, %60 : vector<16x8xf32>
    %62 = arith.truncf %61 : vector<16x8xf32> to vector<16x8xbf16>
    %63 = vector.extract_strided_slice %13 {offsets = [8, 0], sizes = [8, 64], strides = [1, 1]} : vector<64x64xbf16> to vector<8x64xbf16>
    %cst_29 = arith.constant dense<0.000000e+00> : vector<16x64xf32>
    %64 = tpu.matmul %62, %63, %cst_29 {dimension_numbers = #tpu.dot_dimension_numbers<[1], [0], [0], [1], [0, 0, 1, 1], [], []>} : vector<16x8xbf16>, vector<8x64xbf16>, vector<16x64xf32> -> vector<16x64xf32>
    %65 = arith.addf %45, %64 : vector<16x64xf32>
    %66 = vector.extract_strided_slice %20 {offsets = [0, 16], sizes = [16, 8], strides = [1, 1]} : vector<16x64xbf16> to vector<16x8xbf16>
    %67 = vector.extract_strided_slice %22 {offsets = [0, 16], sizes = [16, 8], strides = [1, 1]} : vector<16x64xbf16> to vector<16x8xbf16>
    "tpu.trace_start"() <{level = 10 : i32, message = "qd,kd->qk"}> : () -> ()
    %cst_30 = arith.constant dense<0.000000e+00> : vector<16x16xf32>
    %68 = tpu.matmul %66, %67, %cst_30 {dimension_numbers = #tpu.dot_dimension_numbers<[1], [1], [0], [0], [0, 0, 1, 0], [], []>} : vector<16x8xbf16>, vector<16x8xbf16>, vector<16x16xf32> -> vector<16x16xf32>
    "tpu.trace_stop"() : () -> ()
    %cst_31 = arith.constant dense<0xFF800000> : vector<16xf32>
    %69 = vector.multi_reduction <maximumf>, %68, %cst_31 [1] : vector<16x16xf32> to vector<16xf32>
    %70 = vector.shape_cast %69 : vector<16xf32> to vector<16x1xf32>
    %71 = vector.broadcast %70 : vector<16x1xf32> to vector<16x16xf32>
    %72 = arith.subf %68, %71 : vector<16x16xf32>
    %73 = math.exp %72 : vector<16x16xf32>
    %cst_32 = arith.constant dense<0.000000e+00> : vector<16xf32>
    %74 = vector.multi_reduction <add>, %73, %cst_32 [1] : vector<16x16xf32> to vector<16xf32>
    %75 = vector.shape_cast %74 : vector<16xf32> to vector<16x1xf32>
    %76 = arith.truncf %73 : vector<16x16xf32> to vector<16x16xbf16>
    %77 = vector.extract_strided_slice %24 {offsets = [0, 16], sizes = [16, 8], strides = [1, 1]} : vector<16x64xbf16> to vector<16x8xbf16>
    %cst_33 = arith.constant dense<0.000000e+00> : vector<16x8xf32>
    %78 = tpu.matmul %76, %77, %cst_33 {dimension_numbers = #tpu.dot_dimension_numbers<[1], [0], [0], [1], [0, 0, 1, 1], [], []>} : vector<16x16xbf16>, vector<16x8xbf16>, vector<16x8xf32> -> vector<16x8xf32>
    %79 = tpu.reciprocal %75 {approx = true} : vector<16x1xf32> -> vector<16x1xf32>
    %80 = vector.broadcast %79 : vector<16x1xf32> to vector<16x8xf32>
    %81 = arith.mulf %78, %80 : vector<16x8xf32>
    %82 = arith.truncf %81 : vector<16x8xf32> to vector<16x8xbf16>
    %83 = vector.extract_strided_slice %13 {offsets = [16, 0], sizes = [8, 64], strides = [1, 1]} : vector<64x64xbf16> to vector<8x64xbf16>
    %cst_34 = arith.constant dense<0.000000e+00> : vector<16x64xf32>
    %84 = tpu.matmul %82, %83, %cst_34 {dimension_numbers = #tpu.dot_dimension_numbers<[1], [0], [0], [1], [0, 0, 1, 1], [], []>} : vector<16x8xbf16>, vector<8x64xbf16>, vector<16x64xf32> -> vector<16x64xf32>
    %85 = arith.addf %65, %84 : vector<16x64xf32>
    %86 = vector.extract_strided_slice %20 {offsets = [0, 24], sizes = [16, 8], strides = [1, 1]} : vector<16x64xbf16> to vector<16x8xbf16>
    %87 = vector.extract_strided_slice %22 {offsets = [0, 24], sizes = [16, 8], strides = [1, 1]} : vector<16x64xbf16> to vector<16x8xbf16>
    "tpu.trace_start"() <{level = 10 : i32, message = "qd,kd->qk"}> : () -> ()
    %cst_35 = arith.constant dense<0.000000e+00> : vector<16x16xf32>
    %88 = tpu.matmul %86, %87, %cst_35 {dimension_numbers = #tpu.dot_dimension_numbers<[1], [1], [0], [0], [0, 0, 1, 0], [], []>} : vector<16x8xbf16>, vector<16x8xbf16>, vector<16x16xf32> -> vector<16x16xf32>
    "tpu.trace_stop"() : () -> ()
    %cst_36 = arith.constant dense<0xFF800000> : vector<16xf32>
    %89 = vector.multi_reduction <maximumf>, %88, %cst_36 [1] : vector<16x16xf32> to vector<16xf32>
    %90 = vector.shape_cast %89 : vector<16xf32> to vector<16x1xf32>
    %91 = vector.broadcast %90 : vector<16x1xf32> to vector<16x16xf32>
    %92 = arith.subf %88, %91 : vector<16x16xf32>
    %93 = math.exp %92 : vector<16x16xf32>
    %cst_37 = arith.constant dense<0.000000e+00> : vector<16xf32>
    %94 = vector.multi_reduction <add>, %93, %cst_37 [1] : vector<16x16xf32> to vector<16xf32>
    %95 = vector.shape_cast %94 : vector<16xf32> to vector<16x1xf32>
    %96 = arith.truncf %93 : vector<16x16xf32> to vector<16x16xbf16>
    %97 = vector.extract_strided_slice %24 {offsets = [0, 24], sizes = [16, 8], strides = [1, 1]} : vector<16x64xbf16> to vector<16x8xbf16>
    %cst_38 = arith.constant dense<0.000000e+00> : vector<16x8xf32>
    %98 = tpu.matmul %96, %97, %cst_38 {dimension_numbers = #tpu.dot_dimension_numbers<[1], [0], [0], [1], [0, 0, 1, 1], [], []>} : vector<16x16xbf16>, vector<16x8xbf16>, vector<16x8xf32> -> vector<16x8xf32>
    %99 = tpu.reciprocal %95 {approx = true} : vector<16x1xf32> -> vector<16x1xf32>
    %100 = vector.broadcast %99 : vector<16x1xf32> to vector<16x8xf32>
    %101 = arith.mulf %98, %100 : vector<16x8xf32>
    %102 = arith.truncf %101 : vector<16x8xf32> to vector<16x8xbf16>
    %103 = vector.extract_strided_slice %13 {offsets = [24, 0], sizes = [8, 64], strides = [1, 1]} : vector<64x64xbf16> to vector<8x64xbf16>
    %cst_39 = arith.constant dense<0.000000e+00> : vector<16x64xf32>
    %104 = tpu.matmul %102, %103, %cst_39 {dimension_numbers = #tpu.dot_dimension_numbers<[1], [0], [0], [1], [0, 0, 1, 1], [], []>} : vector<16x8xbf16>, vector<8x64xbf16>, vector<16x64xf32> -> vector<16x64xf32>
    %105 = arith.addf %85, %104 : vector<16x64xf32>
    %106 = vector.extract_strided_slice %20 {offsets = [0, 32], sizes = [16, 8], strides = [1, 1]} : vector<16x64xbf16> to vector<16x8xbf16>
    %107 = vector.extract_strided_slice %22 {offsets = [0, 32], sizes = [16, 8], strides = [1, 1]} : vector<16x64xbf16> to vector<16x8xbf16>
    "tpu.trace_start"() <{level = 10 : i32, message = "qd,kd->qk"}> : () -> ()
    %cst_40 = arith.constant dense<0.000000e+00> : vector<16x16xf32>
    %108 = tpu.matmul %106, %107, %cst_40 {dimension_numbers = #tpu.dot_dimension_numbers<[1], [1], [0], [0], [0, 0, 1, 0], [], []>} : vector<16x8xbf16>, vector<16x8xbf16>, vector<16x16xf32> -> vector<16x16xf32>
    "tpu.trace_stop"() : () -> ()
    %cst_41 = arith.constant dense<0xFF800000> : vector<16xf32>
    %109 = vector.multi_reduction <maximumf>, %108, %cst_41 [1] : vector<16x16xf32> to vector<16xf32>
    %110 = vector.shape_cast %109 : vector<16xf32> to vector<16x1xf32>
    %111 = vector.broadcast %110 : vector<16x1xf32> to vector<16x16xf32>
    %112 = arith.subf %108, %111 : vector<16x16xf32>
    %113 = math.exp %112 : vector<16x16xf32>
    %cst_42 = arith.constant dense<0.000000e+00> : vector<16xf32>
    %114 = vector.multi_reduction <add>, %113, %cst_42 [1] : vector<16x16xf32> to vector<16xf32>
    %115 = vector.shape_cast %114 : vector<16xf32> to vector<16x1xf32>
    %116 = arith.truncf %113 : vector<16x16xf32> to vector<16x16xbf16>
    %117 = vector.extract_strided_slice %24 {offsets = [0, 32], sizes = [16, 8], strides = [1, 1]} : vector<16x64xbf16> to vector<16x8xbf16>
    %cst_43 = arith.constant dense<0.000000e+00> : vector<16x8xf32>
    %118 = tpu.matmul %116, %117, %cst_43 {dimension_numbers = #tpu.dot_dimension_numbers<[1], [0], [0], [1], [0, 0, 1, 1], [], []>} : vector<16x16xbf16>, vector<16x8xbf16>, vector<16x8xf32> -> vector<16x8xf32>
    %119 = tpu.reciprocal %115 {approx = true} : vector<16x1xf32> -> vector<16x1xf32>
    %120 = vector.broadcast %119 : vector<16x1xf32> to vector<16x8xf32>
    %121 = arith.mulf %118, %120 : vector<16x8xf32>
    %122 = arith.truncf %121 : vector<16x8xf32> to vector<16x8xbf16>
    %123 = vector.extract_strided_slice %13 {offsets = [32, 0], sizes = [8, 64], strides = [1, 1]} : vector<64x64xbf16> to vector<8x64xbf16>
    %cst_44 = arith.constant dense<0.000000e+00> : vector<16x64xf32>
    %124 = tpu.matmul %122, %123, %cst_44 {dimension_numbers = #tpu.dot_dimension_numbers<[1], [0], [0], [1], [0, 0, 1, 1], [], []>} : vector<16x8xbf16>, vector<8x64xbf16>, vector<16x64xf32> -> vector<16x64xf32>
    %125 = arith.addf %105, %124 : vector<16x64xf32>
    %126 = vector.extract_strided_slice %20 {offsets = [0, 40], sizes = [16, 8], strides = [1, 1]} : vector<16x64xbf16> to vector<16x8xbf16>
    %127 = vector.extract_strided_slice %22 {offsets = [0, 40], sizes = [16, 8], strides = [1, 1]} : vector<16x64xbf16> to vector<16x8xbf16>
    "tpu.trace_start"() <{level = 10 : i32, message = "qd,kd->qk"}> : () -> ()
    %cst_45 = arith.constant dense<0.000000e+00> : vector<16x16xf32>
    %128 = tpu.matmul %126, %127, %cst_45 {dimension_numbers = #tpu.dot_dimension_numbers<[1], [1], [0], [0], [0, 0, 1, 0], [], []>} : vector<16x8xbf16>, vector<16x8xbf16>, vector<16x16xf32> -> vector<16x16xf32>
    "tpu.trace_stop"() : () -> ()
    %cst_46 = arith.constant dense<0xFF800000> : vector<16xf32>
    %129 = vector.multi_reduction <maximumf>, %128, %cst_46 [1] : vector<16x16xf32> to vector<16xf32>
    %130 = vector.shape_cast %129 : vector<16xf32> to vector<16x1xf32>
    %131 = vector.broadcast %130 : vector<16x1xf32> to vector<16x16xf32>
    %132 = arith.subf %128, %131 : vector<16x16xf32>
    %133 = math.exp %132 : vector<16x16xf32>
    %cst_47 = arith.constant dense<0.000000e+00> : vector<16xf32>
    %134 = vector.multi_reduction <add>, %133, %cst_47 [1] : vector<16x16xf32> to vector<16xf32>
    %135 = vector.shape_cast %134 : vector<16xf32> to vector<16x1xf32>
    %136 = arith.truncf %133 : vector<16x16xf32> to vector<16x16xbf16>
    %137 = vector.extract_strided_slice %24 {offsets = [0, 40], sizes = [16, 8], strides = [1, 1]} : vector<16x64xbf16> to vector<16x8xbf16>
    %cst_48 = arith.constant dense<0.000000e+00> : vector<16x8xf32>
    %138 = tpu.matmul %136, %137, %cst_48 {dimension_numbers = #tpu.dot_dimension_numbers<[1], [0], [0], [1], [0, 0, 1, 1], [], []>} : vector<16x16xbf16>, vector<16x8xbf16>, vector<16x8xf32> -> vector<16x8xf32>
    %139 = tpu.reciprocal %135 {approx = true} : vector<16x1xf32> -> vector<16x1xf32>
    %140 = vector.broadcast %139 : vector<16x1xf32> to vector<16x8xf32>
    %141 = arith.mulf %138, %140 : vector<16x8xf32>
    %142 = arith.truncf %141 : vector<16x8xf32> to vector<16x8xbf16>
    %143 = vector.extract_strided_slice %13 {offsets = [40, 0], sizes = [8, 64], strides = [1, 1]} : vector<64x64xbf16> to vector<8x64xbf16>
    %cst_49 = arith.constant dense<0.000000e+00> : vector<16x64xf32>
    %144 = tpu.matmul %142, %143, %cst_49 {dimension_numbers = #tpu.dot_dimension_numbers<[1], [0], [0], [1], [0, 0, 1, 1], [], []>} : vector<16x8xbf16>, vector<8x64xbf16>, vector<16x64xf32> -> vector<16x64xf32>
    %145 = arith.addf %125, %144 : vector<16x64xf32>
    %146 = vector.extract_strided_slice %20 {offsets = [0, 48], sizes = [16, 8], strides = [1, 1]} : vector<16x64xbf16> to vector<16x8xbf16>
    %147 = vector.extract_strided_slice %22 {offsets = [0, 48], sizes = [16, 8], strides = [1, 1]} : vector<16x64xbf16> to vector<16x8xbf16>
    "tpu.trace_start"() <{level = 10 : i32, message = "qd,kd->qk"}> : () -> ()
    %cst_50 = arith.constant dense<0.000000e+00> : vector<16x16xf32>
    %148 = tpu.matmul %146, %147, %cst_50 {dimension_numbers = #tpu.dot_dimension_numbers<[1], [1], [0], [0], [0, 0, 1, 0], [], []>} : vector<16x8xbf16>, vector<16x8xbf16>, vector<16x16xf32> -> vector<16x16xf32>
    "tpu.trace_stop"() : () -> ()
    %cst_51 = arith.constant dense<0xFF800000> : vector<16xf32>
    %149 = vector.multi_reduction <maximumf>, %148, %cst_51 [1] : vector<16x16xf32> to vector<16xf32>
    %150 = vector.shape_cast %149 : vector<16xf32> to vector<16x1xf32>
    %151 = vector.broadcast %150 : vector<16x1xf32> to vector<16x16xf32>
    %152 = arith.subf %148, %151 : vector<16x16xf32>
    %153 = math.exp %152 : vector<16x16xf32>
    %cst_52 = arith.constant dense<0.000000e+00> : vector<16xf32>
    %154 = vector.multi_reduction <add>, %153, %cst_52 [1] : vector<16x16xf32> to vector<16xf32>
    %155 = vector.shape_cast %154 : vector<16xf32> to vector<16x1xf32>
    %156 = arith.truncf %153 : vector<16x16xf32> to vector<16x16xbf16>
    %157 = vector.extract_strided_slice %24 {offsets = [0, 48], sizes = [16, 8], strides = [1, 1]} : vector<16x64xbf16> to vector<16x8xbf16>
    %cst_53 = arith.constant dense<0.000000e+00> : vector<16x8xf32>
    %158 = tpu.matmul %156, %157, %cst_53 {dimension_numbers = #tpu.dot_dimension_numbers<[1], [0], [0], [1], [0, 0, 1, 1], [], []>} : vector<16x16xbf16>, vector<16x8xbf16>, vector<16x8xf32> -> vector<16x8xf32>
    %159 = tpu.reciprocal %155 {approx = true} : vector<16x1xf32> -> vector<16x1xf32>
    %160 = vector.broadcast %159 : vector<16x1xf32> to vector<16x8xf32>
    %161 = arith.mulf %158, %160 : vector<16x8xf32>
    %162 = arith.truncf %161 : vector<16x8xf32> to vector<16x8xbf16>
    %163 = vector.extract_strided_slice %13 {offsets = [48, 0], sizes = [8, 64], strides = [1, 1]} : vector<64x64xbf16> to vector<8x64xbf16>
    %cst_54 = arith.constant dense<0.000000e+00> : vector<16x64xf32>
    %164 = tpu.matmul %162, %163, %cst_54 {dimension_numbers = #tpu.dot_dimension_numbers<[1], [0], [0], [1], [0, 0, 1, 1], [], []>} : vector<16x8xbf16>, vector<8x64xbf16>, vector<16x64xf32> -> vector<16x64xf32>
    %165 = arith.addf %145, %164 : vector<16x64xf32>
    %166 = vector.extract_strided_slice %20 {offsets = [0, 56], sizes = [16, 8], strides = [1, 1]} : vector<16x64xbf16> to vector<16x8xbf16>
    %167 = vector.extract_strided_slice %22 {offsets = [0, 56], sizes = [16, 8], strides = [1, 1]} : vector<16x64xbf16> to vector<16x8xbf16>
    "tpu.trace_start"() <{level = 10 : i32, message = "qd,kd->qk"}> : () -> ()
    %cst_55 = arith.constant dense<0.000000e+00> : vector<16x16xf32>
    %168 = tpu.matmul %166, %167, %cst_55 {dimension_numbers = #tpu.dot_dimension_numbers<[1], [1], [0], [0], [0, 0, 1, 0], [], []>} : vector<16x8xbf16>, vector<16x8xbf16>, vector<16x16xf32> -> vector<16x16xf32>
    "tpu.trace_stop"() : () -> ()
    %cst_56 = arith.constant dense<0xFF800000> : vector<16xf32>
    %169 = vector.multi_reduction <maximumf>, %168, %cst_56 [1] : vector<16x16xf32> to vector<16xf32>
    %170 = vector.shape_cast %169 : vector<16xf32> to vector<16x1xf32>
    %171 = vector.broadcast %170 : vector<16x1xf32> to vector<16x16xf32>
    %172 = arith.subf %168, %171 : vector<16x16xf32>
    %173 = math.exp %172 : vector<16x16xf32>
    %cst_57 = arith.constant dense<0.000000e+00> : vector<16xf32>
    %174 = vector.multi_reduction <add>, %173, %cst_57 [1] : vector<16x16xf32> to vector<16xf32>
    %175 = vector.shape_cast %174 : vector<16xf32> to vector<16x1xf32>
    %176 = arith.truncf %173 : vector<16x16xf32> to vector<16x16xbf16>
    %177 = vector.extract_strided_slice %24 {offsets = [0, 56], sizes = [16, 8], strides = [1, 1]} : vector<16x64xbf16> to vector<16x8xbf16>
    %cst_58 = arith.constant dense<0.000000e+00> : vector<16x8xf32>
    %178 = tpu.matmul %176, %177, %cst_58 {dimension_numbers = #tpu.dot_dimension_numbers<[1], [0], [0], [1], [0, 0, 1, 1], [], []>} : vector<16x16xbf16>, vector<16x8xbf16>, vector<16x8xf32> -> vector<16x8xf32>
    %179 = tpu.reciprocal %175 {approx = true} : vector<16x1xf32> -> vector<16x1xf32>
    %180 = vector.broadcast %179 : vector<16x1xf32> to vector<16x8xf32>
    %181 = arith.mulf %178, %180 : vector<16x8xf32>
    %182 = arith.truncf %181 : vector<16x8xf32> to vector<16x8xbf16>
    %183 = vector.extract_strided_slice %13 {offsets = [56, 0], sizes = [8, 64], strides = [1, 1]} : vector<64x64xbf16> to vector<8x64xbf16>
    %cst_59 = arith.constant dense<0.000000e+00> : vector<16x64xf32>
    %184 = tpu.matmul %182, %183, %cst_59 {dimension_numbers = #tpu.dot_dimension_numbers<[1], [0], [0], [1], [0, 0, 1, 1], [], []>} : vector<16x8xbf16>, vector<8x64xbf16>, vector<16x64xf32> -> vector<16x64xf32>
    %185 = arith.addf %165, %184 : vector<16x64xf32>
    %186 = vector.broadcast %14 : vector<1x64xf32> to vector<16x64xf32>
    %187 = arith.addf %185, %186 : vector<16x64xf32>
    %188 = arith.addf %10, %187 : vector<16x64xf32>
    %c0_60 = arith.constant 0 : index
    %c0_61 = arith.constant 0 : index
    %189 = vector.load %arg9[%c0_60, %c0_61] : memref<1x64xf32, #tpu.memory_space<vmem>>, vector<1x64xf32>
    %190 = vector.broadcast %189 : vector<1x64xf32> to vector<16x64xf32>
    %191 = arith.mulf %188, %190 : vector<16x64xf32>
    %c0_62 = arith.constant 0 : index
    %c0_63 = arith.constant 0 : index
    %192 = vector.load %arg10[%c0_62, %c0_63] : memref<1x64xf32, #tpu.memory_space<vmem>>, vector<1x64xf32>
    %193 = vector.broadcast %192 : vector<1x64xf32> to vector<16x64xf32>
    %194 = arith.addf %191, %193 : vector<16x64xf32>
    %cst_64 = arith.constant 0.000000e+00 : f32
    %195 = vector.broadcast %cst_64 : f32 to vector<16x64xf32>
    %196 = arith.maximumf %194, %195 : vector<16x64xf32>
    %c0_65 = arith.constant 0 : index
    %c0_66 = arith.constant 0 : index
    %197 = vector.load %arg11[%c0_65, %c0_66] : memref<64x64xf32, #tpu.memory_space<vmem>>, vector<64x64xf32>
    %cst_67 = arith.constant dense<0.000000e+00> : vector<16x64xf32>
    %198 = tpu.matmul %196, %197, %cst_67 {dimension_numbers = #tpu.dot_dimension_numbers<[1], [0], [0], [1], [0, 0, 1, 1], [], []>} : vector<16x64xf32>, vector<64x64xf32>, vector<16x64xf32> -> vector<16x64xf32>
    %c0_68 = arith.constant 0 : index
    %c0_69 = arith.constant 0 : index
    %199 = vector.load %arg12[%c0_68, %c0_69] : memref<64x192xbf16, #tpu.memory_space<vmem>>, vector<64x192xbf16>
    %c0_70 = arith.constant 0 : index
    %c0_71 = arith.constant 0 : index
    %200 = vector.load %arg13[%c0_70, %c0_71] : memref<1x192xf32, #tpu.memory_space<vmem>>, vector<1x192xf32>
    %c0_72 = arith.constant 0 : index
    %c0_73 = arith.constant 0 : index
    %201 = vector.load %arg14[%c0_72, %c0_73] : memref<64x64xbf16, #tpu.memory_space<vmem>>, vector<64x64xbf16>
    %c0_74 = arith.constant 0 : index
    %c0_75 = arith.constant 0 : index
    %202 = vector.load %arg15[%c0_74, %c0_75] : memref<1x64xf32, #tpu.memory_space<vmem>>, vector<1x64xf32>
    %203 = arith.truncf %198 : vector<16x64xf32> to vector<16x64xbf16>
    %cst_76 = arith.constant dense<0.000000e+00> : vector<16x192xf32>
    %204 = tpu.matmul %203, %199, %cst_76 {dimension_numbers = #tpu.dot_dimension_numbers<[1], [0], [0], [1], [0, 0, 1, 1], [], []>} : vector<16x64xbf16>, vector<64x192xbf16>, vector<16x192xf32> -> vector<16x192xf32>
    %205 = vector.broadcast %200 : vector<1x192xf32> to vector<16x192xf32>
    %206 = arith.addf %204, %205 : vector<16x192xf32>
    %207 = vector.extract_strided_slice %206 {offsets = [0, 0], sizes = [16, 64], strides = [1, 1]} : vector<16x192xf32> to vector<16x64xf32>
    %208 = arith.truncf %207 : vector<16x64xf32> to vector<16x64xbf16>
    %209 = vector.extract_strided_slice %206 {offsets = [0, 64], sizes = [16, 64], strides = [1, 1]} : vector<16x192xf32> to vector<16x64xf32>
    %210 = arith.truncf %209 : vector<16x64xf32> to vector<16x64xbf16>
    %211 = vector.extract_strided_slice %206 {offsets = [0, 128], sizes = [16, 64], strides = [1, 1]} : vector<16x192xf32> to vector<16x64xf32>
    %212 = arith.truncf %211 : vector<16x64xf32> to vector<16x64xbf16>
    %cst_77 = arith.constant 0.000000e+00 : f32
    %213 = vector.broadcast %cst_77 : f32 to vector<16x64xf32>
    %214 = vector.extract_strided_slice %208 {offsets = [0, 0], sizes = [16, 8], strides = [1, 1]} : vector<16x64xbf16> to vector<16x8xbf16>
    %215 = vector.extract_strided_slice %210 {offsets = [0, 0], sizes = [16, 8], strides = [1, 1]} : vector<16x64xbf16> to vector<16x8xbf16>
    "tpu.trace_start"() <{level = 10 : i32, message = "qd,kd->qk"}> : () -> ()
    %cst_78 = arith.constant dense<0.000000e+00> : vector<16x16xf32>
    %216 = tpu.matmul %214, %215, %cst_78 {dimension_numbers = #tpu.dot_dimension_numbers<[1], [1], [0], [0], [0, 0, 1, 0], [], []>} : vector<16x8xbf16>, vector<16x8xbf16>, vector<16x16xf32> -> vector<16x16xf32>
    "tpu.trace_stop"() : () -> ()
    %cst_79 = arith.constant dense<0xFF800000> : vector<16xf32>
    %217 = vector.multi_reduction <maximumf>, %216, %cst_79 [1] : vector<16x16xf32> to vector<16xf32>
    %218 = vector.shape_cast %217 : vector<16xf32> to vector<16x1xf32>
    %219 = vector.broadcast %218 : vector<16x1xf32> to vector<16x16xf32>
    %220 = arith.subf %216, %219 : vector<16x16xf32>
    %221 = math.exp %220 : vector<16x16xf32>
    %cst_80 = arith.constant dense<0.000000e+00> : vector<16xf32>
    %222 = vector.multi_reduction <add>, %221, %cst_80 [1] : vector<16x16xf32> to vector<16xf32>
    %223 = vector.shape_cast %222 : vector<16xf32> to vector<16x1xf32>
    %224 = arith.truncf %221 : vector<16x16xf32> to vector<16x16xbf16>
    %225 = vector.extract_strided_slice %212 {offsets = [0, 0], sizes = [16, 8], strides = [1, 1]} : vector<16x64xbf16> to vector<16x8xbf16>
    %cst_81 = arith.constant dense<0.000000e+00> : vector<16x8xf32>
    %226 = tpu.matmul %224, %225, %cst_81 {dimension_numbers = #tpu.dot_dimension_numbers<[1], [0], [0], [1], [0, 0, 1, 1], [], []>} : vector<16x16xbf16>, vector<16x8xbf16>, vector<16x8xf32> -> vector<16x8xf32>
    %227 = tpu.reciprocal %223 {approx = true} : vector<16x1xf32> -> vector<16x1xf32>
    %228 = vector.broadcast %227 : vector<16x1xf32> to vector<16x8xf32>
    %229 = arith.mulf %226, %228 : vector<16x8xf32>
    %230 = arith.truncf %229 : vector<16x8xf32> to vector<16x8xbf16>
    %231 = vector.extract_strided_slice %201 {offsets = [0, 0], sizes = [8, 64], strides = [1, 1]} : vector<64x64xbf16> to vector<8x64xbf16>
    %cst_82 = arith.constant dense<0.000000e+00> : vector<16x64xf32>
    %232 = tpu.matmul %230, %231, %cst_82 {dimension_numbers = #tpu.dot_dimension_numbers<[1], [0], [0], [1], [0, 0, 1, 1], [], []>} : vector<16x8xbf16>, vector<8x64xbf16>, vector<16x64xf32> -> vector<16x64xf32>
    %233 = arith.addf %213, %232 : vector<16x64xf32>
    %234 = vector.extract_strided_slice %208 {offsets = [0, 8], sizes = [16, 8], strides = [1, 1]} : vector<16x64xbf16> to vector<16x8xbf16>
    %235 = vector.extract_strided_slice %210 {offsets = [0, 8], sizes = [16, 8], strides = [1, 1]} : vector<16x64xbf16> to vector<16x8xbf16>
    "tpu.trace_start"() <{level = 10 : i32, message = "qd,kd->qk"}> : () -> ()
    %cst_83 = arith.constant dense<0.000000e+00> : vector<16x16xf32>
    %236 = tpu.matmul %234, %235, %cst_83 {dimension_numbers = #tpu.dot_dimension_numbers<[1], [1], [0], [0], [0, 0, 1, 0], [], []>} : vector<16x8xbf16>, vector<16x8xbf16>, vector<16x16xf32> -> vector<16x16xf32>
    "tpu.trace_stop"() : () -> ()
    %cst_84 = arith.constant dense<0xFF800000> : vector<16xf32>
    %237 = vector.multi_reduction <maximumf>, %236, %cst_84 [1] : vector<16x16xf32> to vector<16xf32>
    %238 = vector.shape_cast %237 : vector<16xf32> to vector<16x1xf32>
    %239 = vector.broadcast %238 : vector<16x1xf32> to vector<16x16xf32>
    %240 = arith.subf %236, %239 : vector<16x16xf32>
    %241 = math.exp %240 : vector<16x16xf32>
    %cst_85 = arith.constant dense<0.000000e+00> : vector<16xf32>
    %242 = vector.multi_reduction <add>, %241, %cst_85 [1] : vector<16x16xf32> to vector<16xf32>
    %243 = vector.shape_cast %242 : vector<16xf32> to vector<16x1xf32>
    %244 = arith.truncf %241 : vector<16x16xf32> to vector<16x16xbf16>
    %245 = vector.extract_strided_slice %212 {offsets = [0, 8], sizes = [16, 8], strides = [1, 1]} : vector<16x64xbf16> to vector<16x8xbf16>
    %cst_86 = arith.constant dense<0.000000e+00> : vector<16x8xf32>
    %246 = tpu.matmul %244, %245, %cst_86 {dimension_numbers = #tpu.dot_dimension_numbers<[1], [0], [0], [1], [0, 0, 1, 1], [], []>} : vector<16x16xbf16>, vector<16x8xbf16>, vector<16x8xf32> -> vector<16x8xf32>
    %247 = tpu.reciprocal %243 {approx = true} : vector<16x1xf32> -> vector<16x1xf32>
    %248 = vector.broadcast %247 : vector<16x1xf32> to vector<16x8xf32>
    %249 = arith.mulf %246, %248 : vector<16x8xf32>
    %250 = arith.truncf %249 : vector<16x8xf32> to vector<16x8xbf16>
    %251 = vector.extract_strided_slice %201 {offsets = [8, 0], sizes = [8, 64], strides = [1, 1]} : vector<64x64xbf16> to vector<8x64xbf16>
    %cst_87 = arith.constant dense<0.000000e+00> : vector<16x64xf32>
    %252 = tpu.matmul %250, %251, %cst_87 {dimension_numbers = #tpu.dot_dimension_numbers<[1], [0], [0], [1], [0, 0, 1, 1], [], []>} : vector<16x8xbf16>, vector<8x64xbf16>, vector<16x64xf32> -> vector<16x64xf32>
    %253 = arith.addf %233, %252 : vector<16x64xf32>
    %254 = vector.extract_strided_slice %208 {offsets = [0, 16], sizes = [16, 8], strides = [1, 1]} : vector<16x64xbf16> to vector<16x8xbf16>
    %255 = vector.extract_strided_slice %210 {offsets = [0, 16], sizes = [16, 8], strides = [1, 1]} : vector<16x64xbf16> to vector<16x8xbf16>
    "tpu.trace_start"() <{level = 10 : i32, message = "qd,kd->qk"}> : () -> ()
    %cst_88 = arith.constant dense<0.000000e+00> : vector<16x16xf32>
    %256 = tpu.matmul %254, %255, %cst_88 {dimension_numbers = #tpu.dot_dimension_numbers<[1], [1], [0], [0], [0, 0, 1, 0], [], []>} : vector<16x8xbf16>, vector<16x8xbf16>, vector<16x16xf32> -> vector<16x16xf32>
    "tpu.trace_stop"() : () -> ()
    %cst_89 = arith.constant dense<0xFF800000> : vector<16xf32>
    %257 = vector.multi_reduction <maximumf>, %256, %cst_89 [1] : vector<16x16xf32> to vector<16xf32>
    %258 = vector.shape_cast %257 : vector<16xf32> to vector<16x1xf32>
    %259 = vector.broadcast %258 : vector<16x1xf32> to vector<16x16xf32>
    %260 = arith.subf %256, %259 : vector<16x16xf32>
    %261 = math.exp %260 : vector<16x16xf32>
    %cst_90 = arith.constant dense<0.000000e+00> : vector<16xf32>
    %262 = vector.multi_reduction <add>, %261, %cst_90 [1] : vector<16x16xf32> to vector<16xf32>
    %263 = vector.shape_cast %262 : vector<16xf32> to vector<16x1xf32>
    %264 = arith.truncf %261 : vector<16x16xf32> to vector<16x16xbf16>
    %265 = vector.extract_strided_slice %212 {offsets = [0, 16], sizes = [16, 8], strides = [1, 1]} : vector<16x64xbf16> to vector<16x8xbf16>
    %cst_91 = arith.constant dense<0.000000e+00> : vector<16x8xf32>
    %266 = tpu.matmul %264, %265, %cst_91 {dimension_numbers = #tpu.dot_dimension_numbers<[1], [0], [0], [1], [0, 0, 1, 1], [], []>} : vector<16x16xbf16>, vector<16x8xbf16>, vector<16x8xf32> -> vector<16x8xf32>
    %267 = tpu.reciprocal %263 {approx = true} : vector<16x1xf32> -> vector<16x1xf32>
    %268 = vector.broadcast %267 : vector<16x1xf32> to vector<16x8xf32>
    %269 = arith.mulf %266, %268 : vector<16x8xf32>
    %270 = arith.truncf %269 : vector<16x8xf32> to vector<16x8xbf16>
    %271 = vector.extract_strided_slice %201 {offsets = [16, 0], sizes = [8, 64], strides = [1, 1]} : vector<64x64xbf16> to vector<8x64xbf16>
    %cst_92 = arith.constant dense<0.000000e+00> : vector<16x64xf32>
    %272 = tpu.matmul %270, %271, %cst_92 {dimension_numbers = #tpu.dot_dimension_numbers<[1], [0], [0], [1], [0, 0, 1, 1], [], []>} : vector<16x8xbf16>, vector<8x64xbf16>, vector<16x64xf32> -> vector<16x64xf32>
    %273 = arith.addf %253, %272 : vector<16x64xf32>
    %274 = vector.extract_strided_slice %208 {offsets = [0, 24], sizes = [16, 8], strides = [1, 1]} : vector<16x64xbf16> to vector<16x8xbf16>
    %275 = vector.extract_strided_slice %210 {offsets = [0, 24], sizes = [16, 8], strides = [1, 1]} : vector<16x64xbf16> to vector<16x8xbf16>
    "tpu.trace_start"() <{level = 10 : i32, message = "qd,kd->qk"}> : () -> ()
    %cst_93 = arith.constant dense<0.000000e+00> : vector<16x16xf32>
    %276 = tpu.matmul %274, %275, %cst_93 {dimension_numbers = #tpu.dot_dimension_numbers<[1], [1], [0], [0], [0, 0, 1, 0], [], []>} : vector<16x8xbf16>, vector<16x8xbf16>, vector<16x16xf32> -> vector<16x16xf32>
    "tpu.trace_stop"() : () -> ()
    %cst_94 = arith.constant dense<0xFF800000> : vector<16xf32>
    %277 = vector.multi_reduction <maximumf>, %276, %cst_94 [1] : vector<16x16xf32> to vector<16xf32>
    %278 = vector.shape_cast %277 : vector<16xf32> to vector<16x1xf32>
    %279 = vector.broadcast %278 : vector<16x1xf32> to vector<16x16xf32>
    %280 = arith.subf %276, %279 : vector<16x16xf32>
    %281 = math.exp %280 : vector<16x16xf32>
    %cst_95 = arith.constant dense<0.000000e+00> : vector<16xf32>
    %282 = vector.multi_reduction <add>, %281, %cst_95 [1] : vector<16x16xf32> to vector<16xf32>
    %283 = vector.shape_cast %282 : vector<16xf32> to vector<16x1xf32>
    %284 = arith.truncf %281 : vector<16x16xf32> to vector<16x16xbf16>
    %285 = vector.extract_strided_slice %212 {offsets = [0, 24], sizes = [16, 8], strides = [1, 1]} : vector<16x64xbf16> to vector<16x8xbf16>
    %cst_96 = arith.constant dense<0.000000e+00> : vector<16x8xf32>
    %286 = tpu.matmul %284, %285, %cst_96 {dimension_numbers = #tpu.dot_dimension_numbers<[1], [0], [0], [1], [0, 0, 1, 1], [], []>} : vector<16x16xbf16>, vector<16x8xbf16>, vector<16x8xf32> -> vector<16x8xf32>
    %287 = tpu.reciprocal %283 {approx = true} : vector<16x1xf32> -> vector<16x1xf32>
    %288 = vector.broadcast %287 : vector<16x1xf32> to vector<16x8xf32>
    %289 = arith.mulf %286, %288 : vector<16x8xf32>
    %290 = arith.truncf %289 : vector<16x8xf32> to vector<16x8xbf16>
    %291 = vector.extract_strided_slice %201 {offsets = [24, 0], sizes = [8, 64], strides = [1, 1]} : vector<64x64xbf16> to vector<8x64xbf16>
    %cst_97 = arith.constant dense<0.000000e+00> : vector<16x64xf32>
    %292 = tpu.matmul %290, %291, %cst_97 {dimension_numbers = #tpu.dot_dimension_numbers<[1], [0], [0], [1], [0, 0, 1, 1], [], []>} : vector<16x8xbf16>, vector<8x64xbf16>, vector<16x64xf32> -> vector<16x64xf32>
    %293 = arith.addf %273, %292 : vector<16x64xf32>
    %294 = vector.extract_strided_slice %208 {offsets = [0, 32], sizes = [16, 8], strides = [1, 1]} : vector<16x64xbf16> to vector<16x8xbf16>
    %295 = vector.extract_strided_slice %210 {offsets = [0, 32], sizes = [16, 8], strides = [1, 1]} : vector<16x64xbf16> to vector<16x8xbf16>
    "tpu.trace_start"() <{level = 10 : i32, message = "qd,kd->qk"}> : () -> ()
    %cst_98 = arith.constant dense<0.000000e+00> : vector<16x16xf32>
    %296 = tpu.matmul %294, %295, %cst_98 {dimension_numbers = #tpu.dot_dimension_numbers<[1], [1], [0], [0], [0, 0, 1, 0], [], []>} : vector<16x8xbf16>, vector<16x8xbf16>, vector<16x16xf32> -> vector<16x16xf32>
    "tpu.trace_stop"() : () -> ()
    %cst_99 = arith.constant dense<0xFF800000> : vector<16xf32>
    %297 = vector.multi_reduction <maximumf>, %296, %cst_99 [1] : vector<16x16xf32> to vector<16xf32>
    %298 = vector.shape_cast %297 : vector<16xf32> to vector<16x1xf32>
    %299 = vector.broadcast %298 : vector<16x1xf32> to vector<16x16xf32>
    %300 = arith.subf %296, %299 : vector<16x16xf32>
    %301 = math.exp %300 : vector<16x16xf32>
    %cst_100 = arith.constant dense<0.000000e+00> : vector<16xf32>
    %302 = vector.multi_reduction <add>, %301, %cst_100 [1] : vector<16x16xf32> to vector<16xf32>
    %303 = vector.shape_cast %302 : vector<16xf32> to vector<16x1xf32>
    %304 = arith.truncf %301 : vector<16x16xf32> to vector<16x16xbf16>
    %305 = vector.extract_strided_slice %212 {offsets = [0, 32], sizes = [16, 8], strides = [1, 1]} : vector<16x64xbf16> to vector<16x8xbf16>
    %cst_101 = arith.constant dense<0.000000e+00> : vector<16x8xf32>
    %306 = tpu.matmul %304, %305, %cst_101 {dimension_numbers = #tpu.dot_dimension_numbers<[1], [0], [0], [1], [0, 0, 1, 1], [], []>} : vector<16x16xbf16>, vector<16x8xbf16>, vector<16x8xf32> -> vector<16x8xf32>
    %307 = tpu.reciprocal %303 {approx = true} : vector<16x1xf32> -> vector<16x1xf32>
    %308 = vector.broadcast %307 : vector<16x1xf32> to vector<16x8xf32>
    %309 = arith.mulf %306, %308 : vector<16x8xf32>
    %310 = arith.truncf %309 : vector<16x8xf32> to vector<16x8xbf16>
    %311 = vector.extract_strided_slice %201 {offsets = [32, 0], sizes = [8, 64], strides = [1, 1]} : vector<64x64xbf16> to vector<8x64xbf16>
    %cst_102 = arith.constant dense<0.000000e+00> : vector<16x64xf32>
    %312 = tpu.matmul %310, %311, %cst_102 {dimension_numbers = #tpu.dot_dimension_numbers<[1], [0], [0], [1], [0, 0, 1, 1], [], []>} : vector<16x8xbf16>, vector<8x64xbf16>, vector<16x64xf32> -> vector<16x64xf32>
    %313 = arith.addf %293, %312 : vector<16x64xf32>
    %314 = vector.extract_strided_slice %208 {offsets = [0, 40], sizes = [16, 8], strides = [1, 1]} : vector<16x64xbf16> to vector<16x8xbf16>
    %315 = vector.extract_strided_slice %210 {offsets = [0, 40], sizes = [16, 8], strides = [1, 1]} : vector<16x64xbf16> to vector<16x8xbf16>
    "tpu.trace_start"() <{level = 10 : i32, message = "qd,kd->qk"}> : () -> ()
    %cst_103 = arith.constant dense<0.000000e+00> : vector<16x16xf32>
    %316 = tpu.matmul %314, %315, %cst_103 {dimension_numbers = #tpu.dot_dimension_numbers<[1], [1], [0], [0], [0, 0, 1, 0], [], []>} : vector<16x8xbf16>, vector<16x8xbf16>, vector<16x16xf32> -> vector<16x16xf32>
    "tpu.trace_stop"() : () -> ()
    %cst_104 = arith.constant dense<0xFF800000> : vector<16xf32>
    %317 = vector.multi_reduction <maximumf>, %316, %cst_104 [1] : vector<16x16xf32> to vector<16xf32>
    %318 = vector.shape_cast %317 : vector<16xf32> to vector<16x1xf32>
    %319 = vector.broadcast %318 : vector<16x1xf32> to vector<16x16xf32>
    %320 = arith.subf %316, %319 : vector<16x16xf32>
    %321 = math.exp %320 : vector<16x16xf32>
    %cst_105 = arith.constant dense<0.000000e+00> : vector<16xf32>
    %322 = vector.multi_reduction <add>, %321, %cst_105 [1] : vector<16x16xf32> to vector<16xf32>
    %323 = vector.shape_cast %322 : vector<16xf32> to vector<16x1xf32>
    %324 = arith.truncf %321 : vector<16x16xf32> to vector<16x16xbf16>
    %325 = vector.extract_strided_slice %212 {offsets = [0, 40], sizes = [16, 8], strides = [1, 1]} : vector<16x64xbf16> to vector<16x8xbf16>
    %cst_106 = arith.constant dense<0.000000e+00> : vector<16x8xf32>
    %326 = tpu.matmul %324, %325, %cst_106 {dimension_numbers = #tpu.dot_dimension_numbers<[1], [0], [0], [1], [0, 0, 1, 1], [], []>} : vector<16x16xbf16>, vector<16x8xbf16>, vector<16x8xf32> -> vector<16x8xf32>
    %327 = tpu.reciprocal %323 {approx = true} : vector<16x1xf32> -> vector<16x1xf32>
    %328 = vector.broadcast %327 : vector<16x1xf32> to vector<16x8xf32>
    %329 = arith.mulf %326, %328 : vector<16x8xf32>
    %330 = arith.truncf %329 : vector<16x8xf32> to vector<16x8xbf16>
    %331 = vector.extract_strided_slice %201 {offsets = [40, 0], sizes = [8, 64], strides = [1, 1]} : vector<64x64xbf16> to vector<8x64xbf16>
    %cst_107 = arith.constant dense<0.000000e+00> : vector<16x64xf32>
    %332 = tpu.matmul %330, %331, %cst_107 {dimension_numbers = #tpu.dot_dimension_numbers<[1], [0], [0], [1], [0, 0, 1, 1], [], []>} : vector<16x8xbf16>, vector<8x64xbf16>, vector<16x64xf32> -> vector<16x64xf32>
    %333 = arith.addf %313, %332 : vector<16x64xf32>
    %334 = vector.extract_strided_slice %208 {offsets = [0, 48], sizes = [16, 8], strides = [1, 1]} : vector<16x64xbf16> to vector<16x8xbf16>
    %335 = vector.extract_strided_slice %210 {offsets = [0, 48], sizes = [16, 8], strides = [1, 1]} : vector<16x64xbf16> to vector<16x8xbf16>
    "tpu.trace_start"() <{level = 10 : i32, message = "qd,kd->qk"}> : () -> ()
    %cst_108 = arith.constant dense<0.000000e+00> : vector<16x16xf32>
    %336 = tpu.matmul %334, %335, %cst_108 {dimension_numbers = #tpu.dot_dimension_numbers<[1], [1], [0], [0], [0, 0, 1, 0], [], []>} : vector<16x8xbf16>, vector<16x8xbf16>, vector<16x16xf32> -> vector<16x16xf32>
    "tpu.trace_stop"() : () -> ()
    %cst_109 = arith.constant dense<0xFF800000> : vector<16xf32>
    %337 = vector.multi_reduction <maximumf>, %336, %cst_109 [1] : vector<16x16xf32> to vector<16xf32>
    %338 = vector.shape_cast %337 : vector<16xf32> to vector<16x1xf32>
    %339 = vector.broadcast %338 : vector<16x1xf32> to vector<16x16xf32>
    %340 = arith.subf %336, %339 : vector<16x16xf32>
    %341 = math.exp %340 : vector<16x16xf32>
    %cst_110 = arith.constant dense<0.000000e+00> : vector<16xf32>
    %342 = vector.multi_reduction <add>, %341, %cst_110 [1] : vector<16x16xf32> to vector<16xf32>
    %343 = vector.shape_cast %342 : vector<16xf32> to vector<16x1xf32>
    %344 = arith.truncf %341 : vector<16x16xf32> to vector<16x16xbf16>
    %345 = vector.extract_strided_slice %212 {offsets = [0, 48], sizes = [16, 8], strides = [1, 1]} : vector<16x64xbf16> to vector<16x8xbf16>
    %cst_111 = arith.constant dense<0.000000e+00> : vector<16x8xf32>
    %346 = tpu.matmul %344, %345, %cst_111 {dimension_numbers = #tpu.dot_dimension_numbers<[1], [0], [0], [1], [0, 0, 1, 1], [], []>} : vector<16x16xbf16>, vector<16x8xbf16>, vector<16x8xf32> -> vector<16x8xf32>
    %347 = tpu.reciprocal %343 {approx = true} : vector<16x1xf32> -> vector<16x1xf32>
    %348 = vector.broadcast %347 : vector<16x1xf32> to vector<16x8xf32>
    %349 = arith.mulf %346, %348 : vector<16x8xf32>
    %350 = arith.truncf %349 : vector<16x8xf32> to vector<16x8xbf16>
    %351 = vector.extract_strided_slice %201 {offsets = [48, 0], sizes = [8, 64], strides = [1, 1]} : vector<64x64xbf16> to vector<8x64xbf16>
    %cst_112 = arith.constant dense<0.000000e+00> : vector<16x64xf32>
    %352 = tpu.matmul %350, %351, %cst_112 {dimension_numbers = #tpu.dot_dimension_numbers<[1], [0], [0], [1], [0, 0, 1, 1], [], []>} : vector<16x8xbf16>, vector<8x64xbf16>, vector<16x64xf32> -> vector<16x64xf32>
    %353 = arith.addf %333, %352 : vector<16x64xf32>
    %354 = vector.extract_strided_slice %208 {offsets = [0, 56], sizes = [16, 8], strides = [1, 1]} : vector<16x64xbf16> to vector<16x8xbf16>
    %355 = vector.extract_strided_slice %210 {offsets = [0, 56], sizes = [16, 8], strides = [1, 1]} : vector<16x64xbf16> to vector<16x8xbf16>
    "tpu.trace_start"() <{level = 10 : i32, message = "qd,kd->qk"}> : () -> ()
    %cst_113 = arith.constant dense<0.000000e+00> : vector<16x16xf32>
    %356 = tpu.matmul %354, %355, %cst_113 {dimension_numbers = #tpu.dot_dimension_numbers<[1], [1], [0], [0], [0, 0, 1, 0], [], []>} : vector<16x8xbf16>, vector<16x8xbf16>, vector<16x16xf32> -> vector<16x16xf32>
    "tpu.trace_stop"() : () -> ()
    %cst_114 = arith.constant dense<0xFF800000> : vector<16xf32>
    %357 = vector.multi_reduction <maximumf>, %356, %cst_114 [1] : vector<16x16xf32> to vector<16xf32>
    %358 = vector.shape_cast %357 : vector<16xf32> to vector<16x1xf32>
    %359 = vector.broadcast %358 : vector<16x1xf32> to vector<16x16xf32>
    %360 = arith.subf %356, %359 : vector<16x16xf32>
    %361 = math.exp %360 : vector<16x16xf32>
    %cst_115 = arith.constant dense<0.000000e+00> : vector<16xf32>
    %362 = vector.multi_reduction <add>, %361, %cst_115 [1] : vector<16x16xf32> to vector<16xf32>
    %363 = vector.shape_cast %362 : vector<16xf32> to vector<16x1xf32>
    %364 = arith.truncf %361 : vector<16x16xf32> to vector<16x16xbf16>
    %365 = vector.extract_strided_slice %212 {offsets = [0, 56], sizes = [16, 8], strides = [1, 1]} : vector<16x64xbf16> to vector<16x8xbf16>
    %cst_116 = arith.constant dense<0.000000e+00> : vector<16x8xf32>
    %366 = tpu.matmul %364, %365, %cst_116 {dimension_numbers = #tpu.dot_dimension_numbers<[1], [0], [0], [1], [0, 0, 1, 1], [], []>} : vector<16x16xbf16>, vector<16x8xbf16>, vector<16x8xf32> -> vector<16x8xf32>
    %367 = tpu.reciprocal %363 {approx = true} : vector<16x1xf32> -> vector<16x1xf32>
    %368 = vector.broadcast %367 : vector<16x1xf32> to vector<16x8xf32>
    %369 = arith.mulf %366, %368 : vector<16x8xf32>
    %370 = arith.truncf %369 : vector<16x8xf32> to vector<16x8xbf16>
    %371 = vector.extract_strided_slice %201 {offsets = [56, 0], sizes = [8, 64], strides = [1, 1]} : vector<64x64xbf16> to vector<8x64xbf16>
    %cst_117 = arith.constant dense<0.000000e+00> : vector<16x64xf32>
    %372 = tpu.matmul %370, %371, %cst_117 {dimension_numbers = #tpu.dot_dimension_numbers<[1], [0], [0], [1], [0, 0, 1, 1], [], []>} : vector<16x8xbf16>, vector<8x64xbf16>, vector<16x64xf32> -> vector<16x64xf32>
    %373 = arith.addf %353, %372 : vector<16x64xf32>
    %374 = vector.broadcast %202 : vector<1x64xf32> to vector<16x64xf32>
    %375 = arith.addf %373, %374 : vector<16x64xf32>
    %376 = arith.addf %198, %375 : vector<16x64xf32>
    %c0_118 = arith.constant 0 : index
    %c0_119 = arith.constant 0 : index
    %377 = vector.load %arg16[%c0_118, %c0_119] : memref<1x64xf32, #tpu.memory_space<vmem>>, vector<1x64xf32>
    %378 = vector.broadcast %377 : vector<1x64xf32> to vector<16x64xf32>
    %379 = arith.mulf %376, %378 : vector<16x64xf32>
    %c0_120 = arith.constant 0 : index
    %c0_121 = arith.constant 0 : index
    %380 = vector.load %arg17[%c0_120, %c0_121] : memref<1x64xf32, #tpu.memory_space<vmem>>, vector<1x64xf32>
    %381 = vector.broadcast %380 : vector<1x64xf32> to vector<16x64xf32>
    %382 = arith.addf %379, %381 : vector<16x64xf32>
    %cst_122 = arith.constant 0.000000e+00 : f32
    %383 = vector.broadcast %cst_122 : f32 to vector<16x64xf32>
    %384 = arith.maximumf %382, %383 : vector<16x64xf32>
    %c0_123 = arith.constant 0 : index
    %c0_124 = arith.constant 0 : index
    %385 = vector.load %arg18[%c0_123, %c0_124] : memref<64x128xf32, #tpu.memory_space<vmem>>, vector<64x128xf32>
    %cst_125 = arith.constant dense<0.000000e+00> : vector<16x128xf32>
    %386 = tpu.matmul %384, %385, %cst_125 {dimension_numbers = #tpu.dot_dimension_numbers<[1], [0], [0], [1], [0, 0, 1, 1], [], []>} : vector<16x64xf32>, vector<64x128xf32>, vector<16x128xf32> -> vector<16x128xf32>
    %c0_126 = arith.constant 0 : index
    %c0_127 = arith.constant 0 : index
    %387 = vector.load %arg19[%c0_126, %c0_127] : memref<128x384xbf16, #tpu.memory_space<vmem>>, vector<128x384xbf16>
    %c0_128 = arith.constant 0 : index
    %c0_129 = arith.constant 0 : index
    %388 = vector.load %arg20[%c0_128, %c0_129] : memref<1x384xf32, #tpu.memory_space<vmem>>, vector<1x384xf32>
    %c0_130 = arith.constant 0 : index
    %c0_131 = arith.constant 0 : index
    %389 = vector.load %arg21[%c0_130, %c0_131] : memref<128x128xbf16, #tpu.memory_space<vmem>>, vector<128x128xbf16>
    %c0_132 = arith.constant 0 : index
    %c0_133 = arith.constant 0 : index
    %390 = vector.load %arg22[%c0_132, %c0_133] : memref<1x128xf32, #tpu.memory_space<vmem>>, vector<1x128xf32>
    %391 = arith.truncf %386 : vector<16x128xf32> to vector<16x128xbf16>
    %cst_134 = arith.constant dense<0.000000e+00> : vector<16x384xf32>
    %392 = tpu.matmul %391, %387, %cst_134 {dimension_numbers = #tpu.dot_dimension_numbers<[1], [0], [0], [1], [0, 0, 1, 1], [], []>} : vector<16x128xbf16>, vector<128x384xbf16>, vector<16x384xf32> -> vector<16x384xf32>
    %393 = vector.broadcast %388 : vector<1x384xf32> to vector<16x384xf32>
    %394 = arith.addf %392, %393 : vector<16x384xf32>
    %395 = vector.extract_strided_slice %394 {offsets = [0, 0], sizes = [16, 128], strides = [1, 1]} : vector<16x384xf32> to vector<16x128xf32>
    %396 = arith.truncf %395 : vector<16x128xf32> to vector<16x128xbf16>
    %397 = vector.extract_strided_slice %394 {offsets = [0, 128], sizes = [16, 128], strides = [1, 1]} : vector<16x384xf32> to vector<16x128xf32>
    %398 = arith.truncf %397 : vector<16x128xf32> to vector<16x128xbf16>
    %399 = vector.extract_strided_slice %394 {offsets = [0, 256], sizes = [16, 128], strides = [1, 1]} : vector<16x384xf32> to vector<16x128xf32>
    %400 = arith.truncf %399 : vector<16x128xf32> to vector<16x128xbf16>
    %cst_135 = arith.constant 0.000000e+00 : f32
    %401 = vector.broadcast %cst_135 : f32 to vector<16x128xf32>
    %402 = vector.extract_strided_slice %396 {offsets = [0, 0], sizes = [16, 16], strides = [1, 1]} : vector<16x128xbf16> to vector<16x16xbf16>
    %403 = vector.extract_strided_slice %398 {offsets = [0, 0], sizes = [16, 16], strides = [1, 1]} : vector<16x128xbf16> to vector<16x16xbf16>
    "tpu.trace_start"() <{level = 10 : i32, message = "qd,kd->qk"}> : () -> ()
    %cst_136 = arith.constant dense<0.000000e+00> : vector<16x16xf32>
    %404 = tpu.matmul %402, %403, %cst_136 {dimension_numbers = #tpu.dot_dimension_numbers<[1], [1], [0], [0], [0, 0, 1, 0], [], []>} : vector<16x16xbf16>, vector<16x16xbf16>, vector<16x16xf32> -> vector<16x16xf32>
    "tpu.trace_stop"() : () -> ()
    %cst_137 = arith.constant dense<0xFF800000> : vector<16xf32>
    %405 = vector.multi_reduction <maximumf>, %404, %cst_137 [1] : vector<16x16xf32> to vector<16xf32>
    %406 = vector.shape_cast %405 : vector<16xf32> to vector<16x1xf32>
    %407 = vector.broadcast %406 : vector<16x1xf32> to vector<16x16xf32>
    %408 = arith.subf %404, %407 : vector<16x16xf32>
    %409 = math.exp %408 : vector<16x16xf32>
    %cst_138 = arith.constant dense<0.000000e+00> : vector<16xf32>
    %410 = vector.multi_reduction <add>, %409, %cst_138 [1] : vector<16x16xf32> to vector<16xf32>
    %411 = vector.shape_cast %410 : vector<16xf32> to vector<16x1xf32>
    %412 = arith.truncf %409 : vector<16x16xf32> to vector<16x16xbf16>
    %413 = vector.extract_strided_slice %400 {offsets = [0, 0], sizes = [16, 16], strides = [1, 1]} : vector<16x128xbf16> to vector<16x16xbf16>
    %cst_139 = arith.constant dense<0.000000e+00> : vector<16x16xf32>
    %414 = tpu.matmul %412, %413, %cst_139 {dimension_numbers = #tpu.dot_dimension_numbers<[1], [0], [0], [1], [0, 0, 1, 1], [], []>} : vector<16x16xbf16>, vector<16x16xbf16>, vector<16x16xf32> -> vector<16x16xf32>
    %415 = tpu.reciprocal %411 {approx = true} : vector<16x1xf32> -> vector<16x1xf32>
    %416 = vector.broadcast %415 : vector<16x1xf32> to vector<16x16xf32>
    %417 = arith.mulf %414, %416 : vector<16x16xf32>
    %418 = arith.truncf %417 : vector<16x16xf32> to vector<16x16xbf16>
    %419 = vector.extract_strided_slice %389 {offsets = [0, 0], sizes = [16, 128], strides = [1, 1]} : vector<128x128xbf16> to vector<16x128xbf16>
    %cst_140 = arith.constant dense<0.000000e+00> : vector<16x128xf32>
    %420 = tpu.matmul %418, %419, %cst_140 {dimension_numbers = #tpu.dot_dimension_numbers<[1], [0], [0], [1], [0, 0, 1, 1], [], []>} : vector<16x16xbf16>, vector<16x128xbf16>, vector<16x128xf32> -> vector<16x128xf32>
    %421 = arith.addf %401, %420 : vector<16x128xf32>
    %422 = vector.extract_strided_slice %396 {offsets = [0, 16], sizes = [16, 16], strides = [1, 1]} : vector<16x128xbf16> to vector<16x16xbf16>
    %423 = vector.extract_strided_slice %398 {offsets = [0, 16], sizes = [16, 16], strides = [1, 1]} : vector<16x128xbf16> to vector<16x16xbf16>
    "tpu.trace_start"() <{level = 10 : i32, message = "qd,kd->qk"}> : () -> ()
    %cst_141 = arith.constant dense<0.000000e+00> : vector<16x16xf32>
    %424 = tpu.matmul %422, %423, %cst_141 {dimension_numbers = #tpu.dot_dimension_numbers<[1], [1], [0], [0], [0, 0, 1, 0], [], []>} : vector<16x16xbf16>, vector<16x16xbf16>, vector<16x16xf32> -> vector<16x16xf32>
    "tpu.trace_stop"() : () -> ()
    %cst_142 = arith.constant dense<0xFF800000> : vector<16xf32>
    %425 = vector.multi_reduction <maximumf>, %424, %cst_142 [1] : vector<16x16xf32> to vector<16xf32>
    %426 = vector.shape_cast %425 : vector<16xf32> to vector<16x1xf32>
    %427 = vector.broadcast %426 : vector<16x1xf32> to vector<16x16xf32>
    %428 = arith.subf %424, %427 : vector<16x16xf32>
    %429 = math.exp %428 : vector<16x16xf32>
    %cst_143 = arith.constant dense<0.000000e+00> : vector<16xf32>
    %430 = vector.multi_reduction <add>, %429, %cst_143 [1] : vector<16x16xf32> to vector<16xf32>
    %431 = vector.shape_cast %430 : vector<16xf32> to vector<16x1xf32>
    %432 = arith.truncf %429 : vector<16x16xf32> to vector<16x16xbf16>
    %433 = vector.extract_strided_slice %400 {offsets = [0, 16], sizes = [16, 16], strides = [1, 1]} : vector<16x128xbf16> to vector<16x16xbf16>
    %cst_144 = arith.constant dense<0.000000e+00> : vector<16x16xf32>
    %434 = tpu.matmul %432, %433, %cst_144 {dimension_numbers = #tpu.dot_dimension_numbers<[1], [0], [0], [1], [0, 0, 1, 1], [], []>} : vector<16x16xbf16>, vector<16x16xbf16>, vector<16x16xf32> -> vector<16x16xf32>
    %435 = tpu.reciprocal %431 {approx = true} : vector<16x1xf32> -> vector<16x1xf32>
    %436 = vector.broadcast %435 : vector<16x1xf32> to vector<16x16xf32>
    %437 = arith.mulf %434, %436 : vector<16x16xf32>
    %438 = arith.truncf %437 : vector<16x16xf32> to vector<16x16xbf16>
    %439 = vector.extract_strided_slice %389 {offsets = [16, 0], sizes = [16, 128], strides = [1, 1]} : vector<128x128xbf16> to vector<16x128xbf16>
    %cst_145 = arith.constant dense<0.000000e+00> : vector<16x128xf32>
    %440 = tpu.matmul %438, %439, %cst_145 {dimension_numbers = #tpu.dot_dimension_numbers<[1], [0], [0], [1], [0, 0, 1, 1], [], []>} : vector<16x16xbf16>, vector<16x128xbf16>, vector<16x128xf32> -> vector<16x128xf32>
    %441 = arith.addf %421, %440 : vector<16x128xf32>
    %442 = vector.extract_strided_slice %396 {offsets = [0, 32], sizes = [16, 16], strides = [1, 1]} : vector<16x128xbf16> to vector<16x16xbf16>
    %443 = vector.extract_strided_slice %398 {offsets = [0, 32], sizes = [16, 16], strides = [1, 1]} : vector<16x128xbf16> to vector<16x16xbf16>
    "tpu.trace_start"() <{level = 10 : i32, message = "qd,kd->qk"}> : () -> ()
    %cst_146 = arith.constant dense<0.000000e+00> : vector<16x16xf32>
    %444 = tpu.matmul %442, %443, %cst_146 {dimension_numbers = #tpu.dot_dimension_numbers<[1], [1], [0], [0], [0, 0, 1, 0], [], []>} : vector<16x16xbf16>, vector<16x16xbf16>, vector<16x16xf32> -> vector<16x16xf32>
    "tpu.trace_stop"() : () -> ()
    %cst_147 = arith.constant dense<0xFF800000> : vector<16xf32>
    %445 = vector.multi_reduction <maximumf>, %444, %cst_147 [1] : vector<16x16xf32> to vector<16xf32>
    %446 = vector.shape_cast %445 : vector<16xf32> to vector<16x1xf32>
    %447 = vector.broadcast %446 : vector<16x1xf32> to vector<16x16xf32>
    %448 = arith.subf %444, %447 : vector<16x16xf32>
    %449 = math.exp %448 : vector<16x16xf32>
    %cst_148 = arith.constant dense<0.000000e+00> : vector<16xf32>
    %450 = vector.multi_reduction <add>, %449, %cst_148 [1] : vector<16x16xf32> to vector<16xf32>
    %451 = vector.shape_cast %450 : vector<16xf32> to vector<16x1xf32>
    %452 = arith.truncf %449 : vector<16x16xf32> to vector<16x16xbf16>
    %453 = vector.extract_strided_slice %400 {offsets = [0, 32], sizes = [16, 16], strides = [1, 1]} : vector<16x128xbf16> to vector<16x16xbf16>
    %cst_149 = arith.constant dense<0.000000e+00> : vector<16x16xf32>
    %454 = tpu.matmul %452, %453, %cst_149 {dimension_numbers = #tpu.dot_dimension_numbers<[1], [0], [0], [1], [0, 0, 1, 1], [], []>} : vector<16x16xbf16>, vector<16x16xbf16>, vector<16x16xf32> -> vector<16x16xf32>
    %455 = tpu.reciprocal %451 {approx = true} : vector<16x1xf32> -> vector<16x1xf32>
    %456 = vector.broadcast %455 : vector<16x1xf32> to vector<16x16xf32>
    %457 = arith.mulf %454, %456 : vector<16x16xf32>
    %458 = arith.truncf %457 : vector<16x16xf32> to vector<16x16xbf16>
    %459 = vector.extract_strided_slice %389 {offsets = [32, 0], sizes = [16, 128], strides = [1, 1]} : vector<128x128xbf16> to vector<16x128xbf16>
    %cst_150 = arith.constant dense<0.000000e+00> : vector<16x128xf32>
    %460 = tpu.matmul %458, %459, %cst_150 {dimension_numbers = #tpu.dot_dimension_numbers<[1], [0], [0], [1], [0, 0, 1, 1], [], []>} : vector<16x16xbf16>, vector<16x128xbf16>, vector<16x128xf32> -> vector<16x128xf32>
    %461 = arith.addf %441, %460 : vector<16x128xf32>
    %462 = vector.extract_strided_slice %396 {offsets = [0, 48], sizes = [16, 16], strides = [1, 1]} : vector<16x128xbf16> to vector<16x16xbf16>
    %463 = vector.extract_strided_slice %398 {offsets = [0, 48], sizes = [16, 16], strides = [1, 1]} : vector<16x128xbf16> to vector<16x16xbf16>
    "tpu.trace_start"() <{level = 10 : i32, message = "qd,kd->qk"}> : () -> ()
    %cst_151 = arith.constant dense<0.000000e+00> : vector<16x16xf32>
    %464 = tpu.matmul %462, %463, %cst_151 {dimension_numbers = #tpu.dot_dimension_numbers<[1], [1], [0], [0], [0, 0, 1, 0], [], []>} : vector<16x16xbf16>, vector<16x16xbf16>, vector<16x16xf32> -> vector<16x16xf32>
    "tpu.trace_stop"() : () -> ()
    %cst_152 = arith.constant dense<0xFF800000> : vector<16xf32>
    %465 = vector.multi_reduction <maximumf>, %464, %cst_152 [1] : vector<16x16xf32> to vector<16xf32>
    %466 = vector.shape_cast %465 : vector<16xf32> to vector<16x1xf32>
    %467 = vector.broadcast %466 : vector<16x1xf32> to vector<16x16xf32>
    %468 = arith.subf %464, %467 : vector<16x16xf32>
    %469 = math.exp %468 : vector<16x16xf32>
    %cst_153 = arith.constant dense<0.000000e+00> : vector<16xf32>
    %470 = vector.multi_reduction <add>, %469, %cst_153 [1] : vector<16x16xf32> to vector<16xf32>
    %471 = vector.shape_cast %470 : vector<16xf32> to vector<16x1xf32>
    %472 = arith.truncf %469 : vector<16x16xf32> to vector<16x16xbf16>
    %473 = vector.extract_strided_slice %400 {offsets = [0, 48], sizes = [16, 16], strides = [1, 1]} : vector<16x128xbf16> to vector<16x16xbf16>
    %cst_154 = arith.constant dense<0.000000e+00> : vector<16x16xf32>
    %474 = tpu.matmul %472, %473, %cst_154 {dimension_numbers = #tpu.dot_dimension_numbers<[1], [0], [0], [1], [0, 0, 1, 1], [], []>} : vector<16x16xbf16>, vector<16x16xbf16>, vector<16x16xf32> -> vector<16x16xf32>
    %475 = tpu.reciprocal %471 {approx = true} : vector<16x1xf32> -> vector<16x1xf32>
    %476 = vector.broadcast %475 : vector<16x1xf32> to vector<16x16xf32>
    %477 = arith.mulf %474, %476 : vector<16x16xf32>
    %478 = arith.truncf %477 : vector<16x16xf32> to vector<16x16xbf16>
    %479 = vector.extract_strided_slice %389 {offsets = [48, 0], sizes = [16, 128], strides = [1, 1]} : vector<128x128xbf16> to vector<16x128xbf16>
    %cst_155 = arith.constant dense<0.000000e+00> : vector<16x128xf32>
    %480 = tpu.matmul %478, %479, %cst_155 {dimension_numbers = #tpu.dot_dimension_numbers<[1], [0], [0], [1], [0, 0, 1, 1], [], []>} : vector<16x16xbf16>, vector<16x128xbf16>, vector<16x128xf32> -> vector<16x128xf32>
    %481 = arith.addf %461, %480 : vector<16x128xf32>
    %482 = vector.extract_strided_slice %396 {offsets = [0, 64], sizes = [16, 16], strides = [1, 1]} : vector<16x128xbf16> to vector<16x16xbf16>
    %483 = vector.extract_strided_slice %398 {offsets = [0, 64], sizes = [16, 16], strides = [1, 1]} : vector<16x128xbf16> to vector<16x16xbf16>
    "tpu.trace_start"() <{level = 10 : i32, message = "qd,kd->qk"}> : () -> ()
    %cst_156 = arith.constant dense<0.000000e+00> : vector<16x16xf32>
    %484 = tpu.matmul %482, %483, %cst_156 {dimension_numbers = #tpu.dot_dimension_numbers<[1], [1], [0], [0], [0, 0, 1, 0], [], []>} : vector<16x16xbf16>, vector<16x16xbf16>, vector<16x16xf32> -> vector<16x16xf32>
    "tpu.trace_stop"() : () -> ()
    %cst_157 = arith.constant dense<0xFF800000> : vector<16xf32>
    %485 = vector.multi_reduction <maximumf>, %484, %cst_157 [1] : vector<16x16xf32> to vector<16xf32>
    %486 = vector.shape_cast %485 : vector<16xf32> to vector<16x1xf32>
    %487 = vector.broadcast %486 : vector<16x1xf32> to vector<16x16xf32>
    %488 = arith.subf %484, %487 : vector<16x16xf32>
    %489 = math.exp %488 : vector<16x16xf32>
    %cst_158 = arith.constant dense<0.000000e+00> : vector<16xf32>
    %490 = vector.multi_reduction <add>, %489, %cst_158 [1] : vector<16x16xf32> to vector<16xf32>
    %491 = vector.shape_cast %490 : vector<16xf32> to vector<16x1xf32>
    %492 = arith.truncf %489 : vector<16x16xf32> to vector<16x16xbf16>
    %493 = vector.extract_strided_slice %400 {offsets = [0, 64], sizes = [16, 16], strides = [1, 1]} : vector<16x128xbf16> to vector<16x16xbf16>
    %cst_159 = arith.constant dense<0.000000e+00> : vector<16x16xf32>
    %494 = tpu.matmul %492, %493, %cst_159 {dimension_numbers = #tpu.dot_dimension_numbers<[1], [0], [0], [1], [0, 0, 1, 1], [], []>} : vector<16x16xbf16>, vector<16x16xbf16>, vector<16x16xf32> -> vector<16x16xf32>
    %495 = tpu.reciprocal %491 {approx = true} : vector<16x1xf32> -> vector<16x1xf32>
    %496 = vector.broadcast %495 : vector<16x1xf32> to vector<16x16xf32>
    %497 = arith.mulf %494, %496 : vector<16x16xf32>
    %498 = arith.truncf %497 : vector<16x16xf32> to vector<16x16xbf16>
    %499 = vector.extract_strided_slice %389 {offsets = [64, 0], sizes = [16, 128], strides = [1, 1]} : vector<128x128xbf16> to vector<16x128xbf16>
    %cst_160 = arith.constant dense<0.000000e+00> : vector<16x128xf32>
    %500 = tpu.matmul %498, %499, %cst_160 {dimension_numbers = #tpu.dot_dimension_numbers<[1], [0], [0], [1], [0, 0, 1, 1], [], []>} : vector<16x16xbf16>, vector<16x128xbf16>, vector<16x128xf32> -> vector<16x128xf32>
    %501 = arith.addf %481, %500 : vector<16x128xf32>
    %502 = vector.extract_strided_slice %396 {offsets = [0, 80], sizes = [16, 16], strides = [1, 1]} : vector<16x128xbf16> to vector<16x16xbf16>
    %503 = vector.extract_strided_slice %398 {offsets = [0, 80], sizes = [16, 16], strides = [1, 1]} : vector<16x128xbf16> to vector<16x16xbf16>
    "tpu.trace_start"() <{level = 10 : i32, message = "qd,kd->qk"}> : () -> ()
    %cst_161 = arith.constant dense<0.000000e+00> : vector<16x16xf32>
    %504 = tpu.matmul %502, %503, %cst_161 {dimension_numbers = #tpu.dot_dimension_numbers<[1], [1], [0], [0], [0, 0, 1, 0], [], []>} : vector<16x16xbf16>, vector<16x16xbf16>, vector<16x16xf32> -> vector<16x16xf32>
    "tpu.trace_stop"() : () -> ()
    %cst_162 = arith.constant dense<0xFF800000> : vector<16xf32>
    %505 = vector.multi_reduction <maximumf>, %504, %cst_162 [1] : vector<16x16xf32> to vector<16xf32>
    %506 = vector.shape_cast %505 : vector<16xf32> to vector<16x1xf32>
    %507 = vector.broadcast %506 : vector<16x1xf32> to vector<16x16xf32>
    %508 = arith.subf %504, %507 : vector<16x16xf32>
    %509 = math.exp %508 : vector<16x16xf32>
    %cst_163 = arith.constant dense<0.000000e+00> : vector<16xf32>
    %510 = vector.multi_reduction <add>, %509, %cst_163 [1] : vector<16x16xf32> to vector<16xf32>
    %511 = vector.shape_cast %510 : vector<16xf32> to vector<16x1xf32>
    %512 = arith.truncf %509 : vector<16x16xf32> to vector<16x16xbf16>
    %513 = vector.extract_strided_slice %400 {offsets = [0, 80], sizes = [16, 16], strides = [1, 1]} : vector<16x128xbf16> to vector<16x16xbf16>
    %cst_164 = arith.constant dense<0.000000e+00> : vector<16x16xf32>
    %514 = tpu.matmul %512, %513, %cst_164 {dimension_numbers = #tpu.dot_dimension_numbers<[1], [0], [0], [1], [0, 0, 1, 1], [], []>} : vector<16x16xbf16>, vector<16x16xbf16>, vector<16x16xf32> -> vector<16x16xf32>
    %515 = tpu.reciprocal %511 {approx = true} : vector<16x1xf32> -> vector<16x1xf32>
    %516 = vector.broadcast %515 : vector<16x1xf32> to vector<16x16xf32>
    %517 = arith.mulf %514, %516 : vector<16x16xf32>
    %518 = arith.truncf %517 : vector<16x16xf32> to vector<16x16xbf16>
    %519 = vector.extract_strided_slice %389 {offsets = [80, 0], sizes = [16, 128], strides = [1, 1]} : vector<128x128xbf16> to vector<16x128xbf16>
    %cst_165 = arith.constant dense<0.000000e+00> : vector<16x128xf32>
    %520 = tpu.matmul %518, %519, %cst_165 {dimension_numbers = #tpu.dot_dimension_numbers<[1], [0], [0], [1], [0, 0, 1, 1], [], []>} : vector<16x16xbf16>, vector<16x128xbf16>, vector<16x128xf32> -> vector<16x128xf32>
    %521 = arith.addf %501, %520 : vector<16x128xf32>
    %522 = vector.extract_strided_slice %396 {offsets = [0, 96], sizes = [16, 16], strides = [1, 1]} : vector<16x128xbf16> to vector<16x16xbf16>
    %523 = vector.extract_strided_slice %398 {offsets = [0, 96], sizes = [16, 16], strides = [1, 1]} : vector<16x128xbf16> to vector<16x16xbf16>
    "tpu.trace_start"() <{level = 10 : i32, message = "qd,kd->qk"}> : () -> ()
    %cst_166 = arith.constant dense<0.000000e+00> : vector<16x16xf32>
    %524 = tpu.matmul %522, %523, %cst_166 {dimension_numbers = #tpu.dot_dimension_numbers<[1], [1], [0], [0], [0, 0, 1, 0], [], []>} : vector<16x16xbf16>, vector<16x16xbf16>, vector<16x16xf32> -> vector<16x16xf32>
    "tpu.trace_stop"() : () -> ()
    %cst_167 = arith.constant dense<0xFF800000> : vector<16xf32>
    %525 = vector.multi_reduction <maximumf>, %524, %cst_167 [1] : vector<16x16xf32> to vector<16xf32>
    %526 = vector.shape_cast %525 : vector<16xf32> to vector<16x1xf32>
    %527 = vector.broadcast %526 : vector<16x1xf32> to vector<16x16xf32>
    %528 = arith.subf %524, %527 : vector<16x16xf32>
    %529 = math.exp %528 : vector<16x16xf32>
    %cst_168 = arith.constant dense<0.000000e+00> : vector<16xf32>
    %530 = vector.multi_reduction <add>, %529, %cst_168 [1] : vector<16x16xf32> to vector<16xf32>
    %531 = vector.shape_cast %530 : vector<16xf32> to vector<16x1xf32>
    %532 = arith.truncf %529 : vector<16x16xf32> to vector<16x16xbf16>
    %533 = vector.extract_strided_slice %400 {offsets = [0, 96], sizes = [16, 16], strides = [1, 1]} : vector<16x128xbf16> to vector<16x16xbf16>
    %cst_169 = arith.constant dense<0.000000e+00> : vector<16x16xf32>
    %534 = tpu.matmul %532, %533, %cst_169 {dimension_numbers = #tpu.dot_dimension_numbers<[1], [0], [0], [1], [0, 0, 1, 1], [], []>} : vector<16x16xbf16>, vector<16x16xbf16>, vector<16x16xf32> -> vector<16x16xf32>
    %535 = tpu.reciprocal %531 {approx = true} : vector<16x1xf32> -> vector<16x1xf32>
    %536 = vector.broadcast %535 : vector<16x1xf32> to vector<16x16xf32>
    %537 = arith.mulf %534, %536 : vector<16x16xf32>
    %538 = arith.truncf %537 : vector<16x16xf32> to vector<16x16xbf16>
    %539 = vector.extract_strided_slice %389 {offsets = [96, 0], sizes = [16, 128], strides = [1, 1]} : vector<128x128xbf16> to vector<16x128xbf16>
    %cst_170 = arith.constant dense<0.000000e+00> : vector<16x128xf32>
    %540 = tpu.matmul %538, %539, %cst_170 {dimension_numbers = #tpu.dot_dimension_numbers<[1], [0], [0], [1], [0, 0, 1, 1], [], []>} : vector<16x16xbf16>, vector<16x128xbf16>, vector<16x128xf32> -> vector<16x128xf32>
    %541 = arith.addf %521, %540 : vector<16x128xf32>
    %542 = vector.extract_strided_slice %396 {offsets = [0, 112], sizes = [16, 16], strides = [1, 1]} : vector<16x128xbf16> to vector<16x16xbf16>
    %543 = vector.extract_strided_slice %398 {offsets = [0, 112], sizes = [16, 16], strides = [1, 1]} : vector<16x128xbf16> to vector<16x16xbf16>
    "tpu.trace_start"() <{level = 10 : i32, message = "qd,kd->qk"}> : () -> ()
    %cst_171 = arith.constant dense<0.000000e+00> : vector<16x16xf32>
    %544 = tpu.matmul %542, %543, %cst_171 {dimension_numbers = #tpu.dot_dimension_numbers<[1], [1], [0], [0], [0, 0, 1, 0], [], []>} : vector<16x16xbf16>, vector<16x16xbf16>, vector<16x16xf32> -> vector<16x16xf32>
    "tpu.trace_stop"() : () -> ()
    %cst_172 = arith.constant dense<0xFF800000> : vector<16xf32>
    %545 = vector.multi_reduction <maximumf>, %544, %cst_172 [1] : vector<16x16xf32> to vector<16xf32>
    %546 = vector.shape_cast %545 : vector<16xf32> to vector<16x1xf32>
    %547 = vector.broadcast %546 : vector<16x1xf32> to vector<16x16xf32>
    %548 = arith.subf %544, %547 : vector<16x16xf32>
    %549 = math.exp %548 : vector<16x16xf32>
    %cst_173 = arith.constant dense<0.000000e+00> : vector<16xf32>
    %550 = vector.multi_reduction <add>, %549, %cst_173 [1] : vector<16x16xf32> to vector<16xf32>
    %551 = vector.shape_cast %550 : vector<16xf32> to vector<16x1xf32>
    %552 = arith.truncf %549 : vector<16x16xf32> to vector<16x16xbf16>
    %553 = vector.extract_strided_slice %400 {offsets = [0, 112], sizes = [16, 16], strides = [1, 1]} : vector<16x128xbf16> to vector<16x16xbf16>
    %cst_174 = arith.constant dense<0.000000e+00> : vector<16x16xf32>
    %554 = tpu.matmul %552, %553, %cst_174 {dimension_numbers = #tpu.dot_dimension_numbers<[1], [0], [0], [1], [0, 0, 1, 1], [], []>} : vector<16x16xbf16>, vector<16x16xbf16>, vector<16x16xf32> -> vector<16x16xf32>
    %555 = tpu.reciprocal %551 {approx = true} : vector<16x1xf32> -> vector<16x1xf32>
    %556 = vector.broadcast %555 : vector<16x1xf32> to vector<16x16xf32>
    %557 = arith.mulf %554, %556 : vector<16x16xf32>
    %558 = arith.truncf %557 : vector<16x16xf32> to vector<16x16xbf16>
    %559 = vector.extract_strided_slice %389 {offsets = [112, 0], sizes = [16, 128], strides = [1, 1]} : vector<128x128xbf16> to vector<16x128xbf16>
    %cst_175 = arith.constant dense<0.000000e+00> : vector<16x128xf32>
    %560 = tpu.matmul %558, %559, %cst_175 {dimension_numbers = #tpu.dot_dimension_numbers<[1], [0], [0], [1], [0, 0, 1, 1], [], []>} : vector<16x16xbf16>, vector<16x128xbf16>, vector<16x128xf32> -> vector<16x128xf32>
    %561 = arith.addf %541, %560 : vector<16x128xf32>
    %562 = vector.broadcast %390 : vector<1x128xf32> to vector<16x128xf32>
    %563 = arith.addf %561, %562 : vector<16x128xf32>
    %564 = arith.addf %386, %563 : vector<16x128xf32>
    %c0_176 = arith.constant 0 : index
    %c0_177 = arith.constant 0 : index
    %565 = vector.load %arg23[%c0_176, %c0_177] : memref<1x128xf32, #tpu.memory_space<vmem>>, vector<1x128xf32>
    %566 = vector.broadcast %565 : vector<1x128xf32> to vector<16x128xf32>
    %567 = arith.mulf %564, %566 : vector<16x128xf32>
    %c0_178 = arith.constant 0 : index
    %c0_179 = arith.constant 0 : index
    %568 = vector.load %arg24[%c0_178, %c0_179] : memref<1x128xf32, #tpu.memory_space<vmem>>, vector<1x128xf32>
    %569 = vector.broadcast %568 : vector<1x128xf32> to vector<16x128xf32>
    %570 = arith.addf %567, %569 : vector<16x128xf32>
    %cst_180 = arith.constant 0.000000e+00 : f32
    %571 = vector.broadcast %cst_180 : f32 to vector<16x128xf32>
    %572 = arith.maximumf %570, %571 : vector<16x128xf32>
    %c0_181 = arith.constant 0 : index
    %c0_182 = arith.constant 0 : index
    %573 = vector.load %arg25[%c0_181, %c0_182] : memref<128x128xf32, #tpu.memory_space<vmem>>, vector<128x128xf32>
    %cst_183 = arith.constant dense<0.000000e+00> : vector<16x128xf32>
    %574 = tpu.matmul %572, %573, %cst_183 {dimension_numbers = #tpu.dot_dimension_numbers<[1], [0], [0], [1], [0, 0, 1, 1], [], []>} : vector<16x128xf32>, vector<128x128xf32>, vector<16x128xf32> -> vector<16x128xf32>
    %c0_184 = arith.constant 0 : index
    %c0_185 = arith.constant 0 : index
    %575 = vector.load %arg26[%c0_184, %c0_185] : memref<1x128xf32, #tpu.memory_space<vmem>>, vector<1x128xf32>
    %576 = vector.broadcast %575 : vector<1x128xf32> to vector<16x128xf32>
    %577 = arith.addf %574, %576 : vector<16x128xf32>
    %cst_186 = arith.constant 0.000000e+00 : f32
    %578 = vector.broadcast %cst_186 : f32 to vector<16x128xf32>
    %579 = arith.maximumf %577, %578 : vector<16x128xf32>
    %cst_187 = arith.constant dense<0xFF800000> : vector<128xf32>
    %580 = vector.multi_reduction <maximumf>, %579, %cst_187 [0] : vector<16x128xf32> to vector<128xf32>
    %581 = vector.shape_cast %580 : vector<128xf32> to vector<1x128xf32>
    %c0_188 = arith.constant 0 : index
    %c0_189 = arith.constant 0 : index
    %582 = vector.load %arg27[%c0_188, %c0_189] : memref<128x512xf32, #tpu.memory_space<vmem>>, vector<128x512xf32>
    %cst_190 = arith.constant dense<0.000000e+00> : vector<1x512xf32>
    %583 = tpu.matmul %581, %582, %cst_190 {dimension_numbers = #tpu.dot_dimension_numbers<[1], [0], [0], [1], [0, 0, 1, 1], [], []>} : vector<1x128xf32>, vector<128x512xf32>, vector<1x512xf32> -> vector<1x512xf32>
    %c0_191 = arith.constant 0 : index
    %c0_192 = arith.constant 0 : index
    %584 = vector.load %arg28[%c0_191, %c0_192] : memref<1x512xf32, #tpu.memory_space<vmem>>, vector<1x512xf32>
    %585 = arith.addf %583, %584 : vector<1x512xf32>
    %cst_193 = arith.constant 0.000000e+00 : f32
    %586 = vector.broadcast %cst_193 : f32 to vector<1x512xf32>
    %587 = arith.maximumf %585, %586 : vector<1x512xf32>
    %c0_194 = arith.constant 0 : index
    %c0_195 = arith.constant 0 : index
    %588 = vector.load %arg29[%c0_194, %c0_195] : memref<512x16xf32, #tpu.memory_space<vmem>>, vector<512x16xf32>
    %cst_196 = arith.constant dense<0.000000e+00> : vector<1x16xf32>
    %589 = tpu.matmul %587, %588, %cst_196 {dimension_numbers = #tpu.dot_dimension_numbers<[1], [0], [0], [1], [0, 0, 1, 1], [], []>} : vector<1x512xf32>, vector<512x16xf32>, vector<1x16xf32> -> vector<1x16xf32>
    %c0_197 = arith.constant 0 : index
    %c0_198 = arith.constant 0 : index
    %590 = vector.load %arg30[%c0_197, %c0_198] : memref<1x16xf32, #tpu.memory_space<vmem>>, vector<1x16xf32>
    %591 = arith.addf %589, %590 : vector<1x16xf32>
    %c0_199 = arith.constant 0 : index
    %c0_200 = arith.constant 0 : index
    %c0_201 = arith.constant 0 : index
    %592 = vector.load %arg31[%c0_199, %c0_200, %c0_201] : memref<1x1x16xf32, #tpu.memory_space<vmem>>, vector<1x1x16xf32>
    %593 = vector.shape_cast %592 : vector<1x1x16xf32> to vector<1x16xf32>
    %594 = vector.shape_cast %591 : vector<1x16xf32> to vector<1x1x16xf32>
    tpu.vector_store %arg31[%c0_199, %c0_200, %c0_201], %594 {strides = array<i32>} : memref<1x1x16xf32, #tpu.memory_space<vmem>>, vector<1x1x16xf32>,
    return
  }
  func.func @transform_0(%arg0: i32) -> (i32, i32, i32) {
    %c0_i32 = arith.constant 0 : i32
    %c0_i32_0 = arith.constant 0 : i32
    %c0_i32_1 = arith.constant 0 : i32
    return %arg0, %c0_i32, %c0_i32_0 : i32, i32, i32
  }
  func.func @transform_1(%arg0: i32) -> (i32, i32) {
    %c0_i32 = arith.constant 0 : i32
    %c0_i32_0 = arith.constant 0 : i32
    %c0_i32_1 = arith.constant 0 : i32
    return %c0_i32, %c0_i32_0 : i32, i32
  }
  func.func @transform_2(%arg0: i32) -> (i32, i32) {
    %c0_i32 = arith.constant 0 : i32
    %c0_i32_0 = arith.constant 0 : i32
    %c0_i32_1 = arith.constant 0 : i32
    return %c0_i32, %c0_i32_0 : i32, i32
  }
  func.func @transform_3(%arg0: i32) -> (i32, i32) {
    %c0_i32 = arith.constant 0 : i32
    %c0_i32_0 = arith.constant 0 : i32
    %c0_i32_1 = arith.constant 0 : i32
    return %c0_i32, %c0_i32_0 : i32, i32
  }
  func.func @transform_4(%arg0: i32) -> (i32, i32) {
    %c0_i32 = arith.constant 0 : i32
    %c0_i32_0 = arith.constant 0 : i32
    %c0_i32_1 = arith.constant 0 : i32
    return %c0_i32, %c0_i32_0 : i32, i32
  }
  func.func @transform_5(%arg0: i32) -> (i32, i32) {
    %c0_i32 = arith.constant 0 : i32
    %c0_i32_0 = arith.constant 0 : i32
    %c0_i32_1 = arith.constant 0 : i32
    return %c0_i32, %c0_i32_0 : i32, i32
  }
  func.func @transform_6(%arg0: i32) -> (i32, i32) {
    %c0_i32 = arith.constant 0 : i32
    %c0_i32_0 = arith.constant 0 : i32
    %c0_i32_1 = arith.constant 0 : i32
    return %c0_i32, %c0_i32_0 : i32, i32
  }
  func.func @transform_7(%arg0: i32) -> (i32, i32) {
    %c0_i32 = arith.constant 0 : i32
    %c0_i32_0 = arith.constant 0 : i32
    %c0_i32_1 = arith.constant 0 : i32
    return %c0_i32, %c0_i32_0 : i32, i32
  }
  func.func @transform_8(%arg0: i32) -> (i32, i32) {
    %c0_i32 = arith.constant 0 : i32
    %c0_i32_0 = arith.constant 0 : i32
    %c0_i32_1 = arith.constant 0 : i32
    return %c0_i32, %c0_i32_0 : i32, i32
  }
  func.func @transform_9(%arg0: i32) -> (i32, i32) {
    %c0_i32 = arith.constant 0 : i32
    %c0_i32_0 = arith.constant 0 : i32
    %c0_i32_1 = arith.constant 0 : i32
    return %c0_i32, %c0_i32_0 : i32, i32
  }
  func.func @transform_10(%arg0: i32) -> (i32, i32) {
    %c0_i32 = arith.constant 0 : i32
    %c0_i32_0 = arith.constant 0 : i32
    %c0_i32_1 = arith.constant 0 : i32
    return %c0_i32, %c0_i32_0 : i32, i32
  }
  func.func @transform_11(%arg0: i32) -> (i32, i32) {
    %c0_i32 = arith.constant 0 : i32
    %c0_i32_0 = arith.constant 0 : i32
    %c0_i32_1 = arith.constant 0 : i32
    return %c0_i32, %c0_i32_0 : i32, i32
  }
  func.func @transform_12(%arg0: i32) -> (i32, i32) {
    %c0_i32 = arith.constant 0 : i32
    %c0_i32_0 = arith.constant 0 : i32
    %c0_i32_1 = arith.constant 0 : i32
    return %c0_i32, %c0_i32_0 : i32, i32
  }
  func.func @transform_13(%arg0: i32) -> (i32, i32) {
    %c0_i32 = arith.constant 0 : i32
    %c0_i32_0 = arith.constant 0 : i32
    %c0_i32_1 = arith.constant 0 : i32
    return %c0_i32, %c0_i32_0 : i32, i32
  }
  func.func @transform_14(%arg0: i32) -> (i32, i32) {
    %c0_i32 = arith.constant 0 : i32
    %c0_i32_0 = arith.constant 0 : i32
    %c0_i32_1 = arith.constant 0 : i32
    return %c0_i32, %c0_i32_0 : i32, i32
  }
  func.func @transform_15(%arg0: i32) -> (i32, i32) {
    %c0_i32 = arith.constant 0 : i32
    %c0_i32_0 = arith.constant 0 : i32
    %c0_i32_1 = arith.constant 0 : i32
    return %c0_i32, %c0_i32_0 : i32, i32
  }
  func.func @transform_16(%arg0: i32) -> (i32, i32) {
    %c0_i32 = arith.constant 0 : i32
    %c0_i32_0 = arith.constant 0 : i32
    %c0_i32_1 = arith.constant 0 : i32
    return %c0_i32, %c0_i32_0 : i32, i32
  }
  func.func @transform_17(%arg0: i32) -> (i32, i32) {
    %c0_i32 = arith.constant 0 : i32
    %c0_i32_0 = arith.constant 0 : i32
    %c0_i32_1 = arith.constant 0 : i32
    return %c0_i32, %c0_i32_0 : i32, i32
  }
  func.func @transform_18(%arg0: i32) -> (i32, i32) {
    %c0_i32 = arith.constant 0 : i32
    %c0_i32_0 = arith.constant 0 : i32
    %c0_i32_1 = arith.constant 0 : i32
    return %c0_i32, %c0_i32_0 : i32, i32
  }
  func.func @transform_19(%arg0: i32) -> (i32, i32) {
    %c0_i32 = arith.constant 0 : i32
    %c0_i32_0 = arith.constant 0 : i32
    %c0_i32_1 = arith.constant 0 : i32
    return %c0_i32, %c0_i32_0 : i32, i32
  }
  func.func @transform_20(%arg0: i32) -> (i32, i32) {
    %c0_i32 = arith.constant 0 : i32
    %c0_i32_0 = arith.constant 0 : i32
    %c0_i32_1 = arith.constant 0 : i32
    return %c0_i32, %c0_i32_0 : i32, i32
  }
  func.func @transform_21(%arg0: i32) -> (i32, i32) {
    %c0_i32 = arith.constant 0 : i32
    %c0_i32_0 = arith.constant 0 : i32
    %c0_i32_1 = arith.constant 0 : i32
    return %c0_i32, %c0_i32_0 : i32, i32
  }
  func.func @transform_22(%arg0: i32) -> (i32, i32) {
    %c0_i32 = arith.constant 0 : i32
    %c0_i32_0 = arith.constant 0 : i32
    %c0_i32_1 = arith.constant 0 : i32
    return %c0_i32, %c0_i32_0 : i32, i32
  }
  func.func @transform_23(%arg0: i32) -> (i32, i32) {
    %c0_i32 = arith.constant 0 : i32
    %c0_i32_0 = arith.constant 0 : i32
    %c0_i32_1 = arith.constant 0 : i32
    return %c0_i32, %c0_i32_0 : i32, i32
  }
  func.func @transform_24(%arg0: i32) -> (i32, i32) {
    %c0_i32 = arith.constant 0 : i32
    %c0_i32_0 = arith.constant 0 : i32
    %c0_i32_1 = arith.constant 0 : i32
    return %c0_i32, %c0_i32_0 : i32, i32
  }
  func.func @transform_25(%arg0: i32) -> (i32, i32) {
    %c0_i32 = arith.constant 0 : i32
    %c0_i32_0 = arith.constant 0 : i32
    %c0_i32_1 = arith.constant 0 : i32
    return %c0_i32, %c0_i32_0 : i32, i32
  }
  func.func @transform_26(%arg0: i32) -> (i32, i32) {
    %c0_i32 = arith.constant 0 : i32
    %c0_i32_0 = arith.constant 0 : i32
    %c0_i32_1 = arith.constant 0 : i32
    return %c0_i32, %c0_i32_0 : i32, i32
  }
  func.func @transform_27(%arg0: i32) -> (i32, i32) {
    %c0_i32 = arith.constant 0 : i32
    %c0_i32_0 = arith.constant 0 : i32
    %c0_i32_1 = arith.constant 0 : i32
    return %c0_i32, %c0_i32_0 : i32, i32
  }
  func.func @transform_28(%arg0: i32) -> (i32, i32) {
    %c0_i32 = arith.constant 0 : i32
    %c0_i32_0 = arith.constant 0 : i32
    %c0_i32_1 = arith.constant 0 : i32
    return %c0_i32, %c0_i32_0 : i32, i32
  }
  func.func @transform_29(%arg0: i32) -> (i32, i32) {
    %c0_i32 = arith.constant 0 : i32
    %c0_i32_0 = arith.constant 0 : i32
    %c0_i32_1 = arith.constant 0 : i32
    return %c0_i32, %c0_i32_0 : i32, i32
  }
  func.func @transform_30(%arg0: i32) -> (i32, i32, i32) {
    %c0_i32 = arith.constant 0 : i32
    %c0_i32_0 = arith.constant 0 : i32
    %c0_i32_1 = arith.constant 0 : i32
    return %arg0, %c0_i32, %c0_i32_0 : i32, i32, i32
  }
}

</mosaic_0001>

<llo_original>
// kernel: tpu_custom_call.1
$region0: #{tpu_custom_call.1}
  #allocation0 [shape = 'u32[]', space=smem, size = 0x4, offset = 0x4, fixed_abs, tag = 'smem constant byte address 0x4 - core index']
  #allocation1 [shape = 'u32[72,128]{1,0:T(1,128)}', space=vmem, size = 0x9000, scoped, tag = 'internal scratch']
  %s0 = inlined_call_operand.smem [shape: u32[31], index: -1, kind: input, shape index: {}]
  %s1 = sld [smem:[%s0]]
  %s2 = scalar_lea.smem %s0, 1
  %s3 = sld [smem:[%s2]]
  %s4 = scalar_lea.smem %s0, 2
  %s5 = sld [smem:[%s4]]
  %s6 = scalar_lea.smem %s0, 3
  %s7 = sld [smem:[%s6]]
  %s8 = scalar_lea.smem %s0, 4
  %s9 = sld [smem:[%s8]]
  %s10 = scalar_lea.smem %s0, 5
  %s11 = sld [smem:[%s10]]
  %s12 = scalar_lea.smem %s0, 6
  %s13 = sld [smem:[%s12]]
  %s14 = scalar_lea.smem %s0, 7
  %s15 = sld [smem:[%s14]]
  %s16 = scalar_lea.smem %s0, 8
  %s17 = sld [smem:[%s16]]
  %s18 = scalar_lea.smem %s0, 9
  %s19 = sld [smem:[%s18]]
  %s20 = scalar_lea.smem %s0, 10
  %s21 = sld [smem:[%s20]]
  %s22 = scalar_lea.smem %s0, 11
  %s23 = sld [smem:[%s22]]
  %s24 = scalar_lea.smem %s0, 12
  %s25 = sld [smem:[%s24]]
  %s26 = scalar_lea.smem %s0, 13
  %s27 = sld [smem:[%s26]]
  %s28 = scalar_lea.smem %s0, 14
  %s29 = sld [smem:[%s28]]
  %s30 = scalar_lea.smem %s0, 15
  %s31 = sld [smem:[%s30]]
  %s32 = scalar_lea.smem %s0, 16
  %s33 = sld [smem:[%s32]]
  %s34 = scalar_lea.smem %s0, 17
  %s35 = sld [smem:[%s34]]
  %s36 = scalar_lea.smem %s0, 18
  %s37 = sld [smem:[%s36]]
  %s38 = scalar_lea.smem %s0, 19
  %s39 = sld [smem:[%s38]]
  %s40 = scalar_lea.smem %s0, 20
  %s41 = sld [smem:[%s40]]
  %s42 = scalar_lea.smem %s0, 21
  %s43 = sld [smem:[%s42]]
  %s44 = scalar_lea.smem %s0, 22
  %s45 = sld [smem:[%s44]]
  %s46 = scalar_lea.smem %s0, 23
  %s47 = sld [smem:[%s46]]
  %s48 = scalar_lea.smem %s0, 24
  %s49 = sld [smem:[%s48]]
  %s50 = scalar_lea.smem %s0, 25
  %s51 = sld [smem:[%s50]]
  %s52 = scalar_lea.smem %s0, 26
  %s53 = sld [smem:[%s52]]
  %s54 = scalar_lea.smem %s0, 27
  %s55 = sld [smem:[%s54]]
  %s56 = scalar_lea.smem %s0, 28
  %s57 = sld [smem:[%s56]]
  %s58 = scalar_lea.smem %s0, 29
  %s59 = sld [smem:[%s58]]
  %s60 = scalar_lea.smem %s0, 30
  %s61 = sld [smem:[%s60]]
  %s62 = sld [smem:[#allocation0]]
  $region249: #{tpu_custom_call.1} parent=0
    _
  %s64 = ssub.s32 1, %s62
  %s65 = scalar_select 0, %s64, %s62
  $region1: #{tpu_custom_call.1} parent=0
    #allocation2 [shape = 'u8[512]{0}', space=vmem, size = 0x400, scoped, tag = 'input window, operand 2, single buffered']
    #allocation3 [shape = 's32[2]{0}', space=sflag, size = 0x8, scoped, tag = 'scoped memory for tpu_custom_call.1']
    #allocation4 [shape = 's32[2]{0}', space=sflag, size = 0x8, scoped, tag = 'scoped memory for tpu_custom_call.1']
    #allocation5 [shape = 'u8[32768]{0}', space=vmem, size = 0x8000, scoped, tag = 'input window, operand 4, single buffered']
    #allocation6 [shape = 's32[1]{0}', space=sflag, size = 0x4, scoped, tag = 'scoped memory for tpu_custom_call.1']
    #allocation7 [shape = 'u8[16384]{0}', space=vmem, size = 0x4000, scoped, tag = 'input window, operand 6, single buffered']
    #allocation8 [shape = 'u8[512]{0}', space=vmem, size = 0x400, scoped, tag = 'input window, operand 7, single buffered']
    #allocation9 [shape = 's32[1]{0}', space=sflag, size = 0x4, scoped, tag = 'scoped memory for tpu_custom_call.1']
    #allocation10 [shape = 'u8[512]{0}', space=vmem, size = 0x400, scoped, tag = 'input window, operand 8, single buffered']
    #allocation11 [shape = 'u8[512]{0}', space=vmem, size = 0x400, scoped, tag = 'input window, operand 9, single buffered']
    #allocation12 [shape = 's32[1]{0}', space=sflag, size = 0x4, scoped, tag = 'scoped memory for tpu_custom_call.1']
    #allocation13 [shape = 'u8[32768]{0}', space=vmem, size = 0x8000, scoped, tag = 'input window, operand 10, single buffered']
    #allocation14 [shape = 'u8[32768]{0}', space=vmem, size = 0x8000, scoped, tag = 'input window, operand 11, single buffered']
    #allocation15 [shape = 's32[1]{0}', space=sflag, size = 0x4, scoped, tag = 'scoped memory for tpu_custom_call.1']
    #allocation16 [shape = 'u8[1024]{0}', space=vmem, size = 0x400, scoped, tag = 'input window, operand 12, single buffered']
    #allocation17 [shape = 'u8[16384]{0}', space=vmem, size = 0x4000, scoped, tag = 'input window, operand 13, single buffered']
    #allocation18 [shape = 's32[1]{0}', space=sflag, size = 0x4, scoped, tag = 'scoped memory for tpu_custom_call.1']
    #allocation19 [shape = 'u8[512]{0}', space=vmem, size = 0x400, scoped, tag = 'input window, operand 14, single buffered']
    #allocation20 [shape = 'u8[512]{0}', space=vmem, size = 0x400, scoped, tag = 'input window, operand 15, single buffered']
    #allocation21 [shape = 's32[1]{0}', space=sflag, size = 0x4, scoped, tag = 'scoped memory for tpu_custom_call.1']
    #allocation22 [shape = 'u8[512]{0}', space=vmem, size = 0x400, scoped, tag = 'input window, operand 16, single buffered']
    #allocation23 [shape = 'u8[32768]{0}', space=vmem, size = 0x8000, scoped, tag = 'input window, operand 17, single buffered']
    #allocation24 [shape = 's32[1]{0}', space=sflag, size = 0x4, scoped, tag = 'scoped memory for tpu_custom_call.1']
    #allocation25 [shape = 'u8[98304]{0}', space=vmem, size = 0x18000, scoped, tag = 'input window, operand 18, single buffered']
    #allocation26 [shape = 'u8[1536]{0}', space=vmem, size = 0x800, scoped, tag = 'input window, operand 19, single buffered']
    #allocation27 [shape = 's32[1]{0}', space=sflag, size = 0x4, scoped, tag = 'scoped memory for tpu_custom_call.1']
    #allocation28 [shape = 'u8[32768]{0}', space=vmem, size = 0x8000, scoped, tag = 'input window, operand 20, single buffered']
    #allocation29 [shape = 'u8[512]{0}', space=vmem, size = 0x400, scoped, tag = 'input window, operand 21, single buffered']
    #allocation30 [shape = 's32[1]{0}', space=sflag, size = 0x4, scoped, tag = 'scoped memory for tpu_custom_call.1']
    #allocation31 [shape = 'u8[512]{0}', space=vmem, size = 0x400, scoped, tag = 'input window, operand 22, single buffered']
    #allocation32 [shape = 'u8[512]{0}', space=vmem, size = 0x400, scoped, tag = 'input window, operand 23, single buffered']
    #allocation33 [shape = 's32[1]{0}', space=sflag, size = 0x4, scoped, tag = 'scoped memory for tpu_custom_call.1']
    #allocation34 [shape = 'u8[65536]{0}', space=vmem, size = 0x10000, scoped, tag = 'input window, operand 24, single buffered']
    #allocation35 [shape = 'u8[512]{0}', space=vmem, size = 0x400, scoped, tag = 'input window, operand 25, single buffered']
    #allocation36 [shape = 's32[1]{0}', space=sflag, size = 0x4, scoped, tag = 'scoped memory for tpu_custom_call.1']
    #allocation37 [shape = 'u8[2048]{0}', space=vmem, size = 0x800, scoped, tag = 'input window, operand 27, single buffered']
    #allocation38 [shape = 'u8[512]{0}', space=vmem, size = 0x400, scoped, tag = 'input window, operand 29, single buffered']
    #allocation39 [shape = 's32[1]{0}', space=sflag, size = 0x4, scoped, tag = 'scoped memory for tpu_custom_call.1']
    #allocation40 [shape = 'u8[1024]{0}', space=vmem, size = 0x400, scoped, tag = 'output window, operand 0']
    %66 = vsyncpa [#allocation3], 0
    %67 = vsyncpa [#allocation6], 0
    %68 = vsyncpa [#allocation9], 0
    %69 = vsyncpa [#allocation12], 0
    %70 = vsyncpa [#allocation15], 0
    %71 = vsyncpa [#allocation18], 0
    %72 = vsyncpa [#allocation21], 0
    %73 = vsyncpa [#allocation24], 0
    %74 = vsyncpa [#allocation27], 0
    %75 = vsyncpa [#allocation30], 0
    %76 = vsyncpa [#allocation33], 0
    %77 = vsyncpa [#allocation36], 0
    %78 = vsyncpa [#allocation39], 0
    %79 = vsyncpa [#allocation4], 0
    %s80 = scalar_lea.sflag [#allocation4], 1
    %81 = vsyncpa %s80, 0
    loop: start=0, step=1, limit=4
    $region2: #{tpu_custom_call.1} parent=1 // loop_pre_header
      _
    $region3: #{tpu_custom_call.1} parent=1 // loop_header
      %s83 = sphi 0, %s87
      %p84 = scmp.ge.s32.totalorder %s83, 4
      %s93 = sphi 0, %s95
      %s96 = sphi 0, %s93
      %s97 = sphi 0, %s96
      %s113 = sphi 0, %s97
      %s117 = sphi 0, %s117
      %s119 = sphi 0, %s117
      %s120 = sphi 0, %s119
      %s134 = sphi 0, %s120
      %s138 = sphi 0, %s138
      %s140 = sphi 0, %s138
      %s141 = sphi 0, %s140
      %s155 = sphi 0, %s141
      %s159 = sphi 0, %s159
      %s161 = sphi 0, %s159
      %s162 = sphi 0, %s161
      %s176 = sphi 0, %s162
      %s180 = sphi 0, %s180
      %s182 = sphi 0, %s180
      %s183 = sphi 0, %s182
      %s197 = sphi 0, %s183
      %s201 = sphi 0, %s201
      %s203 = sphi 0, %s201
      %s204 = sphi 0, %s203
      %s218 = sphi 0, %s204
      %s222 = sphi 0, %s222
      %s224 = sphi 0, %s222
      %s225 = sphi 0, %s224
      %s239 = sphi 0, %s225
      %s243 = sphi 0, %s243
      %s245 = sphi 0, %s243
      %s246 = sphi 0, %s245
      %s260 = sphi 0, %s246
      %s264 = sphi 0, %s264
      %s266 = sphi 0, %s264
      %s267 = sphi 0, %s266
      %s281 = sphi 0, %s267
      %s285 = sphi 0, %s285
      %s287 = sphi 0, %s285
      %s288 = sphi 0, %s287
      %s302 = sphi 0, %s288
      %s306 = sphi 0, %s306
      %s308 = sphi 0, %s306
      %s309 = sphi 0, %s308
      %s323 = sphi 0, %s309
      %s327 = sphi 0, %s327
      %s329 = sphi 0, %s327
      %s330 = sphi 0, %s329
      %s344 = sphi 0, %s330
      %s348 = sphi 0, %s348
      %s350 = sphi 0, %s348
      %s351 = sphi 0, %s350
      %s365 = sphi 0, %s351
      %s369 = sphi 0, %s369
      %s371 = sphi 0, %s369
      %s372 = sphi 0, %s371
      %s386 = sphi 0, %s372
      %s390 = sphi 0, %s390
      %s392 = sphi 0, %s390
      %s393 = sphi 0, %s392
      %s407 = sphi 0, %s393
      %s411 = sphi 0, %s411
      %s413 = sphi 0, %s411
      %s414 = sphi 0, %s413
      %s428 = sphi 0, %s414
      %s432 = sphi 0, %s432
      %s434 = sphi 0, %s432
      %s435 = sphi 0, %s434
      %s449 = sphi 0, %s435
      %s453 = sphi 0, %s453
      %s455 = sphi 0, %s453
      %s456 = sphi 0, %s455
      %s470 = sphi 0, %s456
      %s474 = sphi 0, %s474
      %s476 = sphi 0, %s474
      %s477 = sphi 0, %s476
      %s491 = sphi 0, %s477
      %s495 = sphi 0, %s495
      %s497 = sphi 0, %s495
      %s498 = sphi 0, %s497
      %s512 = sphi 0, %s498
      %s516 = sphi 0, %s516
      %s518 = sphi 0, %s516
      %s519 = sphi 0, %s518
      %s533 = sphi 0, %s519
      %s537 = sphi 0, %s537
      %s539 = sphi 0, %s537
      %s540 = sphi 0, %s539
      %s554 = sphi 0, %s540
      %s558 = sphi 0, %s558
      %s560 = sphi 0, %s558
      %s561 = sphi 0, %s560
      %s575 = sphi 0, %s561
      %s579 = sphi 0, %s579
      %s581 = sphi 0, %s579
      %s582 = sphi 0, %s581
      %s596 = sphi 0, %s582
      %s600 = sphi 0, %s600
      %s602 = sphi 0, %s600
      %s603 = sphi 0, %s602
      %s617 = sphi 0, %s603
      %s621 = sphi 0, %s621
      %s623 = sphi 0, %s621
      %s624 = sphi 0, %s623
      %s638 = sphi 0, %s624
      %s642 = sphi 0, %s642
      %s644 = sphi 0, %s642
      %s645 = sphi 0, %s644
      %s659 = sphi 0, %s645
      %s663 = sphi 0, %s663
      %s665 = sphi 0, %s663
      %s666 = sphi 0, %s665
      %s680 = sphi 0, %s666
      %s684 = sphi 0, %s684
      %s686 = sphi 0, %s684
      %s687 = sphi 0, %s686
      %s701 = sphi 0, %s687
      %s705 = sphi 0, %s705
      %s707 = sphi 0, %s705
      %s708 = sphi 0, %s707
      %s722 = sphi 0, %s708
      %s728 = sphi 0, %s730
      %s731 = sphi 0, %s728
      %s732 = sphi 0, %s731
      %s748 = sphi 0, %s732
    $region4: #{tpu_custom_call.1} parent=1 // loop_header_branch
      %86 = sbr.rel (%p84) target = $region8
    $region5: #{tpu_custom_call.1} parent=1 // loop_body
      %s88 = ssub.s32 %s83, 1
      %s89 = ssub.s32 %s83, 2
      %s90 = sadd.s32 %s83, 1
      %s91 = ssub.s32 %s83, %s90
      %p92 = scmp.eq.s32.totalorder %s91, 0
      %s94 = sadd.s32 %s93, 1
      %s95 = scalar_select %p92, %s93, %s94
      %p98 = pneg %p92
      %p99 = scmp.eq.s32.totalorder %s83, 1
      %p100 = por %p98, %p99
      %p101 = scmp.ne.s32.totalorder %s93, %s96
      %p102 = scmp.eq.s32.totalorder %s83, 0
      %p103 = por %p101, %p102
      %p104 = scmp.ne.s32.totalorder %s93, %s96
      %p105 = scmp.eq.s32.totalorder %s88, 1
      %p106 = por %p104, %p105
      %p107 = scmp.ne.s32.totalorder %s96, %s97
      %p108 = scmp.eq.s32.totalorder %s88, 0
      %p109 = por %p107, %p108
      %p110 = scmp.ne.s32.totalorder %s96, %s97
      %p111 = scmp.eq.s32.totalorder %s89, 1
      %p112 = por %p110, %p111
      %p114 = scmp.ne.s32.totalorder %s97, %s113
      %p115 = scmp.eq.s32.totalorder %s89, 0
      %p116 = por %p114, %p115
      %s118 = sadd.s32 %s117, 1
      %p121 = scmp.eq.s32.totalorder %s83, 1
      %p122 = scmp.ne.s32.totalorder %s117, %s119
      %p123 = scmp.eq.s32.totalorder %s83, 0
      %p124 = por %p122, %p123
      %p125 = scmp.ne.s32.totalorder %s117, %s119
      %p126 = scmp.eq.s32.totalorder %s88, 1
      %p127 = por %p125, %p126
      %p128 = scmp.ne.s32.totalorder %s119, %s120
      %p129 = scmp.eq.s32.totalorder %s88, 0
      %p130 = por %p128, %p129
      %p131 = scmp.ne.s32.totalorder %s119, %s120
      %p132 = scmp.eq.s32.totalorder %s89, 1
      %p133 = por %p131, %p132
      %p135 = scmp.ne.s32.totalorder %s120, %s134
      %p136 = scmp.eq.s32.totalorder %s89, 0
      %p137 = por %p135, %p136
      %s139 = sadd.s32 %s138, 1
      %p142 = scmp.eq.s32.totalorder %s83, 1
      %p143 = scmp.ne.s32.totalorder %s138, %s140
      %p144 = scmp.eq.s32.totalorder %s83, 0
      %p145 = por %p143, %p144
      %p146 = scmp.ne.s32.totalorder %s138, %s140
      %p147 = scmp.eq.s32.totalorder %s88, 1
      %p148 = por %p146, %p147
      %p149 = scmp.ne.s32.totalorder %s140, %s141
      %p150 = scmp.eq.s32.totalorder %s88, 0
      %p151 = por %p149, %p150
      %p152 = scmp.ne.s32.totalorder %s140, %s141
      %p153 = scmp.eq.s32.totalorder %s89, 1
      %p154 = por %p152, %p153
      %p156 = scmp.ne.s32.totalorder %s141, %s155
      %p157 = scmp.eq.s32.totalorder %s89, 0
      %p158 = por %p156, %p157
      %s160 = sadd.s32 %s159, 1
      %p163 = scmp.eq.s32.totalorder %s83, 1
      %p164 = scmp.ne.s32.totalorder %s159, %s161
      %p165 = scmp.eq.s32.totalorder %s83, 0
      %p166 = por %p164, %p165
      %p167 = scmp.ne.s32.totalorder %s159, %s161
      %p168 = scmp.eq.s32.totalorder %s88, 1
      %p169 = por %p167, %p168
      %p170 = scmp.ne.s32.totalorder %s161, %s162
      %p171 = scmp.eq.s32.totalorder %s88, 0
      %p172 = por %p170, %p171
      %p173 = scmp.ne.s32.totalorder %s161, %s162
      %p174 = scmp.eq.s32.totalorder %s89, 1
      %p175 = por %p173, %p174
      %p177 = scmp.ne.s32.totalorder %s162, %s176
      %p178 = scmp.eq.s32.totalorder %s89, 0
      %p179 = por %p177, %p178
      %s181 = sadd.s32 %s180, 1
      %p184 = scmp.eq.s32.totalorder %s83, 1
      %p185 = scmp.ne.s32.totalorder %s180, %s182
      %p186 = scmp.eq.s32.totalorder %s83, 0
      %p187 = por %p185, %p186
      %p188 = scmp.ne.s32.totalorder %s180, %s182
      %p189 = scmp.eq.s32.totalorder %s88, 1
      %p190 = por %p188, %p189
      %p191 = scmp.ne.s32.totalorder %s182, %s183
      %p192 = scmp.eq.s32.totalorder %s88, 0
      %p193 = por %p191, %p192
      %p194 = scmp.ne.s32.totalorder %s182, %s183
      %p195 = scmp.eq.s32.totalorder %s89, 1
      %p196 = por %p194, %p195
      %p198 = scmp.ne.s32.totalorder %s183, %s197
      %p199 = scmp.eq.s32.totalorder %s89, 0
      %p200 = por %p198, %p199
      %s202 = sadd.s32 %s201, 1
      %p205 = scmp.eq.s32.totalorder %s83, 1
      %p206 = scmp.ne.s32.totalorder %s201, %s203
      %p207 = scmp.eq.s32.totalorder %s83, 0
      %p208 = por %p206, %p207
      %p209 = scmp.ne.s32.totalorder %s201, %s203
      %p210 = scmp.eq.s32.totalorder %s88, 1
      %p211 = por %p209, %p210
      %p212 = scmp.ne.s32.totalorder %s203, %s204
      %p213 = scmp.eq.s32.totalorder %s88, 0
      %p214 = por %p212, %p213
      %p215 = scmp.ne.s32.totalorder %s203, %s204
      %p216 = scmp.eq.s32.totalorder %s89, 1
      %p217 = por %p215, %p216
      %p219 = scmp.ne.s32.totalorder %s204, %s218
      %p220 = scmp.eq.s32.totalorder %s89, 0
      %p221 = por %p219, %p220
      %s223 = sadd.s32 %s222, 1
      %p226 = scmp.eq.s32.totalorder %s83, 1
      %p227 = scmp.ne.s32.totalorder %s222, %s224
      %p228 = scmp.eq.s32.totalorder %s83, 0
      %p229 = por %p227, %p228
      %p230 = scmp.ne.s32.totalorder %s222, %s224
      %p231 = scmp.eq.s32.totalorder %s88, 1
      %p232 = por %p230, %p231
      %p233 = scmp.ne.s32.totalorder %s224, %s225
      %p234 = scmp.eq.s32.totalorder %s88, 0
      %p235 = por %p233, %p234
      %p236 = scmp.ne.s32.totalorder %s224, %s225
      %p237 = scmp.eq.s32.totalorder %s89, 1
      %p238 = por %p236, %p237
      %p240 = scmp.ne.s32.totalorder %s225, %s239
      %p241 = scmp.eq.s32.totalorder %s89, 0
      %p242 = por %p240, %p241
      %s244 = sadd.s32 %s243, 1
      %p247 = scmp.eq.s32.totalorder %s83, 1
      %p248 = scmp.ne.s32.totalorder %s243, %s245
      %p249 = scmp.eq.s32.totalorder %s83, 0
      %p250 = por %p248, %p249
      %p251 = scmp.ne.s32.totalorder %s243, %s245
      %p252 = scmp.eq.s32.totalorder %s88, 1
      %p253 = por %p251, %p252
      %p254 = scmp.ne.s32.totalorder %s245, %s246
      %p255 = scmp.eq.s32.totalorder %s88, 0
      %p256 = por %p254, %p255
      %p257 = scmp.ne.s32.totalorder %s245, %s246
      %p258 = scmp.eq.s32.totalorder %s89, 1
      %p259 = por %p257, %p258
      %p261 = scmp.ne.s32.totalorder %s246, %s260
      %p262 = scmp.eq.s32.totalorder %s89, 0
      %p263 = por %p261, %p262
      %s265 = sadd.s32 %s264, 1
      %p268 = scmp.eq.s32.totalorder %s83, 1
      %p269 = scmp.ne.s32.totalorder %s264, %s266
      %p270 = scmp.eq.s32.totalorder %s83, 0
      %p271 = por %p269, %p270
      %p272 = scmp.ne.s32.totalorder %s264, %s266
      %p273 = scmp.eq.s32.totalorder %s88, 1
      %p274 = por %p272, %p273
      %p275 = scmp.ne.s32.totalorder %s266, %s267
      %p276 = scmp.eq.s32.totalorder %s88, 0
      %p277 = por %p275, %p276
      %p278 = scmp.ne.s32.totalorder %s266, %s267
      %p279 = scmp.eq.s32.totalorder %s89, 1
      %p280 = por %p278, %p279
      %p282 = scmp.ne.s32.totalorder %s267, %s281
      %p283 = scmp.eq.s32.totalorder %s89, 0
      %p284 = por %p282, %p283
      %s286 = sadd.s32 %s285, 1
      %p289 = scmp.eq.s32.totalorder %s83, 1
      %p290 = scmp.ne.s32.totalorder %s285, %s287
      %p291 = scmp.eq.s32.totalorder %s83, 0
      %p292 = por %p290, %p291
      %p293 = scmp.ne.s32.totalorder %s285, %s287
      %p294 = scmp.eq.s32.totalorder %s88, 1
      %p295 = por %p293, %p294
      %p296 = scmp.ne.s32.totalorder %s287, %s288
      %p297 = scmp.eq.s32.totalorder %s88, 0
      %p298 = por %p296, %p297
      %p299 = scmp.ne.s32.totalorder %s287, %s288
      %p300 = scmp.eq.s32.totalorder %s89, 1
      %p301 = por %p299, %p300
      %p303 = scmp.ne.s32.totalorder %s288, %s302
      %p304 = scmp.eq.s32.totalorder %s89, 0
      %p305 = por %p303, %p304
      %s307 = sadd.s32 %s306, 1
      %p310 = scmp.eq.s32.totalorder %s83, 1
      %p311 = scmp.ne.s32.totalorder %s306, %s308
      %p312 = scmp.eq.s32.totalorder %s83, 0
      %p313 = por %p311, %p312
      %p314 = scmp.ne.s32.totalorder %s306, %s308
      %p315 = scmp.eq.s32.totalorder %s88, 1
      %p316 = por %p314, %p315
      %p317 = scmp.ne.s32.totalorder %s308, %s309
      %p318 = scmp.eq.s32.totalorder %s88, 0
      %p319 = por %p317, %p318
      %p320 = scmp.ne.s32.totalorder %s308, %s309
      %p321 = scmp.eq.s32.totalorder %s89, 1
      %p322 = por %p320, %p321
      %p324 = scmp.ne.s32.totalorder %s309, %s323
      %p325 = scmp.eq.s32.totalorder %s89, 0
      %p326 = por %p324, %p325
      %s328 = sadd.s32 %s327, 1
      %p331 = scmp.eq.s32.totalorder %s83, 1
      %p332 = scmp.ne.s32.totalorder %s327, %s329
      %p333 = scmp.eq.s32.totalorder %s83, 0
      %p334 = por %p332, %p333
      %p335 = scmp.ne.s32.totalorder %s327, %s329
      %p336 = scmp.eq.s32.totalorder %s88, 1
      %p337 = por %p335, %p336
      %p338 = scmp.ne.s32.totalorder %s329, %s330
      %p339 = scmp.eq.s32.totalorder %s88, 0
      %p340 = por %p338, %p339
      %p341 = scmp.ne.s32.totalorder %s329, %s330
      %p342 = scmp.eq.s32.totalorder %s89, 1
      %p343 = por %p341, %p342
      %p345 = scmp.ne.s32.totalorder %s330, %s344
      %p346 = scmp.eq.s32.totalorder %s89, 0
      %p347 = por %p345, %p346
      %s349 = sadd.s32 %s348, 1
      %p352 = scmp.eq.s32.totalorder %s83, 1
      %p353 = scmp.ne.s32.totalorder %s348, %s350
      %p354 = scmp.eq.s32.totalorder %s83, 0
      %p355 = por %p353, %p354
      %p356 = scmp.ne.s32.totalorder %s348, %s350
      %p357 = scmp.eq.s32.totalorder %s88, 1
      %p358 = por %p356, %p357
      %p359 = scmp.ne.s32.totalorder %s350, %s351
      %p360 = scmp.eq.s32.totalorder %s88, 0
      %p361 = por %p359, %p360
      %p362 = scmp.ne.s32.totalorder %s350, %s351
      %p363 = scmp.eq.s32.totalorder %s89, 1
      %p364 = por %p362, %p363
      %p366 = scmp.ne.s32.totalorder %s351, %s365
      %p367 = scmp.eq.s32.totalorder %s89, 0
      %p368 = por %p366, %p367
      %s370 = sadd.s32 %s369, 1
      %p373 = scmp.eq.s32.totalorder %s83, 1
      %p374 = scmp.ne.s32.totalorder %s369, %s371
      %p375 = scmp.eq.s32.totalorder %s83, 0
      %p376 = por %p374, %p375
      %p377 = scmp.ne.s32.totalorder %s369, %s371
      %p378 = scmp.eq.s32.totalorder %s88, 1
      %p379 = por %p377, %p378
      %p380 = scmp.ne.s32.totalorder %s371, %s372
      %p381 = scmp.eq.s32.totalorder %s88, 0
      %p382 = por %p380, %p381
      %p383 = scmp.ne.s32.totalorder %s371, %s372
      %p384 = scmp.eq.s32.totalorder %s89, 1
      %p385 = por %p383, %p384
      %p387 = scmp.ne.s32.totalorder %s372, %s386
      %p388 = scmp.eq.s32.totalorder %s89, 0
      %p389 = por %p387, %p388
      %s391 = sadd.s32 %s390, 1
      %p394 = scmp.eq.s32.totalorder %s83, 1
      %p395 = scmp.ne.s32.totalorder %s390, %s392
      %p396 = scmp.eq.s32.totalorder %s83, 0
      %p397 = por %p395, %p396
      %p398 = scmp.ne.s32.totalorder %s390, %s392
      %p399 = scmp.eq.s32.totalorder %s88, 1
      %p400 = por %p398, %p399
      %p401 = scmp.ne.s32.totalorder %s392, %s393
      %p402 = scmp.eq.s32.totalorder %s88, 0
      %p403 = por %p401, %p402
      %p404 = scmp.ne.s32.totalorder %s392, %s393
      %p405 = scmp.eq.s32.totalorder %s89, 1
      %p406 = por %p404, %p405
      %p408 = scmp.ne.s32.totalorder %s393, %s407
      %p409 = scmp.eq.s32.totalorder %s89, 0
      %p410 = por %p408, %p409
      %s412 = sadd.s32 %s411, 1
      %p415 = scmp.eq.s32.totalorder %s83, 1
      %p416 = scmp.ne.s32.totalorder %s411, %s413
      %p417 = scmp.eq.s32.totalorder %s83, 0
      %p418 = por %p416, %p417
      %p419 = scmp.ne.s32.totalorder %s411, %s413
      %p420 = scmp.eq.s32.totalorder %s88, 1
      %p421 = por %p419, %p420
      %p422 = scmp.ne.s32.totalorder %s413, %s414
      %p423 = scmp.eq.s32.totalorder %s88, 0
      %p424 = por %p422, %p423
      %p425 = scmp.ne.s32.totalorder %s413, %s414
      %p426 = scmp.eq.s32.totalorder %s89, 1
      %p427 = por %p425, %p426
      %p429 = scmp.ne.s32.totalorder %s414, %s428
      %p430 = scmp.eq.s32.totalorder %s89, 0
      %p431 = por %p429, %p430
      %s433 = sadd.s32 %s432, 1
      %p436 = scmp.eq.s32.totalorder %s83, 1
      %p437 = scmp.ne.s32.totalorder %s432, %s434
      %p438 = scmp.eq.s32.totalorder %s83, 0
      %p439 = por %p437, %p438
      %p440 = scmp.ne.s32.totalorder %s432, %s434
      %p441 = scmp.eq.s32.totalorder %s88, 1
      %p442 = por %p440, %p441
      %p443 = scmp.ne.s32.totalorder %s434, %s435
      %p444 = scmp.eq.s32.totalorder %s88, 0
      %p445 = por %p443, %p444
      %p446 = scmp.ne.s32.totalorder %s434, %s435
      %p447 = scmp.eq.s32.totalorder %s89, 1
      %p448 = por %p446, %p447
      %p450 = scmp.ne.s32.totalorder %s435, %s449
      %p451 = scmp.eq.s32.totalorder %s89, 0
      %p452 = por %p450, %p451
      %s454 = sadd.s32 %s453, 1
      %p457 = scmp.eq.s32.totalorder %s83, 1
      %p458 = scmp.ne.s32.totalorder %s453, %s455
      %p459 = scmp.eq.s32.totalorder %s83, 0
      %p460 = por %p458, %p459
      %p461 = scmp.ne.s32.totalorder %s453, %s455
      %p462 = scmp.eq.s32.totalorder %s88, 1
      %p463 = por %p461, %p462
      %p464 = scmp.ne.s32.totalorder %s455, %s456
      %p465 = scmp.eq.s32.totalorder %s88, 0
      %p466 = por %p464, %p465
      %p467 = scmp.ne.s32.totalorder %s455, %s456
      %p468 = scmp.eq.s32.totalorder %s89, 1
      %p469 = por %p467, %p468
      %p471 = scmp.ne.s32.totalorder %s456, %s470
      %p472 = scmp.eq.s32.totalorder %s89, 0
      %p473 = por %p471, %p472
      %s475 = sadd.s32 %s474, 1
      %p478 = scmp.eq.s32.totalorder %s83, 1
      %p479 = scmp.ne.s32.totalorder %s474, %s476
      %p480 = scmp.eq.s32.totalorder %s83, 0
      %p481 = por %p479, %p480
      %p482 = scmp.ne.s32.totalorder %s474, %s476
      %p483 = scmp.eq.s32.totalorder %s88, 1
      %p484 = por %p482, %p483
      %p485 = scmp.ne.s32.totalorder %s476, %s477
      %p486 = scmp.eq.s32.totalorder %s88, 0
      %p487 = por %p485, %p486
      %p488 = scmp.ne.s32.totalorder %s476, %s477
      %p489 = scmp.eq.s32.totalorder %s89, 1
      %p490 = por %p488, %p489
      %p492 = scmp.ne.s32.totalorder %s477, %s491
      %p493 = scmp.eq.s32.totalorder %s89, 0
      %p494 = por %p492, %p493
      %s496 = sadd.s32 %s495, 1
      %p499 = scmp.eq.s32.totalorder %s83, 1
      %p500 = scmp.ne.s32.totalorder %s495, %s497
      %p501 = scmp.eq.s32.totalorder %s83, 0
      %p502 = por %p500, %p501
      %p503 = scmp.ne.s32.totalorder %s495, %s497
      %p504 = scmp.eq.s32.totalorder %s88, 1
      %p505 = por %p503, %p504
      %p506 = scmp.ne.s32.totalorder %s497, %s498
      %p507 = scmp.eq.s32.totalorder %s88, 0
      %p508 = por %p506, %p507
      %p509 = scmp.ne.s32.totalorder %s497, %s498
      %p510 = scmp.eq.s32.totalorder %s89, 1
      %p511 = por %p509, %p510
      %p513 = scmp.ne.s32.totalorder %s498, %s512
      %p514 = scmp.eq.s32.totalorder %s89, 0
      %p515 = por %p513, %p514
      %s517 = sadd.s32 %s516, 1
      %p520 = scmp.eq.s32.totalorder %s83, 1
      %p521 = scmp.ne.s32.totalorder %s516, %s518
      %p522 = scmp.eq.s32.totalorder %s83, 0
      %p523 = por %p521, %p522
      %p524 = scmp.ne.s32.totalorder %s516, %s518
      %p525 = scmp.eq.s32.totalorder %s88, 1
      %p526 = por %p524, %p525
      %p527 = scmp.ne.s32.totalorder %s518, %s519
      %p528 = scmp.eq.s32.totalorder %s88, 0
      %p529 = por %p527, %p528
      %p530 = scmp.ne.s32.totalorder %s518, %s519
      %p531 = scmp.eq.s32.totalorder %s89, 1
      %p532 = por %p530, %p531
      %p534 = scmp.ne.s32.totalorder %s519, %s533
      %p535 = scmp.eq.s32.totalorder %s89, 0
      %p536 = por %p534, %p535
      %s538 = sadd.s32 %s537, 1
      %p541 = scmp.eq.s32.totalorder %s83, 1
      %p542 = scmp.ne.s32.totalorder %s537, %s539
      %p543 = scmp.eq.s32.totalorder %s83, 0
      %p544 = por %p542, %p543
      %p545 = scmp.ne.s32.totalorder %s537, %s539
      %p546 = scmp.eq.s32.totalorder %s88, 1
      %p547 = por %p545, %p546
      %p548 = scmp.ne.s32.totalorder %s539, %s540
      %p549 = scmp.eq.s32.totalorder %s88, 0
      %p550 = por %p548, %p549
      %p551 = scmp.ne.s32.totalorder %s539, %s540
      %p552 = scmp.eq.s32.totalorder %s89, 1
      %p553 = por %p551, %p552
      %p555 = scmp.ne.s32.totalorder %s540, %s554
      %p556 = scmp.eq.s32.totalorder %s89, 0
      %p557 = por %p555, %p556
      %s559 = sadd.s32 %s558, 1
      %p562 = scmp.eq.s32.totalorder %s83, 1
      %p563 = scmp.ne.s32.totalorder %s558, %s560
      %p564 = scmp.eq.s32.totalorder %s83, 0
      %p565 = por %p563, %p564
      %p566 = scmp.ne.s32.totalorder %s558, %s560
      %p567 = scmp.eq.s32.totalorder %s88, 1
      %p568 = por %p566, %p567
      %p569 = scmp.ne.s32.totalorder %s560, %s561
      %p570 = scmp.eq.s32.totalorder %s88, 0
      %p571 = por %p569, %p570
      %p572 = scmp.ne.s32.totalorder %s560, %s561
      %p573 = scmp.eq.s32.totalorder %s89, 1
      %p574 = por %p572, %p573
      %p576 = scmp.ne.s32.totalorder %s561, %s575
      %p577 = scmp.eq.s32.totalorder %s89, 0
      %p578 = por %p576, %p577
      %s580 = sadd.s32 %s579, 1
      %p583 = scmp.eq.s32.totalorder %s83, 1
      %p584 = scmp.ne.s32.totalorder %s579, %s581
      %p585 = scmp.eq.s32.totalorder %s83, 0
      %p586 = por %p584, %p585
      %p587 = scmp.ne.s32.totalorder %s579, %s581
      %p588 = scmp.eq.s32.totalorder %s88, 1
      %p589 = por %p587, %p588
      %p590 = scmp.ne.s32.totalorder %s581, %s582
      %p591 = scmp.eq.s32.totalorder %s88, 0
      %p592 = por %p590, %p591
      %p593 = scmp.ne.s32.totalorder %s581, %s582
      %p594 = scmp.eq.s32.totalorder %s89, 1
      %p595 = por %p593, %p594
      %p597 = scmp.ne.s32.totalorder %s582, %s596
      %p598 = scmp.eq.s32.totalorder %s89, 0
      %p599 = por %p597, %p598
      %s601 = sadd.s32 %s600, 1
      %p604 = scmp.eq.s32.totalorder %s83, 1
      %p605 = scmp.ne.s32.totalorder %s600, %s602
      %p606 = scmp.eq.s32.totalorder %s83, 0
      %p607 = por %p605, %p606
      %p608 = scmp.ne.s32.totalorder %s600, %s602
      %p609 = scmp.eq.s32.totalorder %s88, 1
      %p610 = por %p608, %p609
      %p611 = scmp.ne.s32.totalorder %s602, %s603
      %p612 = scmp.eq.s32.totalorder %s88, 0
      %p613 = por %p611, %p612
      %p614 = scmp.ne.s32.totalorder %s602, %s603
      %p615 = scmp.eq.s32.totalorder %s89, 1
      %p616 = por %p614, %p615
      %p618 = scmp.ne.s32.totalorder %s603, %s617
      %p619 = scmp.eq.s32.totalorder %s89, 0
      %p620 = por %p618, %p619
      %s622 = sadd.s32 %s621, 1
      %p625 = scmp.eq.s32.totalorder %s83, 1
      %p626 = scmp.ne.s32.totalorder %s621, %s623
      %p627 = scmp.eq.s32.totalorder %s83, 0
      %p628 = por %p626, %p627
      %p629 = scmp.ne.s32.totalorder %s621, %s623
      %p630 = scmp.eq.s32.totalorder %s88, 1
      %p631 = por %p629, %p630
      %p632 = scmp.ne.s32.totalorder %s623, %s624
      %p633 = scmp.eq.s32.totalorder %s88, 0
      %p634 = por %p632, %p633
      %p635 = scmp.ne.s32.totalorder %s623, %s624
      %p636 = scmp.eq.s32.totalorder %s89, 1
      %p637 = por %p635, %p636
      %p639 = scmp.ne.s32.totalorder %s624, %s638
      %p640 = scmp.eq.s32.totalorder %s89, 0
      %p641 = por %p639, %p640
      %s643 = sadd.s32 %s642, 1
      %p646 = scmp.eq.s32.totalorder %s83, 1
      %p647 = scmp.ne.s32.totalorder %s642, %s644
      %p648 = scmp.eq.s32.totalorder %s83, 0
      %p649 = por %p647, %p648
      %p650 = scmp.ne.s32.totalorder %s642, %s644
      %p651 = scmp.eq.s32.totalorder %s88, 1
      %p652 = por %p650, %p651
      %p653 = scmp.ne.s32.totalorder %s644, %s645
      %p654 = scmp.eq.s32.totalorder %s88, 0
      %p655 = por %p653, %p654
      %p656 = scmp.ne.s32.totalorder %s644, %s645
      %p657 = scmp.eq.s32.totalorder %s89, 1
      %p658 = por %p656, %p657
      %p660 = scmp.ne.s32.totalorder %s645, %s659
      %p661 = scmp.eq.s32.totalorder %s89, 0
      %p662 = por %p660, %p661
      %s664 = sadd.s32 %s663, 1
      %p667 = scmp.eq.s32.totalorder %s83, 1
      %p668 = scmp.ne.s32.totalorder %s663, %s665
      %p669 = scmp.eq.s32.totalorder %s83, 0
      %p670 = por %p668, %p669
      %p671 = scmp.ne.s32.totalorder %s663, %s665
      %p672 = scmp.eq.s32.totalorder %s88, 1
      %p673 = por %p671, %p672
      %p674 = scmp.ne.s32.totalorder %s665, %s666
      %p675 = scmp.eq.s32.totalorder %s88, 0
      %p676 = por %p674, %p675
      %p677 = scmp.ne.s32.totalorder %s665, %s666
      %p678 = scmp.eq.s32.totalorder %s89, 1
      %p679 = por %p677, %p678
      %p681 = scmp.ne.s32.totalorder %s666, %s680
      %p682 = scmp.eq.s32.totalorder %s89, 0
      %p683 = por %p681, %p682
      %s685 = sadd.s32 %s684, 1
      %p688 = scmp.eq.s32.totalorder %s83, 1
      %p689 = scmp.ne.s32.totalorder %s684, %s686
      %p690 = scmp.eq.s32.totalorder %s83, 0
      %p691 = por %p689, %p690
      %p692 = scmp.ne.s32.totalorder %s684, %s686
      %p693 = scmp.eq.s32.totalorder %s88, 1
      %p694 = por %p692, %p693
      %p695 = scmp.ne.s32.totalorder %s686, %s687
      %p696 = scmp.eq.s32.totalorder %s88, 0
      %p697 = por %p695, %p696
      %p698 = scmp.ne.s32.totalorder %s686, %s687
      %p699 = scmp.eq.s32.totalorder %s89, 1
      %p700 = por %p698, %p699
      %p702 = scmp.ne.s32.totalorder %s687, %s701
      %p703 = scmp.eq.s32.totalorder %s89, 0
      %p704 = por %p702, %p703
      %s706 = sadd.s32 %s705, 1
      %p709 = scmp.eq.s32.totalorder %s83, 1
      %p710 = scmp.ne.s32.totalorder %s705, %s707
      %p711 = scmp.eq.s32.totalorder %s83, 0
      %p712 = por %p710, %p711
      %p713 = scmp.ne.s32.totalorder %s705, %s707
      %p714 = scmp.eq.s32.totalorder %s88, 1
      %p715 = por %p713, %p714
      %p716 = scmp.ne.s32.totalorder %s707, %s708
      %p717 = scmp.eq.s32.totalorder %s88, 0
      %p718 = por %p716, %p717
      %p719 = scmp.ne.s32.totalorder %s707, %s708
      %p720 = scmp.eq.s32.totalorder %s89, 1
      %p721 = por %p719, %p720
      %p723 = scmp.ne.s32.totalorder %s708, %s722
      %p724 = scmp.eq.s32.totalorder %s89, 0
      %p725 = por %p723, %p724
      %s726 = ssub.s32 %s83, %s90
      %p727 = scmp.eq.s32.totalorder %s726, 0
      %s729 = sadd.s32 %s728, 1
      %s730 = scalar_select %p727, %s728, %s729
      %p733 = pneg %p727
      %p734 = scmp.eq.s32.totalorder %s83, 1
      %p735 = por %p733, %p734
      %p736 = scmp.ne.s32.totalorder %s728, %s731
      %p737 = scmp.eq.s32.totalorder %s83, 0
      %p738 = por %p736, %p737
      %p739 = scmp.ne.s32.totalorder %s728, %s731
      %p740 = scmp.eq.s32.totalorder %s88, 1
      %p741 = por %p739, %p740
      %p742 = scmp.ne.s32.totalorder %s731, %s732
      %p743 = scmp.eq.s32.totalorder %s88, 0
      %p744 = por %p742, %p743
      %p745 = scmp.ne.s32.totalorder %s731, %s732
      %p746 = scmp.eq.s32.totalorder %s89, 1
      %p747 = por %p745, %p746
      %p749 = scmp.ne.s32.totalorder %s732, %s748
      %p750 = scmp.eq.s32.totalorder %s89, 0
      %p751 = por %p749, %p750
      %p752 = scmp.le.s32.totalorder 1, %s83
      %p753 = scmp.lt.s32.totalorder %s83, 3
      %p754 = pnand %p752, %p753
      %p755 = pneg %p754
      // Predicated region
      $region9: #{tpu_custom_call.1} parent=5 // pred_check
        _
      $region10: #{tpu_custom_call.1} parent=5 // pred_check_branch
        %757 = sbr.rel (%p754) target = $region12
      $region11: #{tpu_custom_call.1} parent=5 // pred_region
        %s758 = ssub.s32 %s83, 1
        // Predicated region
        $region13: #{tpu_custom_call.1} parent=11 // pred_check
          %p759 = pneg %p130
        $region14: #{tpu_custom_call.1} parent=11 // pred_check_branch
          %761 = sbr.rel (%p759) target = $region16
        $region15: #{tpu_custom_call.1} parent=11 // pred_region
          _
        $region16: #{tpu_custom_call.1} parent=11 // pred_fallthru
          _
        // Predicated region
        $region17: #{tpu_custom_call.1} parent=11 // pred_check
          %p762 = pneg %p151
        $region18: #{tpu_custom_call.1} parent=11 // pred_check_branch
          %764 = sbr.rel (%p762) target = $region20
        $region19: #{tpu_custom_call.1} parent=11 // pred_region
          %766 = vsyncadd [#allocation3], 0
          %s768 = sshll.u32 %s5, 4
          %s769 = int_to_ptr.hbm [resolvable:$true] %s768
          %s770 = sshll.u32 [#allocation2], 4
          %s771 = int_to_ptr.vmem [resolvable:$true] %s770
          %773 = dma.hbm_to_vmem [thread:$0]  %s769, 16, %s771, [#allocation3]
        $region20: #{tpu_custom_call.1} parent=11 // pred_fallthru
          _
        // Predicated region
        $region21: #{tpu_custom_call.1} parent=11 // pred_check
          %p774 = pneg %p172
        $region22: #{tpu_custom_call.1} parent=11 // pred_check_branch
          %776 = sbr.rel (%p774) target = $region24
        $region23: #{tpu_custom_call.1} parent=11 // pred_region
          _
        $region24: #{tpu_custom_call.1} parent=11 // pred_fallthru
          _
        // Predicated region
        $region25: #{tpu_custom_call.1} parent=11 // pred_check
          %p777 = pneg %p193
        $region26: #{tpu_custom_call.1} parent=11 // pred_check_branch
          %779 = sbr.rel (%p777) target = $region28
        $region27: #{tpu_custom_call.1} parent=11 // pred_region
          %781 = vsyncadd [#allocation6], 0
          %s782 = sshll.u32 %s9, 4
          %s783 = int_to_ptr.hbm [resolvable:$true] %s782
          %s784 = sshll.u32 [#allocation5], 4
          %s785 = int_to_ptr.vmem [resolvable:$true] %s784
          %790 = dma.hbm_to_vmem [thread:$0]  %s783, 1024, %s785, [#allocation6], 128, 128, 8
        $region28: #{tpu_custom_call.1} parent=11 // pred_fallthru
          _
        // Predicated region
        $region29: #{tpu_custom_call.1} parent=11 // pred_check
          %p791 = pneg %p214
        $region30: #{tpu_custom_call.1} parent=11 // pred_check_branch
          %793 = sbr.rel (%p791) target = $region32
        $region31: #{tpu_custom_call.1} parent=11 // pred_region
          _
        $region32: #{tpu_custom_call.1} parent=11 // pred_fallthru
          _
        // Predicated region
        $region33: #{tpu_custom_call.1} parent=11 // pred_check
          %p794 = pneg %p235
        $region34: #{tpu_custom_call.1} parent=11 // pred_check_branch
          %796 = sbr.rel (%p794) target = $region36
        $region35: #{tpu_custom_call.1} parent=11 // pred_region
          %798 = vsyncadd [#allocation6], 0
          %s799 = sshll.u32 %s13, 4
          %s800 = int_to_ptr.hbm [resolvable:$true] %s799
          %s801 = sshll.u32 [#allocation7], 4
          %s802 = int_to_ptr.vmem [resolvable:$true] %s801
          %807 = dma.hbm_to_vmem [thread:$0]  %s800, 512, %s802, [#allocation6], 64, 64, 4
        $region36: #{tpu_custom_call.1} parent=11 // pred_fallthru
          _
        // Predicated region
        $region37: #{tpu_custom_call.1} parent=11 // pred_check
          %p808 = pneg %p256
        $region38: #{tpu_custom_call.1} parent=11 // pred_check_branch
          %810 = sbr.rel (%p808) target = $region40
        $region39: #{tpu_custom_call.1} parent=11 // pred_region
          %812 = vsyncadd [#allocation9], 0
          %s814 = sshll.u32 %s15, 4
          %s815 = int_to_ptr.hbm [resolvable:$true] %s814
          %s816 = sshll.u32 [#allocation8], 4
          %s817 = int_to_ptr.vmem [resolvable:$true] %s816
          %819 = dma.hbm_to_vmem [thread:$0]  %s815, 16, %s817, [#allocation9]
        $region40: #{tpu_custom_call.1} parent=11 // pred_fallthru
          _
        // Predicated region
        $region41: #{tpu_custom_call.1} parent=11 // pred_check
          %p820 = pneg %p277
        $region42: #{tpu_custom_call.1} parent=11 // pred_check_branch
          %822 = sbr.rel (%p820) target = $region44
        $region43: #{tpu_custom_call.1} parent=11 // pred_region
          %824 = vsyncadd [#allocation9], 0
          %s826 = sshll.u32 %s17, 4
          %s827 = int_to_ptr.hbm [resolvable:$true] %s826
          %s828 = sshll.u32 [#allocation10], 4
          %s829 = int_to_ptr.vmem [resolvable:$true] %s828
          %831 = dma.hbm_to_vmem [thread:$0]  %s827, 16, %s829, [#allocation9]
        $region44: #{tpu_custom_call.1} parent=11 // pred_fallthru
          _
        // Predicated region
        $region45: #{tpu_custom_call.1} parent=11 // pred_check
          %p832 = pneg %p298
        $region46: #{tpu_custom_call.1} parent=11 // pred_check_branch
          %834 = sbr.rel (%p832) target = $region48
        $region47: #{tpu_custom_call.1} parent=11 // pred_region
          %836 = vsyncadd [#allocation12], 0
          %s838 = sshll.u32 %s19, 4
          %s839 = int_to_ptr.hbm [resolvable:$true] %s838
          %s840 = sshll.u32 [#allocation11], 4
          %s841 = int_to_ptr.vmem [resolvable:$true] %s840
          %843 = dma.hbm_to_vmem [thread:$0]  %s839, 16, %s841, [#allocation12]
        $region48: #{tpu_custom_call.1} parent=11 // pred_fallthru
          _
        // Predicated region
        $region49: #{tpu_custom_call.1} parent=11 // pred_check
          %p844 = pneg %p319
        $region50: #{tpu_custom_call.1} parent=11 // pred_check_branch
          %846 = sbr.rel (%p844) target = $region52
        $region51: #{tpu_custom_call.1} parent=11 // pred_region
          %848 = vsyncadd [#allocation12], 0
          %s849 = sshll.u32 %s21, 4
          %s850 = int_to_ptr.hbm [resolvable:$true] %s849
          %s851 = sshll.u32 [#allocation13], 4
          %s852 = int_to_ptr.vmem [resolvable:$true] %s851
          %857 = dma.hbm_to_vmem [thread:$0]  %s850, 1024, %s852, [#allocation12], 128, 128, 8
        $region52: #{tpu_custom_call.1} parent=11 // pred_fallthru
          _
        // Predicated region
        $region53: #{tpu_custom_call.1} parent=11 // pred_check
          %p858 = pneg %p340
        $region54: #{tpu_custom_call.1} parent=11 // pred_check_branch
          %860 = sbr.rel (%p858) target = $region56
        $region55: #{tpu_custom_call.1} parent=11 // pred_region
          %862 = vsyncadd [#allocation15], 0
          %s863 = sshll.u32 %s23, 4
          %s864 = int_to_ptr.hbm [resolvable:$true] %s863
          %s865 = sshll.u32 [#allocation14], 4
          %s866 = int_to_ptr.vmem [resolvable:$true] %s865
          %871 = dma.hbm_to_vmem [thread:$0]  %s864, 1024, %s866, [#allocation15], 128, 128, 8
        $region56: #{tpu_custom_call.1} parent=11 // pred_fallthru
          _
        // Predicated region
        $region57: #{tpu_custom_call.1} parent=11 // pred_check
          %p872 = pneg %p361
        $region58: #{tpu_custom_call.1} parent=11 // pred_check_branch
          %874 = sbr.rel (%p872) target = $region60
        $region59: #{tpu_custom_call.1} parent=11 // pred_region
          %876 = vsyncadd [#allocation15], 0
          %s878 = sshll.u32 %s25, 4
          %s879 = int_to_ptr.hbm [resolvable:$true] %s878
          %s880 = sshll.u32 [#allocation16], 4
          %s881 = int_to_ptr.vmem [resolvable:$true] %s880
          %883 = dma.hbm_to_vmem [thread:$0]  %s879, 32, %s881, [#allocation15]
        $region60: #{tpu_custom_call.1} parent=11 // pred_fallthru
          _
        // Predicated region
        $region61: #{tpu_custom_call.1} parent=11 // pred_check
          %p884 = pneg %p382
        $region62: #{tpu_custom_call.1} parent=11 // pred_check_branch
          %886 = sbr.rel (%p884) target = $region64
        $region63: #{tpu_custom_call.1} parent=11 // pred_region
          %888 = vsyncadd [#allocation18], 0
          %s889 = sshll.u32 %s27, 4
          %s890 = int_to_ptr.hbm [resolvable:$true] %s889
          %s891 = sshll.u32 [#allocation17], 4
          %s892 = int_to_ptr.vmem [resolvable:$true] %s891
          %897 = dma.hbm_to_vmem [thread:$0]  %s890, 512, %s892, [#allocation18], 64, 64, 4
        $region64: #{tpu_custom_call.1} parent=11 // pred_fallthru
          _
        // Predicated region
        $region65: #{tpu_custom_call.1} parent=11 // pred_check
          %p898 = pneg %p403
        $region66: #{tpu_custom_call.1} parent=11 // pred_check_branch
          %900 = sbr.rel (%p898) target = $region68
        $region67: #{tpu_custom_call.1} parent=11 // pred_region
          %902 = vsyncadd [#allocation18], 0
          %s904 = sshll.u32 %s29, 4
          %s905 = int_to_ptr.hbm [resolvable:$true] %s904
          %s906 = sshll.u32 [#allocation19], 4
          %s907 = int_to_ptr.vmem [resolvable:$true] %s906
          %909 = dma.hbm_to_vmem [thread:$0]  %s905, 16, %s907, [#allocation18]
        $region68: #{tpu_custom_call.1} parent=11 // pred_fallthru
          _
        // Predicated region
        $region69: #{tpu_custom_call.1} parent=11 // pred_check
          %p910 = pneg %p424
        $region70: #{tpu_custom_call.1} parent=11 // pred_check_branch
          %912 = sbr.rel (%p910) target = $region72
        $region71: #{tpu_custom_call.1} parent=11 // pred_region
          %914 = vsyncadd [#allocation21], 0
          %s916 = sshll.u32 %s31, 4
          %s917 = int_to_ptr.hbm [resolvable:$true] %s916
          %s918 = sshll.u32 [#allocation20], 4
          %s919 = int_to_ptr.vmem [resolvable:$true] %s918
          %921 = dma.hbm_to_vmem [thread:$0]  %s917, 16, %s919, [#allocation21]
        $region72: #{tpu_custom_call.1} parent=11 // pred_fallthru
          _
        // Predicated region
        $region73: #{tpu_custom_call.1} parent=11 // pred_check
          %p922 = pneg %p445
        $region74: #{tpu_custom_call.1} parent=11 // pred_check_branch
          %924 = sbr.rel (%p922) target = $region76
        $region75: #{tpu_custom_call.1} parent=11 // pred_region
          %926 = vsyncadd [#allocation21], 0
          %s928 = sshll.u32 %s33, 4
          %s929 = int_to_ptr.hbm [resolvable:$true] %s928
          %s930 = sshll.u32 [#allocation22], 4
          %s931 = int_to_ptr.vmem [resolvable:$true] %s930
          %933 = dma.hbm_to_vmem [thread:$0]  %s929, 16, %s931, [#allocation21]
        $region76: #{tpu_custom_call.1} parent=11 // pred_fallthru
          _
        // Predicated region
        $region77: #{tpu_custom_call.1} parent=11 // pred_check
          %p934 = pneg %p466
        $region78: #{tpu_custom_call.1} parent=11 // pred_check_branch
          %936 = sbr.rel (%p934) target = $region80
        $region79: #{tpu_custom_call.1} parent=11 // pred_region
          %938 = vsyncadd [#allocation24], 0
          %s939 = sshll.u32 %s35, 4
          %s940 = int_to_ptr.hbm [resolvable:$true] %s939
          %s941 = sshll.u32 [#allocation23], 4
          %s942 = int_to_ptr.vmem [resolvable:$true] %s941
          %947 = dma.hbm_to_vmem [thread:$0]  %s940, 1024, %s942, [#allocation24], 128, 128, 8
        $region80: #{tpu_custom_call.1} parent=11 // pred_fallthru
          _
        // Predicated region
        $region81: #{tpu_custom_call.1} parent=11 // pred_check
          %p948 = pneg %p487
        $region82: #{tpu_custom_call.1} parent=11 // pred_check_branch
          %950 = sbr.rel (%p948) target = $region84
        $region83: #{tpu_custom_call.1} parent=11 // pred_region
          %952 = vsyncadd [#allocation24], 0
          %s953 = sshll.u32 %s37, 4
          %s954 = int_to_ptr.hbm [resolvable:$true] %s953
          %s955 = sshll.u32 [#allocation25], 4
          %s956 = int_to_ptr.vmem [resolvable:$true] %s955
          %961 = dma.hbm_to_vmem [thread:$0]  %s954, 3072, %s956, [#allocation24], 192, 192, 12
        $region84: #{tpu_custom_call.1} parent=11 // pred_fallthru
          _
        // Predicated region
        $region85: #{tpu_custom_call.1} parent=11 // pred_check
          %p962 = pneg %p508
        $region86: #{tpu_custom_call.1} parent=11 // pred_check_branch
          %964 = sbr.rel (%p962) target = $region88
        $region87: #{tpu_custom_call.1} parent=11 // pred_region
          %966 = vsyncadd [#allocation27], 0
          %s968 = sshll.u32 %s39, 4
          %s969 = int_to_ptr.hbm [resolvable:$true] %s968
          %s970 = sshll.u32 [#allocation26], 4
          %s971 = int_to_ptr.vmem [resolvable:$true] %s970
          %973 = dma.hbm_to_vmem [thread:$0]  %s969, 48, %s971, [#allocation27]
        $region88: #{tpu_custom_call.1} parent=11 // pred_fallthru
          _
        // Predicated region
        $region89: #{tpu_custom_call.1} parent=11 // pred_check
          %p974 = pneg %p529
        $region90: #{tpu_custom_call.1} parent=11 // pred_check_branch
          %976 = sbr.rel (%p974) target = $region92
        $region91: #{tpu_custom_call.1} parent=11 // pred_region
          %978 = vsyncadd [#allocation27], 0
          %s979 = sshll.u32 %s41, 4
          %s980 = int_to_ptr.hbm [resolvable:$true] %s979
          %s981 = sshll.u32 [#allocation28], 4
          %s982 = int_to_ptr.vmem [resolvable:$true] %s981
          %987 = dma.hbm_to_vmem [thread:$0]  %s980, 1024, %s982, [#allocation27], 64, 64, 4
        $region92: #{tpu_custom_call.1} parent=11 // pred_fallthru
          _
        // Predicated region
        $region93: #{tpu_custom_call.1} parent=11 // pred_check
          %p988 = pneg %p550
        $region94: #{tpu_custom_call.1} parent=11 // pred_check_branch
          %990 = sbr.rel (%p988) target = $region96
        $region95: #{tpu_custom_call.1} parent=11 // pred_region
          %992 = vsyncadd [#allocation30], 0
          %s994 = sshll.u32 %s43, 4
          %s995 = int_to_ptr.hbm [resolvable:$true] %s994
          %s996 = sshll.u32 [#allocation29], 4
          %s997 = int_to_ptr.vmem [resolvable:$true] %s996
          %999 = dma.hbm_to_vmem [thread:$0]  %s995, 16, %s997, [#allocation30]
        $region96: #{tpu_custom_call.1} parent=11 // pred_fallthru
          _
        // Predicated region
        $region97: #{tpu_custom_call.1} parent=11 // pred_check
          %p1000 = pneg %p571
        $region98: #{tpu_custom_call.1} parent=11 // pred_check_branch
          %1002 = sbr.rel (%p1000) target = $region100
        $region99: #{tpu_custom_call.1} parent=11 // pred_region
          %1004 = vsyncadd [#allocation30], 0
          %s1006 = sshll.u32 %s45, 4
          %s1007 = int_to_ptr.hbm [resolvable:$true] %s1006
          %s1008 = sshll.u32 [#allocation31], 4
          %s1009 = int_to_ptr.vmem [resolvable:$true] %s1008
          %1011 = dma.hbm_to_vmem [thread:$0]  %s1007, 16, %s1009, [#allocation30]
        $region100: #{tpu_custom_call.1} parent=11 // pred_fallthru
          _
        // Predicated region
        $region101: #{tpu_custom_call.1} parent=11 // pred_check
          %p1012 = pneg %p592
        $region102: #{tpu_custom_call.1} parent=11 // pred_check_branch
          %1014 = sbr.rel (%p1012) target = $region104
        $region103: #{tpu_custom_call.1} parent=11 // pred_region
          %1016 = vsyncadd [#allocation33], 0
          %s1018 = sshll.u32 %s47, 4
          %s1019 = int_to_ptr.hbm [resolvable:$true] %s1018
          %s1020 = sshll.u32 [#allocation32], 4
          %s1021 = int_to_ptr.vmem [resolvable:$true] %s1020
          %1023 = dma.hbm_to_vmem [thread:$0]  %s1019, 16, %s1021, [#allocation33]
        $region104: #{tpu_custom_call.1} parent=11 // pred_fallthru
          _
        // Predicated region
        $region105: #{tpu_custom_call.1} parent=11 // pred_check
          %p1024 = pneg %p613
        $region106: #{tpu_custom_call.1} parent=11 // pred_check_branch
          %1026 = sbr.rel (%p1024) target = $region108
        $region107: #{tpu_custom_call.1} parent=11 // pred_region
          %1028 = vsyncadd [#allocation33], 0
          %s1029 = sshll.u32 %s49, 4
          %s1030 = int_to_ptr.hbm [resolvable:$true] %s1029
          %s1031 = sshll.u32 [#allocation34], 4
          %s1032 = int_to_ptr.vmem [resolvable:$true] %s1031
          %1037 = dma.hbm_to_vmem [thread:$0]  %s1030, 2048, %s1032, [#allocation33], 128, 128, 8
        $region108: #{tpu_custom_call.1} parent=11 // pred_fallthru
          _
        // Predicated region
        $region109: #{tpu_custom_call.1} parent=11 // pred_check
          %p1038 = pneg %p634
        $region110: #{tpu_custom_call.1} parent=11 // pred_check_branch
          %1040 = sbr.rel (%p1038) target = $region112
        $region111: #{tpu_custom_call.1} parent=11 // pred_region
          %1042 = vsyncadd [#allocation36], 0
          %s1044 = sshll.u32 %s51, 4
          %s1045 = int_to_ptr.hbm [resolvable:$true] %s1044
          %s1046 = sshll.u32 [#allocation35], 4
          %s1047 = int_to_ptr.vmem [resolvable:$true] %s1046
          %1049 = dma.hbm_to_vmem [thread:$0]  %s1045, 16, %s1047, [#allocation36]
        $region112: #{tpu_custom_call.1} parent=11 // pred_fallthru
          _
        // Predicated region
        $region113: #{tpu_custom_call.1} parent=11 // pred_check
          %p1050 = pneg %p655
        $region114: #{tpu_custom_call.1} parent=11 // pred_check_branch
          %1052 = sbr.rel (%p1050) target = $region116
        $region115: #{tpu_custom_call.1} parent=11 // pred_region
          _
        $region116: #{tpu_custom_call.1} parent=11 // pred_fallthru
          _
        // Predicated region
        $region117: #{tpu_custom_call.1} parent=11 // pred_check
          %p1053 = pneg %p676
        $region118: #{tpu_custom_call.1} parent=11 // pred_check_branch
          %1055 = sbr.rel (%p1053) target = $region120
        $region119: #{tpu_custom_call.1} parent=11 // pred_region
          %1057 = vsyncadd [#allocation36], 0
          %s1059 = sshll.u32 %s55, 4
          %s1060 = int_to_ptr.hbm [resolvable:$true] %s1059
          %s1061 = sshll.u32 [#allocation37], 4
          %s1062 = int_to_ptr.vmem [resolvable:$true] %s1061
          %1064 = dma.hbm_to_vmem [thread:$0]  %s1060, 64, %s1062, [#allocation36]
        $region120: #{tpu_custom_call.1} parent=11 // pred_fallthru
          _
        // Predicated region
        $region121: #{tpu_custom_call.1} parent=11 // pred_check
          %p1065 = pneg %p697
        $region122: #{tpu_custom_call.1} parent=11 // pred_check_branch
          %1067 = sbr.rel (%p1065) target = $region124
        $region123: #{tpu_custom_call.1} parent=11 // pred_region
          _
        $region124: #{tpu_custom_call.1} parent=11 // pred_fallthru
          _
        // Predicated region
        $region125: #{tpu_custom_call.1} parent=11 // pred_check
          %p1068 = pneg %p718
        $region126: #{tpu_custom_call.1} parent=11 // pred_check_branch
          %1070 = sbr.rel (%p1068) target = $region128
        $region127: #{tpu_custom_call.1} parent=11 // pred_region
          %1072 = vsyncadd [#allocation39], 0
          %s1074 = sshll.u32 %s59, 4
          %s1075 = int_to_ptr.hbm [resolvable:$true] %s1074
          %s1076 = sshll.u32 [#allocation38], 4
          %s1077 = int_to_ptr.vmem [resolvable:$true] %s1076
          %1079 = dma.hbm_to_vmem [thread:$0]  %s1075, 16, %s1077, [#allocation39]
        $region128: #{tpu_custom_call.1} parent=11 // pred_fallthru
          _
      $region12: #{tpu_custom_call.1} parent=5 // pred_fallthru
        _
      %p1080 = scmp.lt.s32.totalorder %s83, 2
      // Predicated region
      $region129: #{tpu_custom_call.1} parent=5 // pred_check
        %p1081 = pneg %p1080
      $region130: #{tpu_custom_call.1} parent=5 // pred_check_branch
        %1083 = sbr.rel (%p1081) target = $region132
      $region131: #{tpu_custom_call.1} parent=5 // pred_region
        // Predicated region
        $region133: #{tpu_custom_call.1} parent=131 // pred_check
          %p1084 = pneg %p103
        $region134: #{tpu_custom_call.1} parent=131 // pred_check_branch
          %1086 = sbr.rel (%p1084) target = $region136
        $region135: #{tpu_custom_call.1} parent=131 // pred_region
          %p1087 = scmp.lt.s32.totalorder %s83, 1
          %s1088 = scalar_select %p1087, %s83, 1
          %s1089 = smul.addr %s1088, 2
          %s1090 = smul.addr %s1089, 8
          %s1091 = scalar_lea.vmem %s1, %s1090
        $region136: #{tpu_custom_call.1} parent=131 // pred_fallthru
          _
      $region132: #{tpu_custom_call.1} parent=5 // pred_fallthru
        _
      %p1092 = scmp.le.s32.totalorder 1, %s83
      %p1093 = scmp.lt.s32.totalorder %s83, 3
      %p1094 = pnand %p1092, %p1093
      %p1095 = pneg %p1094
      // Predicated region
      $region137: #{tpu_custom_call.1} parent=5 // pred_check
        _
      $region138: #{tpu_custom_call.1} parent=5 // pred_check_branch
        %1097 = sbr.rel (%p1094) target = $region140
      $region139: #{tpu_custom_call.1} parent=5 // pred_region
        %s1098 = ssub.s32 %s83, 1
        // Predicated region
        $region141: #{tpu_custom_call.1} parent=139 // pred_check
          %p1099 = pneg %p151
        $region142: #{tpu_custom_call.1} parent=139 // pred_check_branch
          %1101 = sbr.rel (%p1099) target = $region144
        $region143: #{tpu_custom_call.1} parent=139 // pred_region
          %1103 = dma.done [#allocation3], 16
        $region144: #{tpu_custom_call.1} parent=139 // pred_fallthru
          _
        // Predicated region
        $region145: #{tpu_custom_call.1} parent=139 // pred_check
          %p1104 = pneg %p193
        $region146: #{tpu_custom_call.1} parent=139 // pred_check_branch
          %1106 = sbr.rel (%p1104) target = $region148
        $region147: #{tpu_custom_call.1} parent=139 // pred_region
          %1108 = dma.done [#allocation6], 1024
        $region148: #{tpu_custom_call.1} parent=139 // pred_fallthru
          _
        // Predicated region
        $region149: #{tpu_custom_call.1} parent=139 // pred_check
          %p1109 = pneg %p235
        $region150: #{tpu_custom_call.1} parent=139 // pred_check_branch
          %1111 = sbr.rel (%p1109) target = $region152
        $region151: #{tpu_custom_call.1} parent=139 // pred_region
          %1113 = dma.done [#allocation6], 512
        $region152: #{tpu_custom_call.1} parent=139 // pred_fallthru
          _
        // Predicated region
        $region153: #{tpu_custom_call.1} parent=139 // pred_check
          %p1114 = pneg %p256
        $region154: #{tpu_custom_call.1} parent=139 // pred_check_branch
          %1116 = sbr.rel (%p1114) target = $region156
        $region155: #{tpu_custom_call.1} parent=139 // pred_region
          %1118 = dma.done [#allocation9], 16
        $region156: #{tpu_custom_call.1} parent=139 // pred_fallthru
          _
        // Predicated region
        $region157: #{tpu_custom_call.1} parent=139 // pred_check
          %p1119 = pneg %p277
        $region158: #{tpu_custom_call.1} parent=139 // pred_check_branch
          %1121 = sbr.rel (%p1119) target = $region160
        $region159: #{tpu_custom_call.1} parent=139 // pred_region
          %1123 = dma.done [#allocation9], 16
        $region160: #{tpu_custom_call.1} parent=139 // pred_fallthru
          _
        // Predicated region
        $region161: #{tpu_custom_call.1} parent=139 // pred_check
          %p1124 = pneg %p298
        $region162: #{tpu_custom_call.1} parent=139 // pred_check_branch
          %1126 = sbr.rel (%p1124) target = $region164
        $region163: #{tpu_custom_call.1} parent=139 // pred_region
          %1128 = dma.done [#allocation12], 16
        $region164: #{tpu_custom_call.1} parent=139 // pred_fallthru
          _
        // Predicated region
        $region165: #{tpu_custom_call.1} parent=139 // pred_check
          %p1129 = pneg %p319
        $region166: #{tpu_custom_call.1} parent=139 // pred_check_branch
          %1131 = sbr.rel (%p1129) target = $region168
        $region167: #{tpu_custom_call.1} parent=139 // pred_region
          %1133 = dma.done [#allocation12], 1024
        $region168: #{tpu_custom_call.1} parent=139 // pred_fallthru
          _
        // Predicated region
        $region169: #{tpu_custom_call.1} parent=139 // pred_check
          %p1134 = pneg %p340
        $region170: #{tpu_custom_call.1} parent=139 // pred_check_branch
          %1136 = sbr.rel (%p1134) target = $region172
        $region171: #{tpu_custom_call.1} parent=139 // pred_region
          %1138 = dma.done [#allocation15], 1024
        $region172: #{tpu_custom_call.1} parent=139 // pred_fallthru
          _
        // Predicated region
        $region173: #{tpu_custom_call.1} parent=139 // pred_check
          %p1139 = pneg %p361
        $region174: #{tpu_custom_call.1} parent=139 // pred_check_branch
          %1141 = sbr.rel (%p1139) target = $region176
        $region175: #{tpu_custom_call.1} parent=139 // pred_region
          %1143 = dma.done [#allocation15], 32
        $region176: #{tpu_custom_call.1} parent=139 // pred_fallthru
          _
        // Predicated region
        $region177: #{tpu_custom_call.1} parent=139 // pred_check
          %p1144 = pneg %p382
        $region178: #{tpu_custom_call.1} parent=139 // pred_check_branch
          %1146 = sbr.rel (%p1144) target = $region180
        $region179: #{tpu_custom_call.1} parent=139 // pred_region
          %1148 = dma.done [#allocation18], 512
        $region180: #{tpu_custom_call.1} parent=139 // pred_fallthru
          _
        // Predicated region
        $region181: #{tpu_custom_call.1} parent=139 // pred_check
          %p1149 = pneg %p403
        $region182: #{tpu_custom_call.1} parent=139 // pred_check_branch
          %1151 = sbr.rel (%p1149) target = $region184
        $region183: #{tpu_custom_call.1} parent=139 // pred_region
          %1153 = dma.done [#allocation18], 16
        $region184: #{tpu_custom_call.1} parent=139 // pred_fallthru
          _
        // Predicated region
        $region185: #{tpu_custom_call.1} parent=139 // pred_check
          %p1154 = pneg %p424
        $region186: #{tpu_custom_call.1} parent=139 // pred_check_branch
          %1156 = sbr.rel (%p1154) target = $region188
        $region187: #{tpu_custom_call.1} parent=139 // pred_region
          %1158 = dma.done [#allocation21], 16
        $region188: #{tpu_custom_call.1} parent=139 // pred_fallthru
          _
        // Predicated region
        $region189: #{tpu_custom_call.1} parent=139 // pred_check
          %p1159 = pneg %p445
        $region190: #{tpu_custom_call.1} parent=139 // pred_check_branch
          %1161 = sbr.rel (%p1159) target = $region192
        $region191: #{tpu_custom_call.1} parent=139 // pred_region
          %1163 = dma.done [#allocation21], 16
        $region192: #{tpu_custom_call.1} parent=139 // pred_fallthru
          _
        // Predicated region
        $region193: #{tpu_custom_call.1} parent=139 // pred_check
          %p1164 = pneg %p466
        $region194: #{tpu_custom_call.1} parent=139 // pred_check_branch
          %1166 = sbr.rel (%p1164) target = $region196
        $region195: #{tpu_custom_call.1} parent=139 // pred_region
          %1168 = dma.done [#allocation24], 1024
        $region196: #{tpu_custom_call.1} parent=139 // pred_fallthru
          _
        // Predicated region
        $region197: #{tpu_custom_call.1} parent=139 // pred_check
          %p1169 = pneg %p487
        $region198: #{tpu_custom_call.1} parent=139 // pred_check_branch
          %1171 = sbr.rel (%p1169) target = $region200
        $region199: #{tpu_custom_call.1} parent=139 // pred_region
          %1173 = dma.done [#allocation24], 3072
        $region200: #{tpu_custom_call.1} parent=139 // pred_fallthru
          _
        // Predicated region
        $region201: #{tpu_custom_call.1} parent=139 // pred_check
          %p1174 = pneg %p508
        $region202: #{tpu_custom_call.1} parent=139 // pred_check_branch
          %1176 = sbr.rel (%p1174) target = $region204
        $region203: #{tpu_custom_call.1} parent=139 // pred_region
          %1178 = dma.done [#allocation27], 48
        $region204: #{tpu_custom_call.1} parent=139 // pred_fallthru
          _
        // Predicated region
        $region205: #{tpu_custom_call.1} parent=139 // pred_check
          %p1179 = pneg %p529
        $region206: #{tpu_custom_call.1} parent=139 // pred_check_branch
          %1181 = sbr.rel (%p1179) target = $region208
        $region207: #{tpu_custom_call.1} parent=139 // pred_region
          %1183 = dma.done [#allocation27], 1024
        $region208: #{tpu_custom_call.1} parent=139 // pred_fallthru
          _
        // Predicated region
        $region209: #{tpu_custom_call.1} parent=139 // pred_check
          %p1184 = pneg %p550
        $region210: #{tpu_custom_call.1} parent=139 // pred_check_branch
          %1186 = sbr.rel (%p1184) target = $region212
        $region211: #{tpu_custom_call.1} parent=139 // pred_region
          %1188 = dma.done [#allocation30], 16
        $region212: #{tpu_custom_call.1} parent=139 // pred_fallthru
          _
        // Predicated region
        $region213: #{tpu_custom_call.1} parent=139 // pred_check
          %p1189 = pneg %p571
        $region214: #{tpu_custom_call.1} parent=139 // pred_check_branch
          %1191 = sbr.rel (%p1189) target = $region216
        $region215: #{tpu_custom_call.1} parent=139 // pred_region
          %1193 = dma.done [#allocation30], 16
        $region216: #{tpu_custom_call.1} parent=139 // pred_fallthru
          _
        // Predicated region
        $region217: #{tpu_custom_call.1} parent=139 // pred_check
          %p1194 = pneg %p592
        $region218: #{tpu_custom_call.1} parent=139 // pred_check_branch
          %1196 = sbr.rel (%p1194) target = $region220
        $region219: #{tpu_custom_call.1} parent=139 // pred_region
          %1198 = dma.done [#allocation33], 16
        $region220: #{tpu_custom_call.1} parent=139 // pred_fallthru
          _
        // Predicated region
        $region221: #{tpu_custom_call.1} parent=139 // pred_check
          %p1199 = pneg %p613
        $region222: #{tpu_custom_call.1} parent=139 // pred_check_branch
          %1201 = sbr.rel (%p1199) target = $region224
        $region223: #{tpu_custom_call.1} parent=139 // pred_region
          %1203 = dma.done [#allocation33], 2048
        $region224: #{tpu_custom_call.1} parent=139 // pred_fallthru
          _
        // Predicated region
        $region225: #{tpu_custom_call.1} parent=139 // pred_check
          %p1204 = pneg %p634
        $region226: #{tpu_custom_call.1} parent=139 // pred_check_branch
          %1206 = sbr.rel (%p1204) target = $region228
        $region227: #{tpu_custom_call.1} parent=139 // pred_region
          %1208 = dma.done [#allocation36], 16
        $region228: #{tpu_custom_call.1} parent=139 // pred_fallthru
          _
        // Predicated region
        $region229: #{tpu_custom_call.1} parent=139 // pred_check
          %p1209 = pneg %p676
        $region230: #{tpu_custom_call.1} parent=139 // pred_check_branch
          %1211 = sbr.rel (%p1209) target = $region232
        $region231: #{tpu_custom_call.1} parent=139 // pred_region
          %1213 = dma.done [#allocation36], 64
        $region232: #{tpu_custom_call.1} parent=139 // pred_fallthru
          _
        // Predicated region
        $region233: #{tpu_custom_call.1} parent=139 // pred_check
          %p1214 = pneg %p718
        $region234: #{tpu_custom_call.1} parent=139 // pred_check_branch
          %1216 = sbr.rel (%p1214) target = $region236
        $region235: #{tpu_custom_call.1} parent=139 // pred_region
          %1218 = dma.done [#allocation39], 16
        $region236: #{tpu_custom_call.1} parent=139 // pred_fallthru
          _
        %p1219 = scmp.lt.s32.totalorder %s88, 1
        %s1220 = scalar_select %p1219, %s88, 1
        %s1221 = smul.addr %s1220, 2
        %s1222 = smul.addr %s1221, 8
        %s1223 = scalar_lea.vmem %s1, %s1222
        %p1224 = pneg %p109
        %p1225 = pneg %p106
        %p1226 = pneg %p130
        %p1227 = pneg %p127
        %p1228 = pneg %p151
        %p1229 = pneg %p148
        %p1230 = pneg %p172
        %p1231 = pneg %p169
        %p1232 = pneg %p193
        %p1233 = pneg %p190
        %p1234 = pneg %p214
        %p1235 = pneg %p211
        %p1236 = pneg %p235
        %p1237 = pneg %p232
        %p1238 = pneg %p256
        %p1239 = pneg %p253
        %p1240 = pneg %p277
        %p1241 = pneg %p274
        %p1242 = pneg %p298
        %p1243 = pneg %p295
        %p1244 = pneg %p319
        %p1245 = pneg %p316
        %p1246 = pneg %p340
        %p1247 = pneg %p337
        %p1248 = pneg %p361
        %p1249 = pneg %p358
        %p1250 = pneg %p382
        %p1251 = pneg %p379
        %p1252 = pneg %p403
        %p1253 = pneg %p400
        %p1254 = pneg %p424
        %p1255 = pneg %p421
        %p1256 = pneg %p445
        %p1257 = pneg %p442
        %p1258 = pneg %p466
        %p1259 = pneg %p463
        %p1260 = pneg %p487
        %p1261 = pneg %p484
        %p1262 = pneg %p508
        %p1263 = pneg %p505
        %p1264 = pneg %p529
        %p1265 = pneg %p526
        %p1266 = pneg %p550
        %p1267 = pneg %p547
        %p1268 = pneg %p571
        %p1269 = pneg %p568
        %p1270 = pneg %p592
        %p1271 = pneg %p589
        %p1272 = pneg %p613
        %p1273 = pneg %p610
        %p1274 = pneg %p634
        %p1275 = pneg %p631
        %p1276 = pneg %p655
        %p1277 = pneg %p652
        %p1278 = pneg %p676
        %p1279 = pneg %p673
        %p1280 = pneg %p697
        %p1281 = pneg %p694
        %p1282 = pneg %p718
        %p1283 = pneg %p715
        %p1284 = pneg %p744
        %p1285 = pneg %p741
        %s1286 = sand.u32 %s731, 1
        %s1287 = scalar_lea.sflag [#allocation4], %s1286
        %s1288 = sand.u32 %s731, 1
        %s1289 = scalar_lea.vmem [#allocation40], %s1288
        %p1290 = scmp.lt.s32.totalorder %s88, 1
        %s1291 = scalar_select %p1290, %s88, 1
        %s1292 = smul.addr %s1291, 2
        %s1293 = smul.addr %s1292, 8
        %s1294 = scalar_lea.vmem %s1, %s1293
        %v1296 = vld [vmem:[%s1294] sm:$0xff]
        %v1297 = vld [vmem:[%s1294 + $0x8] sm:$0xff]
        %v1298 = vld [vmem:[%s3] sm:$0xff]
        %v1299 = vld [vmem:[#allocation2] sm:$0x1]
        %v1301 = vperm.slane %v1299, 0
        %vm1303 = vcmask 64512
        %v1305 = vsel %vm1303, %v1296, 0
        %v1308 = vsel %vm1303, %v1297, 0
        %1310 = vmatpush.msra.mxu0 0.0
        %1311 = vmatpush.msra.mxu0 0.0
        %1312 = vmatpush.msra.mxu0 0.0
        %1313 = vmatpush.msra.mxu0 0.0
        %1314 = vmatpush.msra.mxu0 0.0
        %1315 = vmatpush.msra.mxu0 0.0
        %1316 = vmatpush.msra.mxu0 0.0
        %1317 = vmatpush.msra.mxu0 0.0
        %1318 = vmatpush.msra.mxu0 0.0
        %1319 = vmatpush.msra.mxu0 0.0
        %1320 = vmatpush.msra.mxu0 0.0
        %1321 = vmatpush.msra.mxu0 0.0
        %1322 = vmatpush.msra.mxu0 0.0
        %1323 = vmatpush.msra.mxu0 0.0
        %1324 = vmatpush.msra.mxu0 0.0
        %1325 = vmatpush.msra.mxu0 %v1298
        %1326 = vmatmul.f32.gmra.mxu0 %v1305
        %v1327 = vpop.f32.mrf.mxu0
        %v1328 = vadd.f32 %v1301, %v1327
        %1329 = vmatmul.f32.gmra.mxu0 %v1308
        %v1330 = vpop.f32.mrf.mxu0
        %v1331 = vadd.f32 %v1301, %v1330
        %1332 = vdwg.mxu0
        %v1333 = vmax.f32 %v1328, 0.0
        %v1334 = vmax.f32 %v1331, 0.0
        %v1335 = vld [vmem:[%s7] sm:$0xff]
        %v1336 = vld [vmem:[%s7 + $0x8] sm:$0xff]
        %v1337 = vld [vmem:[%s7 + $0x10] sm:$0xff]
        %v1338 = vld [vmem:[%s7 + $0x18] sm:$0xff]
        %v1339 = vld [vmem:[%s7 + $0x20] sm:$0xff]
        %v1340 = vld [vmem:[%s7 + $0x28] sm:$0xff]
        %v1341 = vld [vmem:[%s7 + $0x30] sm:$0xff]
        %v1342 = vld [vmem:[%s7 + $0x38] sm:$0xff]
        %vm1343 = vcmask 523264
        %v1345 = vsel %vm1343, %v1333, 0
        %v1348 = vsel %vm1343, %v1334, 0
        %1350 = vmatpush.msra.mxu0 0.0
        %1351 = vmatpush.msra.mxu0 0.0
        %1352 = vmatpush.msra.mxu0 0.0
        %1353 = vmatpush.msra.mxu0 0.0
        %1354 = vmatpush.msra.mxu0 0.0
        %1355 = vmatpush.msra.mxu0 0.0
        %1356 = vmatpush.msra.mxu0 0.0
        %1357 = vmatpush.msra.mxu0 0.0
        %1358 = vmatpush.msra.mxu0 %v1342
        %1359 = vmatpush.msra.mxu0 %v1341
        %1360 = vmatpush.msra.mxu0 %v1340
        %1361 = vmatpush.msra.mxu0 %v1339
        %1362 = vmatpush.msra.mxu0 %v1338
        %1363 = vmatpush.msra.mxu0 %v1337
        %1364 = vmatpush.msra.mxu0 %v1336
        %1365 = vmatpush.msra.mxu0 %v1335
        %1366 = vmatmul.f32.gmra.mxu0 %v1345
        %v1367 = vpop.f32.mrf.mxu0
        %v1368 = vadd.f32 0.0, %v1367
        %1369 = vmatmul.f32.gmra.mxu0 %v1348
        %v1370 = vpop.f32.mrf.mxu0
        %v1371 = vadd.f32 0.0, %v1370
        %1372 = vdwg.mxu0
        %v1373 = vld [vmem:[#allocation5] sm:$0xff]
        %v1374 = vld [vmem:[#allocation5 + $0x8] sm:$0xff]
        %v1375 = vld [vmem:[#allocation5 + $0x10] sm:$0xff]
        %v1376 = vld [vmem:[#allocation5 + $0x18] sm:$0xff]
        %v1377 = vld [vmem:[#allocation5 + $0x20] sm:$0xff]
        %v1378 = vld [vmem:[#allocation5 + $0x28] sm:$0xff]
        %v1379 = vld [vmem:[#allocation5 + $0x30] sm:$0xff]
        %v1380 = vld [vmem:[#allocation5 + $0x38] sm:$0xff]
        %v1381 = vld [vmem:[%s11] sm:$0x3]
        %v1382 = vld [vmem:[#allocation7] sm:$0xf]
        %v1383 = vld [vmem:[#allocation7 + $0x4] sm:$0xf]
        %v1384 = vld [vmem:[#allocation7 + $0x8] sm:$0xf]
        %v1385 = vld [vmem:[#allocation7 + $0xc] sm:$0xf]
        %v1386 = vld [vmem:[#allocation7 + $0x10] sm:$0xf]
        %v1387 = vld [vmem:[#allocation7 + $0x14] sm:$0xf]
        %v1388 = vld [vmem:[#allocation7 + $0x18] sm:$0xf]
        %v1389 = vld [vmem:[#allocation7 + $0x1c] sm:$0xf]
        %v1390 = vld [vmem:[#allocation8] sm:$0x1]
        %v1391 = vpack.c.bf16 %v1371, %v1368
        %v1393 = vperm.slane %v1381, 0
        %v1394 = vperm.slane %v1381, 1
        %v1405 = vunpack.c.l.b16 %v1373
        %v1406 = vunpack.c.h.b16 %v1373
        %v1407 = vunpack.c.l.b16 %v1374
        %v1408 = vunpack.c.h.b16 %v1374
        %v1409 = vunpack.c.l.b16 %v1375
        %v1410 = vunpack.c.h.b16 %v1375
        %v1411 = vunpack.c.l.b16 %v1376
        %v1412 = vunpack.c.h.b16 %v1376
        %v1413 = vunpack.c.l.b16 %v1377
        %v1414 = vunpack.c.h.b16 %v1377
        %v1415 = vunpack.c.l.b16 %v1378
        %v1416 = vunpack.c.h.b16 %v1378
        %v1417 = vunpack.c.l.b16 %v1379
        %v1418 = vunpack.c.h.b16 %v1379
        %v1419 = vunpack.c.l.b16 %v1380
        %v1420 = vunpack.c.h.b16 %v1380
        %v1421 = vpack.c.b16 %v1407, %v1405
        %v1422 = vpack.c.b16 %v1408, %v1406
        %v1423 = vpack.c.b16 %v1411, %v1409
        %v1424 = vpack.c.b16 %v1412, %v1410
        %v1425 = vpack.c.b16 %v1415, %v1413
        %v1426 = vpack.c.b16 %v1416, %v1414
        %v1427 = vpack.c.b16 %v1419, %v1417
        %v1428 = vpack.c.b16 %v1420, %v1418
        %v1438 = vsel %vm1343, %v1391, 0
        %1440 = vmatpush.bf16.msra.mxu0 0
        %1441 = vmatpush.bf16.msra.mxu0 0
        %1442 = vmatpush.bf16.msra.mxu0 0
        %1443 = vmatpush.bf16.msra.mxu0 0
        %1444 = vmatpush.bf16.msra.mxu0 %v1427
        %1445 = vmatpush.bf16.msra.mxu0 %v1425
        %1446 = vmatpush.bf16.msra.mxu0 %v1423
        %1447 = vmatpush.bf16.msra.mxu0 %v1421
        %1448 = vmatmul.bf16.gmra.mxu0 %v1438
        %v1449 = vpop.f32.mrf.mxu0
        %v1450 = vadd.f32 %v1393, %v1449
        %v1451 = vpop.f32.mrf.mxu0
        %v1452 = vadd.f32 %v1393, %v1451
        %1453 = vdwg.mxu0
        %1454 = vmatpush.bf16.msra.mxu0 0
        %1455 = vmatpush.bf16.msra.mxu0 0
        %1456 = vmatpush.bf16.msra.mxu0 0
        %1457 = vmatpush.bf16.msra.mxu0 0
        %1458 = vmatpush.bf16.msra.mxu0 %v1428
        %1459 = vmatpush.bf16.msra.mxu0 %v1426
        %1460 = vmatpush.bf16.msra.mxu0 %v1424
        %1461 = vmatpush.bf16.msra.mxu0 %v1422
        %1462 = vmatmul.bf16.gmra.mxu0 %v1438
        %v1463 = vpop.f32.mrf.mxu0
        %v1464 = vadd.f32 %v1394, %v1463
        %v1465 = vpop.f32.mrf.mxu0
        %v1466 = vadd.f32 %v1394, %v1465
        %1467 = vdwg.mxu0
        %v1468 = vpack.c.bf16 %v1450, %v1450
        %v1469 = vpack.c.bf16 %v1452, %v1452
        %v1470 = vpack.c.bf16 %v1464, %v1464
        %v1471 = vpack.c.bf16 %v1466, %v1466
        %v1474 = vunpack.c.l.b16 %v1468
        %v1475 = vunpack.c.l.b16 %v1469
        %v1476 = vpack.c.b16 %v1475, %v1474
        %1477 = vrot.lane.b32.xlu0 %v1476, 64
        %v1478 = vpop.permute.xlu0 %1477
        %v1480 = vsel %vm1303, %v1476, 0
        %v1483 = vsel %vm1303, %v1478, 0
        %1485 = vmatpush.bf16.xpose.msra.mxu0 0
        %1486 = vmatpush.bf16.xpose.msra.mxu0 0
        %1487 = vmatpush.bf16.xpose.msra.mxu0 0
        %1488 = vmatpush.bf16.xpose.msra.mxu0 0
        %1489 = vmatpush.bf16.xpose.msra.mxu0 0
        %1490 = vmatpush.bf16.xpose.msra.mxu0 0
        %1491 = vmatpush.bf16.xpose.msra.mxu0 0
        %1492 = vmatpush.bf16.xpose.msra.mxu0 %v1483
        %1493 = vmatmul.bf16.gmra.mxu0 %v1480
        %v1494 = vpop.f32.mrf.mxu0
        %v1495 = vadd.f32 0.0, %v1494
        %v1496 = vpop.f32.mrf.mxu0
        %v1497 = vadd.f32 0.0, %v1496
        %1498 = vdwg.mxu0
        %vm1499 = vcmask 130048
        %v1500 = vsel %vm1499, %v1495, -inf
        %1501 = vmax.xlane.f32.xlu0 %v1500
        %v1502 = vpop.xlane.xlu0 %1501
        %v1503 = vsel %vm1499, %v1497, -inf
        %1504 = vmax.xlane.f32.xlu0 %v1503
        %v1505 = vpop.xlane.xlu0 %1504
        %v1506 = vsub.f32 %v1495, %v1502
        %v1507 = vsub.f32 %v1497, %v1505
        %v1508 = vmul.f32 %v1506, 1.442695
        %v1509 = vpow.pop %v1508
        %v1510 = vmul.f32 %v1507, 1.442695
        %v1511 = vpow.pop %v1510
        %v1512 = vsel %vm1499, %v1509, 0.0
        %1513 = vadd.xlane.f32.xlu0 %v1512
        %v1514 = vpop.xlane.xlu0 %1513
        %v1515 = vsel %vm1499, %v1511, 0.0
        %1516 = vadd.xlane.f32.xlu0 %v1515
        %v1517 = vpop.xlane.xlu0 %1516
        %v1518 = vpack.c.bf16 %v1511, %v1509
        %v1521 = vunpack.c.l.b16 %v1470
        %v1522 = vunpack.c.l.b16 %v1471
        %v1523 = vpack.c.b16 %v1522, %v1521
        %v1526 = vsel %vm1499, %v1518, 0
        %1528 = vmatpush.bf16.msra.mxu0 0
        %1529 = vmatpush.bf16.msra.mxu0 0
        %1530 = vmatpush.bf16.msra.mxu0 0
        %1531 = vmatpush.bf16.msra.mxu0 0
        %1532 = vmatpush.bf16.msra.mxu0 0
        %1533 = vmatpush.bf16.msra.mxu0 0
        %1534 = vmatpush.bf16.msra.mxu0 0
        %1535 = vmatpush.bf16.msra.mxu0 %v1523
        %1536 = vmatmul.bf16.gmra.mxu0 %v1526
        %v1537 = vpop.f32.mrf.mxu0
        %v1538 = vadd.f32 0.0, %v1537
        %v1539 = vpop.f32.mrf.mxu0
        %v1540 = vadd.f32 0.0, %v1539
        %1541 = vdwg.mxu0
        %v1542 = vrcp.pop %v1514
        %v1543 = vrcp.pop %v1517
        %v1544 = vmul.f32 %v1538, %v1542
        %v1545 = vmul.f32 %v1540, %v1543
        %v1546 = vpack.c.bf16 %v1545, %v1544
        %1547 = vrot.lane.b32.xlu0 %v1476, 120
        %v1548 = vpop.permute.xlu0 %1547
        %1549 = vrot.lane.b32.xlu0 %v1476, 56
        %v1550 = vpop.permute.xlu0 %1549
        %v1552 = vsel %vm1303, %v1548, 0
        %v1555 = vsel %vm1303, %v1550, 0
        %1557 = vmatpush.bf16.xpose.msra.mxu0 0
        %1558 = vmatpush.bf16.xpose.msra.mxu0 0
        %1559 = vmatpush.bf16.xpose.msra.mxu0 0
        %1560 = vmatpush.bf16.xpose.msra.mxu0 0
        %1561 = vmatpush.bf16.xpose.msra.mxu0 0
        %1562 = vmatpush.bf16.xpose.msra.mxu0 0
        %1563 = vmatpush.bf16.xpose.msra.mxu0 0
        %1564 = vmatpush.bf16.xpose.msra.mxu0 %v1555
        %1565 = vmatmul.bf16.gmra.mxu0 %v1552
        %v1566 = vpop.f32.mrf.mxu0
        %v1567 = vadd.f32 0.0, %v1566
        %v1568 = vpop.f32.mrf.mxu0
        %v1569 = vadd.f32 0.0, %v1568
        %1570 = vdwg.mxu0
        %v1571 = vsel %vm1499, %v1567, -inf
        %1572 = vmax.xlane.f32.xlu0 %v1571
        %v1573 = vpop.xlane.xlu0 %1572
        %v1574 = vsel %vm1499, %v1569, -inf
        %1575 = vmax.xlane.f32.xlu0 %v1574
        %v1576 = vpop.xlane.xlu0 %1575
        %v1577 = vsub.f32 %v1567, %v1573
        %v1578 = vsub.f32 %v1569, %v1576
        %v1579 = vmul.f32 %v1577, 1.442695
        %v1580 = vpow.pop %v1579
        %v1581 = vmul.f32 %v1578, 1.442695
        %v1582 = vpow.pop %v1581
        %v1583 = vsel %vm1499, %v1580, 0.0
        %1584 = vadd.xlane.f32.xlu0 %v1583
        %v1585 = vpop.xlane.xlu0 %1584
        %v1586 = vsel %vm1499, %v1582, 0.0
        %1587 = vadd.xlane.f32.xlu0 %v1586
        %v1588 = vpop.xlane.xlu0 %1587
        %v1589 = vpack.c.bf16 %v1582, %v1580
        %1590 = vrot.lane.b32.xlu0 %v1523, 120
        %v1591 = vpop.permute.xlu0 %1590
        %v1594 = vsel %vm1499, %v1589, 0
        %1596 = vmatpush.bf16.msra.mxu0 0
        %1597 = vmatpush.bf16.msra.mxu0 0
        %1598 = vmatpush.bf16.msra.mxu0 0
        %1599 = vmatpush.bf16.msra.mxu0 0
        %1600 = vmatpush.bf16.msra.mxu0 0
        %1601 = vmatpush.bf16.msra.mxu0 0
        %1602 = vmatpush.bf16.msra.mxu0 0
        %1603 = vmatpush.bf16.msra.mxu0 %v1591
        %1604 = vmatmul.bf16.gmra.mxu0 %v1594
        %v1605 = vpop.f32.mrf.mxu0
        %v1606 = vadd.f32 0.0, %v1605
        %v1607 = vpop.f32.mrf.mxu0
        %v1608 = vadd.f32 0.0, %v1607
        %1609 = vdwg.mxu0
        %v1610 = vrcp.pop %v1585
        %v1611 = vrcp.pop %v1588
        %v1612 = vmul.f32 %v1606, %v1610
        %v1613 = vmul.f32 %v1608, %v1611
        %v1614 = vpack.c.bf16 %v1613, %v1612
        %v1616 = vsel %vm1303, %v1614, 0
        %vm1618 = vcmask 1043456
        %v1620 = vsel %vm1618, %v1383, 0
        %1622 = vmatpush.bf16.msra.mxu0 0
        %1623 = vmatpush.bf16.msra.mxu0 0
        %1624 = vmatpush.bf16.msra.mxu0 0
        %1625 = vmatpush.bf16.msra.mxu0 0
        %1626 = vmatpush.bf16.msra.mxu0 0
        %1627 = vmatpush.bf16.msra.mxu0 0
        %1628 = vmatpush.bf16.msra.mxu0 0
        %1629 = vmatpush.bf16.msra.mxu0 %v1620
        %1630 = vmatmul.bf16.gmra.mxu0 %v1616
        %v1631 = vpop.f32.mrf.mxu0
        %v1632 = vadd.f32 0.0, %v1631
        %v1633 = vpop.f32.mrf.mxu0
        %v1634 = vadd.f32 0.0, %v1633
        %1635 = vdwg.mxu0
        %v1637 = vsel %vm1303, %v1546, 0
        %v1640 = vsel %vm1618, %v1382, 0
        %1642 = vmatpush.bf16.msra.mxu0 0
        %1643 = vmatpush.bf16.msra.mxu0 0
        %1644 = vmatpush.bf16.msra.mxu0 0
        %1645 = vmatpush.bf16.msra.mxu0 0
        %1646 = vmatpush.bf16.msra.mxu0 0
        %1647 = vmatpush.bf16.msra.mxu0 0
        %1648 = vmatpush.bf16.msra.mxu0 0
        %1649 = vmatpush.bf16.msra.mxu0 %v1640
        %1650 = vmatmul.bf16.gmra.mxu0 %v1637
        %v1651 = vpop.f32.mrf.mxu0
        %v1652 = vadd.f32 %v1632, %v1651
        %v1653 = vpop.f32.mrf.mxu0
        %v1654 = vadd.f32 %v1634, %v1653
        %1655 = vdwg.mxu0
        %1656 = vrot.lane.b32.xlu0 %v1476, 112
        %v1657 = vpop.permute.xlu0 %1656
        %1658 = vrot.lane.b32.xlu0 %v1476, 48
        %v1659 = vpop.permute.xlu0 %1658
        %v1661 = vsel %vm1303, %v1657, 0
        %v1664 = vsel %vm1303, %v1659, 0
        %1666 = vmatpush.bf16.xpose.msra.mxu0 0
        %1667 = vmatpush.bf16.xpose.msra.mxu0 0
        %1668 = vmatpush.bf16.xpose.msra.mxu0 0
        %1669 = vmatpush.bf16.xpose.msra.mxu0 0
        %1670 = vmatpush.bf16.xpose.msra.mxu0 0
        %1671 = vmatpush.bf16.xpose.msra.mxu0 0
        %1672 = vmatpush.bf16.xpose.msra.mxu0 0
        %1673 = vmatpush.bf16.xpose.msra.mxu0 %v1664
        %1674 = vmatmul.bf16.gmra.mxu0 %v1661
        %v1675 = vpop.f32.mrf.mxu0
        %v1676 = vadd.f32 0.0, %v1675
        %v1677 = vpop.f32.mrf.mxu0
        %v1678 = vadd.f32 0.0, %v1677
        %1679 = vdwg.mxu0
        %v1680 = vsel %vm1499, %v1676, -inf
        %1681 = vmax.xlane.f32.xlu0 %v1680
        %v1682 = vpop.xlane.xlu0 %1681
        %v1683 = vsel %vm1499, %v1678, -inf
        %1684 = vmax.xlane.f32.xlu0 %v1683
        %v1685 = vpop.xlane.xlu0 %1684
        %v1686 = vsub.f32 %v1676, %v1682
        %v1687 = vsub.f32 %v1678, %v1685
        %v1688 = vmul.f32 %v1686, 1.442695
        %v1689 = vpow.pop %v1688
        %v1690 = vmul.f32 %v1687, 1.442695
        %v1691 = vpow.pop %v1690
        %v1692 = vsel %vm1499, %v1689, 0.0
        %1693 = vadd.xlane.f32.xlu0 %v1692
        %v1694 = vpop.xlane.xlu0 %1693
        %v1695 = vsel %vm1499, %v1691, 0.0
        %1696 = vadd.xlane.f32.xlu0 %v1695
        %v1697 = vpop.xlane.xlu0 %1696
        %v1698 = vpack.c.bf16 %v1691, %v1689
        %1699 = vrot.lane.b32.xlu0 %v1523, 112
        %v1700 = vpop.permute.xlu0 %1699
        %v1703 = vsel %vm1499, %v1698, 0
        %1705 = vmatpush.bf16.msra.mxu0 0
        %1706 = vmatpush.bf16.msra.mxu0 0
        %1707 = vmatpush.bf16.msra.mxu0 0
        %1708 = vmatpush.bf16.msra.mxu0 0
        %1709 = vmatpush.bf16.msra.mxu0 0
        %1710 = vmatpush.bf16.msra.mxu0 0
        %1711 = vmatpush.bf16.msra.mxu0 0
        %1712 = vmatpush.bf16.msra.mxu0 %v1700
        %1713 = vmatmul.bf16.gmra.mxu0 %v1703
        %v1714 = vpop.f32.mrf.mxu0
        %v1715 = vadd.f32 0.0, %v1714
        %v1716 = vpop.f32.mrf.mxu0
        %v1717 = vadd.f32 0.0, %v1716
        %1718 = vdwg.mxu0
        %v1719 = vrcp.pop %v1694
        %v1720 = vrcp.pop %v1697
        %v1721 = vmul.f32 %v1715, %v1719
        %v1722 = vmul.f32 %v1717, %v1720
        %v1723 = vpack.c.bf16 %v1722, %v1721
        %v1725 = vsel %vm1303, %v1723, 0
        %v1728 = vsel %vm1618, %v1384, 0
        %1730 = vmatpush.bf16.msra.mxu0 0
        %1731 = vmatpush.bf16.msra.mxu0 0
        %1732 = vmatpush.bf16.msra.mxu0 0
        %1733 = vmatpush.bf16.msra.mxu0 0
        %1734 = vmatpush.bf16.msra.mxu0 0
        %1735 = vmatpush.bf16.msra.mxu0 0
        %1736 = vmatpush.bf16.msra.mxu0 0
        %1737 = vmatpush.bf16.msra.mxu0 %v1728
        %1738 = vmatmul.bf16.gmra.mxu0 %v1725
        %v1739 = vpop.f32.mrf.mxu0
        %v1740 = vadd.f32 0.0, %v1739
        %v1741 = vpop.f32.mrf.mxu0
        %v1742 = vadd.f32 0.0, %v1741
        %1743 = vdwg.mxu0
        %v1744 = vadd.f32 %v1652, %v1740
        %v1745 = vadd.f32 %v1654, %v1742
        %1746 = vrot.lane.b32.xlu0 %v1476, 104
        %v1747 = vpop.permute.xlu0 %1746
        %1748 = vrot.lane.b32.xlu0 %v1476, 40
        %v1749 = vpop.permute.xlu0 %1748
        %v1751 = vsel %vm1303, %v1747, 0
        %v1754 = vsel %vm1303, %v1749, 0
        %1756 = vmatpush.bf16.xpose.msra.mxu0 0
        %1757 = vmatpush.bf16.xpose.msra.mxu0 0
        %1758 = vmatpush.bf16.xpose.msra.mxu0 0
        %1759 = vmatpush.bf16.xpose.msra.mxu0 0
        %1760 = vmatpush.bf16.xpose.msra.mxu0 0
        %1761 = vmatpush.bf16.xpose.msra.mxu0 0
        %1762 = vmatpush.bf16.xpose.msra.mxu0 0
        %1763 = vmatpush.bf16.xpose.msra.mxu0 %v1754
        %1764 = vmatmul.bf16.gmra.mxu0 %v1751
        %v1765 = vpop.f32.mrf.mxu0
        %v1766 = vadd.f32 0.0, %v1765
        %v1767 = vpop.f32.mrf.mxu0
        %v1768 = vadd.f32 0.0, %v1767
        %1769 = vdwg.mxu0
        %v1770 = vsel %vm1499, %v1766, -inf
        %1771 = vmax.xlane.f32.xlu0 %v1770
        %v1772 = vpop.xlane.xlu0 %1771
        %v1773 = vsel %vm1499, %v1768, -inf
        %1774 = vmax.xlane.f32.xlu0 %v1773
        %v1775 = vpop.xlane.xlu0 %1774
        %v1776 = vsub.f32 %v1766, %v1772
        %v1777 = vsub.f32 %v1768, %v1775
        %v1778 = vmul.f32 %v1776, 1.442695
        %v1779 = vpow.pop %v1778
        %v1780 = vmul.f32 %v1777, 1.442695
        %v1781 = vpow.pop %v1780
        %v1782 = vsel %vm1499, %v1779, 0.0
        %1783 = vadd.xlane.f32.xlu0 %v1782
        %v1784 = vpop.xlane.xlu0 %1783
        %v1785 = vsel %vm1499, %v1781, 0.0
        %1786 = vadd.xlane.f32.xlu0 %v1785
        %v1787 = vpop.xlane.xlu0 %1786
        %v1788 = vpack.c.bf16 %v1781, %v1779
        %1789 = vrot.lane.b32.xlu0 %v1523, 104
        %v1790 = vpop.permute.xlu0 %1789
        %v1793 = vsel %vm1499, %v1788, 0
        %1795 = vmatpush.bf16.msra.mxu0 0
        %1796 = vmatpush.bf16.msra.mxu0 0
        %1797 = vmatpush.bf16.msra.mxu0 0
        %1798 = vmatpush.bf16.msra.mxu0 0
        %1799 = vmatpush.bf16.msra.mxu0 0
        %1800 = vmatpush.bf16.msra.mxu0 0
        %1801 = vmatpush.bf16.msra.mxu0 0
        %1802 = vmatpush.bf16.msra.mxu0 %v1790
        %1803 = vmatmul.bf16.gmra.mxu0 %v1793
        %v1804 = vpop.f32.mrf.mxu0
        %v1805 = vadd.f32 0.0, %v1804
        %v1806 = vpop.f32.mrf.mxu0
        %v1807 = vadd.f32 0.0, %v1806
        %1808 = vdwg.mxu0
        %v1809 = vrcp.pop %v1784
        %v1810 = vrcp.pop %v1787
        %v1811 = vmul.f32 %v1805, %v1809
        %v1812 = vmul.f32 %v1807, %v1810
        %v1813 = vpack.c.bf16 %v1812, %v1811
        %v1815 = vsel %vm1303, %v1813, 0
        %v1818 = vsel %vm1618, %v1385, 0
        %1820 = vmatpush.bf16.msra.mxu0 0
        %1821 = vmatpush.bf16.msra.mxu0 0
        %1822 = vmatpush.bf16.msra.mxu0 0
        %1823 = vmatpush.bf16.msra.mxu0 0
        %1824 = vmatpush.bf16.msra.mxu0 0
        %1825 = vmatpush.bf16.msra.mxu0 0
        %1826 = vmatpush.bf16.msra.mxu0 0
        %1827 = vmatpush.bf16.msra.mxu0 %v1818
        %1828 = vmatmul.bf16.gmra.mxu0 %v1815
        %v1829 = vpop.f32.mrf.mxu0
        %v1830 = vadd.f32 0.0, %v1829
        %v1831 = vpop.f32.mrf.mxu0
        %v1832 = vadd.f32 0.0, %v1831
        %1833 = vdwg.mxu0
        %v1834 = vadd.f32 %v1744, %v1830
        %v1835 = vadd.f32 %v1745, %v1832
        %1836 = vrot.lane.b32.xlu0 %v1476, 96
        %v1837 = vpop.permute.xlu0 %1836
        %1838 = vrot.lane.b32.xlu0 %v1476, 32
        %v1839 = vpop.permute.xlu0 %1838
        %v1841 = vsel %vm1303, %v1837, 0
        %v1844 = vsel %vm1303, %v1839, 0
        %1846 = vmatpush.bf16.xpose.msra.mxu0 0
        %1847 = vmatpush.bf16.xpose.msra.mxu0 0
        %1848 = vmatpush.bf16.xpose.msra.mxu0 0
        %1849 = vmatpush.bf16.xpose.msra.mxu0 0
        %1850 = vmatpush.bf16.xpose.msra.mxu0 0
        %1851 = vmatpush.bf16.xpose.msra.mxu0 0
        %1852 = vmatpush.bf16.xpose.msra.mxu0 0
        %1853 = vmatpush.bf16.xpose.msra.mxu0 %v1844
        %1854 = vmatmul.bf16.gmra.mxu0 %v1841
        %v1855 = vpop.f32.mrf.mxu0
        %v1856 = vadd.f32 0.0, %v1855
        %v1857 = vpop.f32.mrf.mxu0
        %v1858 = vadd.f32 0.0, %v1857
        %1859 = vdwg.mxu0
        %v1860 = vsel %vm1499, %v1856, -inf
        %1861 = vmax.xlane.f32.xlu0 %v1860
        %v1862 = vpop.xlane.xlu0 %1861
        %v1863 = vsel %vm1499, %v1858, -inf
        %1864 = vmax.xlane.f32.xlu0 %v1863
        %v1865 = vpop.xlane.xlu0 %1864
        %v1866 = vsub.f32 %v1856, %v1862
        %v1867 = vsub.f32 %v1858, %v1865
        %v1868 = vmul.f32 %v1866, 1.442695
        %v1869 = vpow.pop %v1868
        %v1870 = vmul.f32 %v1867, 1.442695
        %v1871 = vpow.pop %v1870
        %v1872 = vsel %vm1499, %v1869, 0.0
        %1873 = vadd.xlane.f32.xlu0 %v1872
        %v1874 = vpop.xlane.xlu0 %1873
        %v1875 = vsel %vm1499, %v1871, 0.0
        %1876 = vadd.xlane.f32.xlu0 %v1875
        %v1877 = vpop.xlane.xlu0 %1876
        %v1878 = vpack.c.bf16 %v1871, %v1869
        %1879 = vrot.lane.b32.xlu0 %v1523, 96
        %v1880 = vpop.permute.xlu0 %1879
        %v1883 = vsel %vm1499, %v1878, 0
        %1885 = vmatpush.bf16.msra.mxu0 0
        %1886 = vmatpush.bf16.msra.mxu0 0
        %1887 = vmatpush.bf16.msra.mxu0 0
        %1888 = vmatpush.bf16.msra.mxu0 0
        %1889 = vmatpush.bf16.msra.mxu0 0
        %1890 = vmatpush.bf16.msra.mxu0 0
        %1891 = vmatpush.bf16.msra.mxu0 0
        %1892 = vmatpush.bf16.msra.mxu0 %v1880
        %1893 = vmatmul.bf16.gmra.mxu0 %v1883
        %v1894 = vpop.f32.mrf.mxu0
        %v1895 = vadd.f32 0.0, %v1894
        %v1896 = vpop.f32.mrf.mxu0
        %v1897 = vadd.f32 0.0, %v1896
        %1898 = vdwg.mxu0
        %v1899 = vrcp.pop %v1874
        %v1900 = vrcp.pop %v1877
        %v1901 = vmul.f32 %v1895, %v1899
        %v1902 = vmul.f32 %v1897, %v1900
        %v1903 = vpack.c.bf16 %v1902, %v1901
        %v1905 = vsel %vm1303, %v1903, 0
        %v1908 = vsel %vm1618, %v1386, 0
        %1910 = vmatpush.bf16.msra.mxu0 0
        %1911 = vmatpush.bf16.msra.mxu0 0
        %1912 = vmatpush.bf16.msra.mxu0 0
        %1913 = vmatpush.bf16.msra.mxu0 0
        %1914 = vmatpush.bf16.msra.mxu0 0
        %1915 = vmatpush.bf16.msra.mxu0 0
        %1916 = vmatpush.bf16.msra.mxu0 0
        %1917 = vmatpush.bf16.msra.mxu0 %v1908
        %1918 = vmatmul.bf16.gmra.mxu0 %v1905
        %v1919 = vpop.f32.mrf.mxu0
        %v1920 = vadd.f32 0.0, %v1919
        %v1921 = vpop.f32.mrf.mxu0
        %v1922 = vadd.f32 0.0, %v1921
        %1923 = vdwg.mxu0
        %v1924 = vadd.f32 %v1834, %v1920
        %v1925 = vadd.f32 %v1835, %v1922
        %1926 = vrot.lane.b32.xlu0 %v1476, 88
        %v1927 = vpop.permute.xlu0 %1926
        %1928 = vrot.lane.b32.xlu0 %v1476, 24
        %v1929 = vpop.permute.xlu0 %1928
        %v1931 = vsel %vm1303, %v1927, 0
        %v1934 = vsel %vm1303, %v1929, 0
        %1936 = vmatpush.bf16.xpose.msra.mxu0 0
        %1937 = vmatpush.bf16.xpose.msra.mxu0 0
        %1938 = vmatpush.bf16.xpose.msra.mxu0 0
        %1939 = vmatpush.bf16.xpose.msra.mxu0 0
        %1940 = vmatpush.bf16.xpose.msra.mxu0 0
        %1941 = vmatpush.bf16.xpose.msra.mxu0 0
        %1942 = vmatpush.bf16.xpose.msra.mxu0 0
        %1943 = vmatpush.bf16.xpose.msra.mxu0 %v1934
        %1944 = vmatmul.bf16.gmra.mxu0 %v1931
        %v1945 = vpop.f32.mrf.mxu0
        %v1946 = vadd.f32 0.0, %v1945
        %v1947 = vpop.f32.mrf.mxu0
        %v1948 = vadd.f32 0.0, %v1947
        %1949 = vdwg.mxu0
        %v1950 = vsel %vm1499, %v1946, -inf
        %1951 = vmax.xlane.f32.xlu0 %v1950
        %v1952 = vpop.xlane.xlu0 %1951
        %v1953 = vsel %vm1499, %v1948, -inf
        %1954 = vmax.xlane.f32.xlu0 %v1953
        %v1955 = vpop.xlane.xlu0 %1954
        %v1956 = vsub.f32 %v1946, %v1952
        %v1957 = vsub.f32 %v1948, %v1955
        %v1958 = vmul.f32 %v1956, 1.442695
        %v1959 = vpow.pop %v1958
        %v1960 = vmul.f32 %v1957, 1.442695
        %v1961 = vpow.pop %v1960
        %v1962 = vsel %vm1499, %v1959, 0.0
        %1963 = vadd.xlane.f32.xlu0 %v1962
        %v1964 = vpop.xlane.xlu0 %1963
        %v1965 = vsel %vm1499, %v1961, 0.0
        %1966 = vadd.xlane.f32.xlu0 %v1965
        %v1967 = vpop.xlane.xlu0 %1966
        %v1968 = vpack.c.bf16 %v1961, %v1959
        %1969 = vrot.lane.b32.xlu0 %v1523, 88
        %v1970 = vpop.permute.xlu0 %1969
        %v1973 = vsel %vm1499, %v1968, 0
        %1975 = vmatpush.bf16.msra.mxu0 0
        %1976 = vmatpush.bf16.msra.mxu0 0
        %1977 = vmatpush.bf16.msra.mxu0 0
        %1978 = vmatpush.bf16.msra.mxu0 0
        %1979 = vmatpush.bf16.msra.mxu0 0
        %1980 = vmatpush.bf16.msra.mxu0 0
        %1981 = vmatpush.bf16.msra.mxu0 0
        %1982 = vmatpush.bf16.msra.mxu0 %v1970
        %1983 = vmatmul.bf16.gmra.mxu0 %v1973
        %v1984 = vpop.f32.mrf.mxu0
        %v1985 = vadd.f32 0.0, %v1984
        %v1986 = vpop.f32.mrf.mxu0
        %v1987 = vadd.f32 0.0, %v1986
        %1988 = vdwg.mxu0
        %v1989 = vrcp.pop %v1964
        %v1990 = vrcp.pop %v1967
        %v1991 = vmul.f32 %v1985, %v1989
        %v1992 = vmul.f32 %v1987, %v1990
        %v1993 = vpack.c.bf16 %v1992, %v1991
        %v1995 = vsel %vm1303, %v1993, 0
        %v1998 = vsel %vm1618, %v1387, 0
        %2000 = vmatpush.bf16.msra.mxu0 0
        %2001 = vmatpush.bf16.msra.mxu0 0
        %2002 = vmatpush.bf16.msra.mxu0 0
        %2003 = vmatpush.bf16.msra.mxu0 0
        %2004 = vmatpush.bf16.msra.mxu0 0
        %2005 = vmatpush.bf16.msra.mxu0 0
        %2006 = vmatpush.bf16.msra.mxu0 0
        %2007 = vmatpush.bf16.msra.mxu0 %v1998
        %2008 = vmatmul.bf16.gmra.mxu0 %v1995
        %v2009 = vpop.f32.mrf.mxu0
        %v2010 = vadd.f32 0.0, %v2009
        %v2011 = vpop.f32.mrf.mxu0
        %v2012 = vadd.f32 0.0, %v2011
        %2013 = vdwg.mxu0
        %v2014 = vadd.f32 %v1924, %v2010
        %v2015 = vadd.f32 %v1925, %v2012
        %2016 = vrot.lane.b32.xlu0 %v1476, 80
        %v2017 = vpop.permute.xlu0 %2016
        %2018 = vrot.lane.b32.xlu0 %v1476, 16
        %v2019 = vpop.permute.xlu0 %2018
        %v2021 = vsel %vm1303, %v2017, 0
        %v2024 = vsel %vm1303, %v2019, 0
        %2026 = vmatpush.bf16.xpose.msra.mxu0 0
        %2027 = vmatpush.bf16.xpose.msra.mxu0 0
        %2028 = vmatpush.bf16.xpose.msra.mxu0 0
        %2029 = vmatpush.bf16.xpose.msra.mxu0 0
        %2030 = vmatpush.bf16.xpose.msra.mxu0 0
        %2031 = vmatpush.bf16.xpose.msra.mxu0 0
        %2032 = vmatpush.bf16.xpose.msra.mxu0 0
        %2033 = vmatpush.bf16.xpose.msra.mxu0 %v2024
        %2034 = vmatmul.bf16.gmra.mxu0 %v2021
        %v2035 = vpop.f32.mrf.mxu0
        %v2036 = vadd.f32 0.0, %v2035
        %v2037 = vpop.f32.mrf.mxu0
        %v2038 = vadd.f32 0.0, %v2037
        %2039 = vdwg.mxu0
        %v2040 = vsel %vm1499, %v2036, -inf
        %2041 = vmax.xlane.f32.xlu0 %v2040
        %v2042 = vpop.xlane.xlu0 %2041
        %v2043 = vsel %vm1499, %v2038, -inf
        %2044 = vmax.xlane.f32.xlu0 %v2043
        %v2045 = vpop.xlane.xlu0 %2044
        %v2046 = vsub.f32 %v2036, %v2042
        %v2047 = vsub.f32 %v2038, %v2045
        %v2048 = vmul.f32 %v2046, 1.442695
        %v2049 = vpow.pop %v2048
        %v2050 = vmul.f32 %v2047, 1.442695
        %v2051 = vpow.pop %v2050
        %v2052 = vsel %vm1499, %v2049, 0.0
        %2053 = vadd.xlane.f32.xlu0 %v2052
        %v2054 = vpop.xlane.xlu0 %2053
        %v2055 = vsel %vm1499, %v2051, 0.0
        %2056 = vadd.xlane.f32.xlu0 %v2055
        %v2057 = vpop.xlane.xlu0 %2056
        %v2058 = vpack.c.bf16 %v2051, %v2049
        %2059 = vrot.lane.b32.xlu0 %v1523, 80
        %v2060 = vpop.permute.xlu0 %2059
        %v2063 = vsel %vm1499, %v2058, 0
        %2065 = vmatpush.bf16.msra.mxu0 0
        %2066 = vmatpush.bf16.msra.mxu0 0
        %2067 = vmatpush.bf16.msra.mxu0 0
        %2068 = vmatpush.bf16.msra.mxu0 0
        %2069 = vmatpush.bf16.msra.mxu0 0
        %2070 = vmatpush.bf16.msra.mxu0 0
        %2071 = vmatpush.bf16.msra.mxu0 0
        %2072 = vmatpush.bf16.msra.mxu0 %v2060
        %2073 = vmatmul.bf16.gmra.mxu0 %v2063
        %v2074 = vpop.f32.mrf.mxu0
        %v2075 = vadd.f32 0.0, %v2074
        %v2076 = vpop.f32.mrf.mxu0
        %v2077 = vadd.f32 0.0, %v2076
        %2078 = vdwg.mxu0
        %v2079 = vrcp.pop %v2054
        %v2080 = vrcp.pop %v2057
        %v2081 = vmul.f32 %v2075, %v2079
        %v2082 = vmul.f32 %v2077, %v2080
        %v2083 = vpack.c.bf16 %v2082, %v2081
        %v2085 = vsel %vm1303, %v2083, 0
        %v2088 = vsel %vm1618, %v1388, 0
        %2090 = vmatpush.bf16.msra.mxu0 0
        %2091 = vmatpush.bf16.msra.mxu0 0
        %2092 = vmatpush.bf16.msra.mxu0 0
        %2093 = vmatpush.bf16.msra.mxu0 0
        %2094 = vmatpush.bf16.msra.mxu0 0
        %2095 = vmatpush.bf16.msra.mxu0 0
        %2096 = vmatpush.bf16.msra.mxu0 0
        %2097 = vmatpush.bf16.msra.mxu0 %v2088
        %2098 = vmatmul.bf16.gmra.mxu0 %v2085
        %v2099 = vpop.f32.mrf.mxu0
        %v2100 = vadd.f32 0.0, %v2099
        %v2101 = vpop.f32.mrf.mxu0
        %v2102 = vadd.f32 0.0, %v2101
        %2103 = vdwg.mxu0
        %v2104 = vadd.f32 %v2014, %v2100
        %v2105 = vadd.f32 %v2015, %v2102
        %2106 = vrot.lane.b32.xlu0 %v1476, 72
        %v2107 = vpop.permute.xlu0 %2106
        %2108 = vrot.lane.b32.xlu0 %v1476, 8
        %v2109 = vpop.permute.xlu0 %2108
        %v2111 = vsel %vm1303, %v2107, 0
        %v2114 = vsel %vm1303, %v2109, 0
        %2116 = vmatpush.bf16.xpose.msra.mxu0 0
        %2117 = vmatpush.bf16.xpose.msra.mxu0 0
        %2118 = vmatpush.bf16.xpose.msra.mxu0 0
        %2119 = vmatpush.bf16.xpose.msra.mxu0 0
        %2120 = vmatpush.bf16.xpose.msra.mxu0 0
        %2121 = vmatpush.bf16.xpose.msra.mxu0 0
        %2122 = vmatpush.bf16.xpose.msra.mxu0 0
        %2123 = vmatpush.bf16.xpose.msra.mxu0 %v2114
        %2124 = vmatmul.bf16.gmra.mxu0 %v2111
        %v2125 = vpop.f32.mrf.mxu0
        %v2126 = vadd.f32 0.0, %v2125
        %v2127 = vpop.f32.mrf.mxu0
        %v2128 = vadd.f32 0.0, %v2127
        %2129 = vdwg.mxu0
        %v2130 = vsel %vm1499, %v2126, -inf
        %2131 = vmax.xlane.f32.xlu0 %v2130
        %v2132 = vpop.xlane.xlu0 %2131
        %v2133 = vsel %vm1499, %v2128, -inf
        %2134 = vmax.xlane.f32.xlu0 %v2133
        %v2135 = vpop.xlane.xlu0 %2134
        %v2136 = vsub.f32 %v2126, %v2132
        %v2137 = vsub.f32 %v2128, %v2135
        %v2138 = vmul.f32 %v2136, 1.442695
        %v2139 = vpow.pop %v2138
        %v2140 = vmul.f32 %v2137, 1.442695
        %v2141 = vpow.pop %v2140
        %v2142 = vsel %vm1499, %v2139, 0.0
        %2143 = vadd.xlane.f32.xlu0 %v2142
        %v2144 = vpop.xlane.xlu0 %2143
        %v2145 = vsel %vm1499, %v2141, 0.0
        %2146 = vadd.xlane.f32.xlu0 %v2145
        %v2147 = vpop.xlane.xlu0 %2146
        %v2148 = vpack.c.bf16 %v2141, %v2139
        %2149 = vrot.lane.b32.xlu0 %v1523, 72
        %v2150 = vpop.permute.xlu0 %2149
        %v2153 = vsel %vm1499, %v2148, 0
        %2155 = vmatpush.bf16.msra.mxu0 0
        %2156 = vmatpush.bf16.msra.mxu0 0
        %2157 = vmatpush.bf16.msra.mxu0 0
        %2158 = vmatpush.bf16.msra.mxu0 0
        %2159 = vmatpush.bf16.msra.mxu0 0
        %2160 = vmatpush.bf16.msra.mxu0 0
        %2161 = vmatpush.bf16.msra.mxu0 0
        %2162 = vmatpush.bf16.msra.mxu0 %v2150
        %2163 = vmatmul.bf16.gmra.mxu0 %v2153
        %v2164 = vpop.f32.mrf.mxu0
        %v2165 = vadd.f32 0.0, %v2164
        %v2166 = vpop.f32.mrf.mxu0
        %v2167 = vadd.f32 0.0, %v2166
        %2168 = vdwg.mxu0
        %v2169 = vrcp.pop %v2144
        %v2170 = vrcp.pop %v2147
        %v2171 = vmul.f32 %v2165, %v2169
        %v2172 = vmul.f32 %v2167, %v2170
        %v2173 = vpack.c.bf16 %v2172, %v2171
        %v2175 = vsel %vm1303, %v2173, 0
        %v2178 = vsel %vm1618, %v1389, 0
        %2180 = vmatpush.bf16.msra.mxu0 0
        %2181 = vmatpush.bf16.msra.mxu0 0
        %2182 = vmatpush.bf16.msra.mxu0 0
        %2183 = vmatpush.bf16.msra.mxu0 0
        %2184 = vmatpush.bf16.msra.mxu0 0
        %2185 = vmatpush.bf16.msra.mxu0 0
        %2186 = vmatpush.bf16.msra.mxu0 0
        %2187 = vmatpush.bf16.msra.mxu0 %v2178
        %2188 = vmatmul.bf16.gmra.mxu0 %v2175
        %v2189 = vpop.f32.mrf.mxu0
        %v2190 = vadd.f32 0.0, %v2189
        %v2191 = vpop.f32.mrf.mxu0
        %v2192 = vadd.f32 0.0, %v2191
        %2193 = vdwg.mxu0
        %v2194 = vadd.f32 %v2104, %v2190
        %v2195 = vadd.f32 %v2105, %v2192
        %v2197 = vperm.slane %v1390, 0
        %v2199 = vadd.f32 %v2194, %v2197
        %v2200 = vadd.f32 %v2195, %v2197
        %v2201 = vadd.f32 %v1368, %v2199
        %v2202 = vadd.f32 %v1371, %v2200
        %v2203 = vld [vmem:[#allocation10] sm:$0x1]
        %v2205 = vperm.slane %v2203, 0
        %v2207 = vmul.f32 %v2201, %v2205
        %v2208 = vmul.f32 %v2202, %v2205
        %v2209 = vld [vmem:[#allocation11] sm:$0x1]
        %v2211 = vperm.slane %v2209, 0
        %v2213 = vadd.f32 %v2207, %v2211
        %v2214 = vadd.f32 %v2208, %v2211
        %v2215 = vmax.f32 %v2213, 0.0
        %v2216 = vmax.f32 %v2214, 0.0
        %v2217 = vld [vmem:[#allocation13] sm:$0xff]
        %v2218 = vld [vmem:[#allocation13 + $0x8] sm:$0xff]
        %v2219 = vld [vmem:[#allocation13 + $0x10] sm:$0xff]
        %v2220 = vld [vmem:[#allocation13 + $0x18] sm:$0xff]
        %v2221 = vld [vmem:[#allocation13 + $0x20] sm:$0xff]
        %v2222 = vld [vmem:[#allocation13 + $0x28] sm:$0xff]
        %v2223 = vld [vmem:[#allocation13 + $0x30] sm:$0xff]
        %v2224 = vld [vmem:[#allocation13 + $0x38] sm:$0xff]
        %v2226 = vsel %vm1343, %v2215, 0
        %v2229 = vsel %vm1343, %v2216, 0
        %2231 = vmatpush.msra.mxu0 0.0
        %2232 = vmatpush.msra.mxu0 0.0
        %2233 = vmatpush.msra.mxu0 0.0
        %2234 = vmatpush.msra.mxu0 0.0
        %2235 = vmatpush.msra.mxu0 0.0
        %2236 = vmatpush.msra.mxu0 0.0
        %2237 = vmatpush.msra.mxu0 0.0
        %2238 = vmatpush.msra.mxu0 0.0
        %2239 = vmatpush.msra.mxu0 %v2224
        %2240 = vmatpush.msra.mxu0 %v2223
        %2241 = vmatpush.msra.mxu0 %v2222
        %2242 = vmatpush.msra.mxu0 %v2221
        %2243 = vmatpush.msra.mxu0 %v2220
        %2244 = vmatpush.msra.mxu0 %v2219
        %2245 = vmatpush.msra.mxu0 %v2218
        %2246 = vmatpush.msra.mxu0 %v2217
        %2247 = vmatmul.f32.gmra.mxu0 %v2226
        %v2248 = vpop.f32.mrf.mxu0
        %v2249 = vadd.f32 0.0, %v2248
        %2250 = vmatmul.f32.gmra.mxu0 %v2229
        %v2251 = vpop.f32.mrf.mxu0
        %v2252 = vadd.f32 0.0, %v2251
        %2253 = vdwg.mxu0
        %v2254 = vld [vmem:[#allocation14] sm:$0xff]
        %v2255 = vld [vmem:[#allocation14 + $0x8] sm:$0xff]
        %v2256 = vld [vmem:[#allocation14 + $0x10] sm:$0xff]
        %v2257 = vld [vmem:[#allocation14 + $0x18] sm:$0xff]
        %v2258 = vld [vmem:[#allocation14 + $0x20] sm:$0xff]
        %v2259 = vld [vmem:[#allocation14 + $0x28] sm:$0xff]
        %v2260 = vld [vmem:[#allocation14 + $0x30] sm:$0xff]
        %v2261 = vld [vmem:[#allocation14 + $0x38] sm:$0xff]
        %v2262 = vld [vmem:[#allocation16] sm:$0x3]
        %v2263 = vld [vmem:[#allocation17] sm:$0xf]
        %v2264 = vld [vmem:[#allocation17 + $0x4] sm:$0xf]
        %v2265 = vld [vmem:[#allocation17 + $0x8] sm:$0xf]
        %v2266 = vld [vmem:[#allocation17 + $0xc] sm:$0xf]
        %v2267 = vld [vmem:[#allocation17 + $0x10] sm:$0xf]
        %v2268 = vld [vmem:[#allocation17 + $0x14] sm:$0xf]
        %v2269 = vld [vmem:[#allocation17 + $0x18] sm:$0xf]
        %v2270 = vld [vmem:[#allocation17 + $0x1c] sm:$0xf]
        %v2271 = vld [vmem:[#allocation19] sm:$0x1]
        %v2272 = vpack.c.bf16 %v2252, %v2249
        %v2274 = vperm.slane %v2262, 0
        %v2275 = vperm.slane %v2262, 1
        %v2286 = vunpack.c.l.b16 %v2254
        %v2287 = vunpack.c.h.b16 %v2254
        %v2288 = vunpack.c.l.b16 %v2255
        %v2289 = vunpack.c.h.b16 %v2255
        %v2290 = vunpack.c.l.b16 %v2256
        %v2291 = vunpack.c.h.b16 %v2256
        %v2292 = vunpack.c.l.b16 %v2257
        %v2293 = vunpack.c.h.b16 %v2257
        %v2294 = vunpack.c.l.b16 %v2258
        %v2295 = vunpack.c.h.b16 %v2258
        %v2296 = vunpack.c.l.b16 %v2259
        %v2297 = vunpack.c.h.b16 %v2259
        %v2298 = vunpack.c.l.b16 %v2260
        %v2299 = vunpack.c.h.b16 %v2260
        %v2300 = vunpack.c.l.b16 %v2261
        %v2301 = vunpack.c.h.b16 %v2261
        %v2302 = vpack.c.b16 %v2288, %v2286
        %v2303 = vpack.c.b16 %v2289, %v2287
        %v2304 = vpack.c.b16 %v2292, %v2290
        %v2305 = vpack.c.b16 %v2293, %v2291
        %v2306 = vpack.c.b16 %v2296, %v2294
        %v2307 = vpack.c.b16 %v2297, %v2295
        %v2308 = vpack.c.b16 %v2300, %v2298
        %v2309 = vpack.c.b16 %v2301, %v2299
        %v2319 = vsel %vm1343, %v2272, 0
        %2321 = vmatpush.bf16.msra.mxu0 0
        %2322 = vmatpush.bf16.msra.mxu0 0
        %2323 = vmatpush.bf16.msra.mxu0 0
        %2324 = vmatpush.bf16.msra.mxu0 0
        %2325 = vmatpush.bf16.msra.mxu0 %v2308
        %2326 = vmatpush.bf16.msra.mxu0 %v2306
        %2327 = vmatpush.bf16.msra.mxu0 %v2304
        %2328 = vmatpush.bf16.msra.mxu0 %v2302
        %2329 = vmatmul.bf16.gmra.mxu0 %v2319
        %v2330 = vpop.f32.mrf.mxu0
        %v2331 = vadd.f32 %v2274, %v2330
        %v2332 = vpop.f32.mrf.mxu0
        %v2333 = vadd.f32 %v2274, %v2332
        %2334 = vdwg.mxu0
        %2335 = vmatpush.bf16.msra.mxu0 0
        %2336 = vmatpush.bf16.msra.mxu0 0
        %2337 = vmatpush.bf16.msra.mxu0 0
        %2338 = vmatpush.bf16.msra.mxu0 0
        %2339 = vmatpush.bf16.msra.mxu0 %v2309
        %2340 = vmatpush.bf16.msra.mxu0 %v2307
        %2341 = vmatpush.bf16.msra.mxu0 %v2305
        %2342 = vmatpush.bf16.msra.mxu0 %v2303
        %2343 = vmatmul.bf16.gmra.mxu0 %v2319
        %v2344 = vpop.f32.mrf.mxu0
        %v2345 = vadd.f32 %v2275, %v2344
        %v2346 = vpop.f32.mrf.mxu0
        %v2347 = vadd.f32 %v2275, %v2346
        %2348 = vdwg.mxu0
        %v2349 = vpack.c.bf16 %v2331, %v2331
        %v2350 = vpack.c.bf16 %v2333, %v2333
        %v2351 = vpack.c.bf16 %v2345, %v2345
        %v2352 = vpack.c.bf16 %v2347, %v2347
        %v2355 = vunpack.c.l.b16 %v2349
        %v2356 = vunpack.c.l.b16 %v2350
        %v2357 = vpack.c.b16 %v2356, %v2355
        %2358 = vrot.lane.b32.xlu0 %v2357, 64
        %v2359 = vpop.permute.xlu0 %2358
        %v2361 = vsel %vm1303, %v2357, 0
        %v2364 = vsel %vm1303, %v2359, 0
        %2366 = vmatpush.bf16.xpose.msra.mxu0 0
        %2367 = vmatpush.bf16.xpose.msra.mxu0 0
        %2368 = vmatpush.bf16.xpose.msra.mxu0 0
        %2369 = vmatpush.bf16.xpose.msra.mxu0 0
        %2370 = vmatpush.bf16.xpose.msra.mxu0 0
        %2371 = vmatpush.bf16.xpose.msra.mxu0 0
        %2372 = vmatpush.bf16.xpose.msra.mxu0 0
        %2373 = vmatpush.bf16.xpose.msra.mxu0 %v2364
        %2374 = vmatmul.bf16.gmra.mxu0 %v2361
        %v2375 = vpop.f32.mrf.mxu0
        %v2376 = vadd.f32 0.0, %v2375
        %v2377 = vpop.f32.mrf.mxu0
        %v2378 = vadd.f32 0.0, %v2377
        %2379 = vdwg.mxu0
        %v2380 = vsel %vm1499, %v2376, -inf
        %2381 = vmax.xlane.f32.xlu0 %v2380
        %v2382 = vpop.xlane.xlu0 %2381
        %v2383 = vsel %vm1499, %v2378, -inf
        %2384 = vmax.xlane.f32.xlu0 %v2383
        %v2385 = vpop.xlane.xlu0 %2384
        %v2386 = vsub.f32 %v2376, %v2382
        %v2387 = vsub.f32 %v2378, %v2385
        %v2388 = vmul.f32 %v2386, 1.442695
        %v2389 = vpow.pop %v2388
        %v2390 = vmul.f32 %v2387, 1.442695
        %v2391 = vpow.pop %v2390
        %v2392 = vsel %vm1499, %v2389, 0.0
        %2393 = vadd.xlane.f32.xlu0 %v2392
        %v2394 = vpop.xlane.xlu0 %2393
        %v2395 = vsel %vm1499, %v2391, 0.0
        %2396 = vadd.xlane.f32.xlu0 %v2395
        %v2397 = vpop.xlane.xlu0 %2396
        %v2398 = vpack.c.bf16 %v2391, %v2389
        %v2401 = vunpack.c.l.b16 %v2351
        %v2402 = vunpack.c.l.b16 %v2352
        %v2403 = vpack.c.b16 %v2402, %v2401
        %v2406 = vsel %vm1499, %v2398, 0
        %2408 = vmatpush.bf16.msra.mxu0 0
        %2409 = vmatpush.bf16.msra.mxu0 0
        %2410 = vmatpush.bf16.msra.mxu0 0
        %2411 = vmatpush.bf16.msra.mxu0 0
        %2412 = vmatpush.bf16.msra.mxu0 0
        %2413 = vmatpush.bf16.msra.mxu0 0
        %2414 = vmatpush.bf16.msra.mxu0 0
        %2415 = vmatpush.bf16.msra.mxu0 %v2403
        %2416 = vmatmul.bf16.gmra.mxu0 %v2406
        %v2417 = vpop.f32.mrf.mxu0
        %v2418 = vadd.f32 0.0, %v2417
        %v2419 = vpop.f32.mrf.mxu0
        %v2420 = vadd.f32 0.0, %v2419
        %2421 = vdwg.mxu0
        %v2422 = vrcp.pop %v2394
        %v2423 = vrcp.pop %v2397
        %v2424 = vmul.f32 %v2418, %v2422
        %v2425 = vmul.f32 %v2420, %v2423
        %v2426 = vpack.c.bf16 %v2425, %v2424
        %2427 = vrot.lane.b32.xlu0 %v2357, 120
        %v2428 = vpop.permute.xlu0 %2427
        %2429 = vrot.lane.b32.xlu0 %v2357, 56
        %v2430 = vpop.permute.xlu0 %2429
        %v2432 = vsel %vm1303, %v2428, 0
        %v2435 = vsel %vm1303, %v2430, 0
        %2437 = vmatpush.bf16.xpose.msra.mxu0 0
        %2438 = vmatpush.bf16.xpose.msra.mxu0 0
        %2439 = vmatpush.bf16.xpose.msra.mxu0 0
        %2440 = vmatpush.bf16.xpose.msra.mxu0 0
        %2441 = vmatpush.bf16.xpose.msra.mxu0 0
        %2442 = vmatpush.bf16.xpose.msra.mxu0 0
        %2443 = vmatpush.bf16.xpose.msra.mxu0 0
        %2444 = vmatpush.bf16.xpose.msra.mxu0 %v2435
        %2445 = vmatmul.bf16.gmra.mxu0 %v2432
        %v2446 = vpop.f32.mrf.mxu0
        %v2447 = vadd.f32 0.0, %v2446
        %v2448 = vpop.f32.mrf.mxu0
        %v2449 = vadd.f32 0.0, %v2448
        %2450 = vdwg.mxu0
        %v2451 = vsel %vm1499, %v2447, -inf
        %2452 = vmax.xlane.f32.xlu0 %v2451
        %v2453 = vpop.xlane.xlu0 %2452
        %v2454 = vsel %vm1499, %v2449, -inf
        %2455 = vmax.xlane.f32.xlu0 %v2454
        %v2456 = vpop.xlane.xlu0 %2455
        %v2457 = vsub.f32 %v2447, %v2453
        %v2458 = vsub.f32 %v2449, %v2456
        %v2459 = vmul.f32 %v2457, 1.442695
        %v2460 = vpow.pop %v2459
        %v2461 = vmul.f32 %v2458, 1.442695
        %v2462 = vpow.pop %v2461
        %v2463 = vsel %vm1499, %v2460, 0.0
        %2464 = vadd.xlane.f32.xlu0 %v2463
        %v2465 = vpop.xlane.xlu0 %2464
        %v2466 = vsel %vm1499, %v2462, 0.0
        %2467 = vadd.xlane.f32.xlu0 %v2466
        %v2468 = vpop.xlane.xlu0 %2467
        %v2469 = vpack.c.bf16 %v2462, %v2460
        %2470 = vrot.lane.b32.xlu0 %v2403, 120
        %v2471 = vpop.permute.xlu0 %2470
        %v2474 = vsel %vm1499, %v2469, 0
        %2476 = vmatpush.bf16.msra.mxu0 0
        %2477 = vmatpush.bf16.msra.mxu0 0
        %2478 = vmatpush.bf16.msra.mxu0 0
        %2479 = vmatpush.bf16.msra.mxu0 0
        %2480 = vmatpush.bf16.msra.mxu0 0
        %2481 = vmatpush.bf16.msra.mxu0 0
        %2482 = vmatpush.bf16.msra.mxu0 0
        %2483 = vmatpush.bf16.msra.mxu0 %v2471
        %2484 = vmatmul.bf16.gmra.mxu0 %v2474
        %v2485 = vpop.f32.mrf.mxu0
        %v2486 = vadd.f32 0.0, %v2485
        %v2487 = vpop.f32.mrf.mxu0
        %v2488 = vadd.f32 0.0, %v2487
        %2489 = vdwg.mxu0
        %v2490 = vrcp.pop %v2465
        %v2491 = vrcp.pop %v2468
        %v2492 = vmul.f32 %v2486, %v2490
        %v2493 = vmul.f32 %v2488, %v2491
        %v2494 = vpack.c.bf16 %v2493, %v2492
        %v2496 = vsel %vm1303, %v2494, 0
        %v2499 = vsel %vm1618, %v2264, 0
        %2501 = vmatpush.bf16.msra.mxu0 0
        %2502 = vmatpush.bf16.msra.mxu0 0
        %2503 = vmatpush.bf16.msra.mxu0 0
        %2504 = vmatpush.bf16.msra.mxu0 0
        %2505 = vmatpush.bf16.msra.mxu0 0
        %2506 = vmatpush.bf16.msra.mxu0 0
        %2507 = vmatpush.bf16.msra.mxu0 0
        %2508 = vmatpush.bf16.msra.mxu0 %v2499
        %2509 = vmatmul.bf16.gmra.mxu0 %v2496
        %v2510 = vpop.f32.mrf.mxu0
        %v2511 = vadd.f32 0.0, %v2510
        %v2512 = vpop.f32.mrf.mxu0
        %v2513 = vadd.f32 0.0, %v2512
        %2514 = vdwg.mxu0
        %v2516 = vsel %vm1303, %v2426, 0
        %v2519 = vsel %vm1618, %v2263, 0
        %2521 = vmatpush.bf16.msra.mxu0 0
        %2522 = vmatpush.bf16.msra.mxu0 0
        %2523 = vmatpush.bf16.msra.mxu0 0
        %2524 = vmatpush.bf16.msra.mxu0 0
        %2525 = vmatpush.bf16.msra.mxu0 0
        %2526 = vmatpush.bf16.msra.mxu0 0
        %2527 = vmatpush.bf16.msra.mxu0 0
        %2528 = vmatpush.bf16.msra.mxu0 %v2519
        %2529 = vmatmul.bf16.gmra.mxu0 %v2516
        %v2530 = vpop.f32.mrf.mxu0
        %v2531 = vadd.f32 %v2511, %v2530
        %v2532 = vpop.f32.mrf.mxu0
        %v2533 = vadd.f32 %v2513, %v2532
        %2534 = vdwg.mxu0
        %2535 = vrot.lane.b32.xlu0 %v2357, 112
        %v2536 = vpop.permute.xlu0 %2535
        %2537 = vrot.lane.b32.xlu0 %v2357, 48
        %v2538 = vpop.permute.xlu0 %2537
        %v2540 = vsel %vm1303, %v2536, 0
        %v2543 = vsel %vm1303, %v2538, 0
        %2545 = vmatpush.bf16.xpose.msra.mxu0 0
        %2546 = vmatpush.bf16.xpose.msra.mxu0 0
        %2547 = vmatpush.bf16.xpose.msra.mxu0 0
        %2548 = vmatpush.bf16.xpose.msra.mxu0 0
        %2549 = vmatpush.bf16.xpose.msra.mxu0 0
        %2550 = vmatpush.bf16.xpose.msra.mxu0 0
        %2551 = vmatpush.bf16.xpose.msra.mxu0 0
        %2552 = vmatpush.bf16.xpose.msra.mxu0 %v2543
        %2553 = vmatmul.bf16.gmra.mxu0 %v2540
        %v2554 = vpop.f32.mrf.mxu0
        %v2555 = vadd.f32 0.0, %v2554
        %v2556 = vpop.f32.mrf.mxu0
        %v2557 = vadd.f32 0.0, %v2556
        %2558 = vdwg.mxu0
        %v2559 = vsel %vm1499, %v2555, -inf
        %2560 = vmax.xlane.f32.xlu0 %v2559
        %v2561 = vpop.xlane.xlu0 %2560
        %v2562 = vsel %vm1499, %v2557, -inf
        %2563 = vmax.xlane.f32.xlu0 %v2562
        %v2564 = vpop.xlane.xlu0 %2563
        %v2565 = vsub.f32 %v2555, %v2561
        %v2566 = vsub.f32 %v2557, %v2564
        %v2567 = vmul.f32 %v2565, 1.442695
        %v2568 = vpow.pop %v2567
        %v2569 = vmul.f32 %v2566, 1.442695
        %v2570 = vpow.pop %v2569
        %v2571 = vsel %vm1499, %v2568, 0.0
        %2572 = vadd.xlane.f32.xlu0 %v2571
        %v2573 = vpop.xlane.xlu0 %2572
        %v2574 = vsel %vm1499, %v2570, 0.0
        %2575 = vadd.xlane.f32.xlu0 %v2574
        %v2576 = vpop.xlane.xlu0 %2575
        %v2577 = vpack.c.bf16 %v2570, %v2568
        %2578 = vrot.lane.b32.xlu0 %v2403, 112
        %v2579 = vpop.permute.xlu0 %2578
        %v2582 = vsel %vm1499, %v2577, 0
        %2584 = vmatpush.bf16.msra.mxu0 0
        %2585 = vmatpush.bf16.msra.mxu0 0
        %2586 = vmatpush.bf16.msra.mxu0 0
        %2587 = vmatpush.bf16.msra.mxu0 0
        %2588 = vmatpush.bf16.msra.mxu0 0
        %2589 = vmatpush.bf16.msra.mxu0 0
        %2590 = vmatpush.bf16.msra.mxu0 0
        %2591 = vmatpush.bf16.msra.mxu0 %v2579
        %2592 = vmatmul.bf16.gmra.mxu0 %v2582
        %v2593 = vpop.f32.mrf.mxu0
        %v2594 = vadd.f32 0.0, %v2593
        %v2595 = vpop.f32.mrf.mxu0
        %v2596 = vadd.f32 0.0, %v2595
        %2597 = vdwg.mxu0
        %v2598 = vrcp.pop %v2573
        %v2599 = vrcp.pop %v2576
        %v2600 = vmul.f32 %v2594, %v2598
        %v2601 = vmul.f32 %v2596, %v2599
        %v2602 = vpack.c.bf16 %v2601, %v2600
        %v2604 = vsel %vm1303, %v2602, 0
        %v2607 = vsel %vm1618, %v2265, 0
        %2609 = vmatpush.bf16.msra.mxu0 0
        %2610 = vmatpush.bf16.msra.mxu0 0
        %2611 = vmatpush.bf16.msra.mxu0 0
        %2612 = vmatpush.bf16.msra.mxu0 0
        %2613 = vmatpush.bf16.msra.mxu0 0
        %2614 = vmatpush.bf16.msra.mxu0 0
        %2615 = vmatpush.bf16.msra.mxu0 0
        %2616 = vmatpush.bf16.msra.mxu0 %v2607
        %2617 = vmatmul.bf16.gmra.mxu0 %v2604
        %v2618 = vpop.f32.mrf.mxu0
        %v2619 = vadd.f32 0.0, %v2618
        %v2620 = vpop.f32.mrf.mxu0
        %v2621 = vadd.f32 0.0, %v2620
        %2622 = vdwg.mxu0
        %v2623 = vadd.f32 %v2531, %v2619
        %v2624 = vadd.f32 %v2533, %v2621
        %2625 = vrot.lane.b32.xlu0 %v2357, 104
        %v2626 = vpop.permute.xlu0 %2625
        %2627 = vrot.lane.b32.xlu0 %v2357, 40
        %v2628 = vpop.permute.xlu0 %2627
        %v2630 = vsel %vm1303, %v2626, 0
        %v2633 = vsel %vm1303, %v2628, 0
        %2635 = vmatpush.bf16.xpose.msra.mxu0 0
        %2636 = vmatpush.bf16.xpose.msra.mxu0 0
        %2637 = vmatpush.bf16.xpose.msra.mxu0 0
        %2638 = vmatpush.bf16.xpose.msra.mxu0 0
        %2639 = vmatpush.bf16.xpose.msra.mxu0 0
        %2640 = vmatpush.bf16.xpose.msra.mxu0 0
        %2641 = vmatpush.bf16.xpose.msra.mxu0 0
        %2642 = vmatpush.bf16.xpose.msra.mxu0 %v2633
        %2643 = vmatmul.bf16.gmra.mxu0 %v2630
        %v2644 = vpop.f32.mrf.mxu0
        %v2645 = vadd.f32 0.0, %v2644
        %v2646 = vpop.f32.mrf.mxu0
        %v2647 = vadd.f32 0.0, %v2646
        %2648 = vdwg.mxu0
        %v2649 = vsel %vm1499, %v2645, -inf
        %2650 = vmax.xlane.f32.xlu0 %v2649
        %v2651 = vpop.xlane.xlu0 %2650
        %v2652 = vsel %vm1499, %v2647, -inf
        %2653 = vmax.xlane.f32.xlu0 %v2652
        %v2654 = vpop.xlane.xlu0 %2653
        %v2655 = vsub.f32 %v2645, %v2651
        %v2656 = vsub.f32 %v2647, %v2654
        %v2657 = vmul.f32 %v2655, 1.442695
        %v2658 = vpow.pop %v2657
        %v2659 = vmul.f32 %v2656, 1.442695
        %v2660 = vpow.pop %v2659
        %v2661 = vsel %vm1499, %v2658, 0.0
        %2662 = vadd.xlane.f32.xlu0 %v2661
        %v2663 = vpop.xlane.xlu0 %2662
        %v2664 = vsel %vm1499, %v2660, 0.0
        %2665 = vadd.xlane.f32.xlu0 %v2664
        %v2666 = vpop.xlane.xlu0 %2665
        %v2667 = vpack.c.bf16 %v2660, %v2658
        %2668 = vrot.lane.b32.xlu0 %v2403, 104
        %v2669 = vpop.permute.xlu0 %2668
        %v2672 = vsel %vm1499, %v2667, 0
        %2674 = vmatpush.bf16.msra.mxu0 0
        %2675 = vmatpush.bf16.msra.mxu0 0
        %2676 = vmatpush.bf16.msra.mxu0 0
        %2677 = vmatpush.bf16.msra.mxu0 0
        %2678 = vmatpush.bf16.msra.mxu0 0
        %2679 = vmatpush.bf16.msra.mxu0 0
        %2680 = vmatpush.bf16.msra.mxu0 0
        %2681 = vmatpush.bf16.msra.mxu0 %v2669
        %2682 = vmatmul.bf16.gmra.mxu0 %v2672
        %v2683 = vpop.f32.mrf.mxu0
        %v2684 = vadd.f32 0.0, %v2683
        %v2685 = vpop.f32.mrf.mxu0
        %v2686 = vadd.f32 0.0, %v2685
        %2687 = vdwg.mxu0
        %v2688 = vrcp.pop %v2663
        %v2689 = vrcp.pop %v2666
        %v2690 = vmul.f32 %v2684, %v2688
        %v2691 = vmul.f32 %v2686, %v2689
        %v2692 = vpack.c.bf16 %v2691, %v2690
        %v2694 = vsel %vm1303, %v2692, 0
        %v2697 = vsel %vm1618, %v2266, 0
        %2699 = vmatpush.bf16.msra.mxu0 0
        %2700 = vmatpush.bf16.msra.mxu0 0
        %2701 = vmatpush.bf16.msra.mxu0 0
        %2702 = vmatpush.bf16.msra.mxu0 0
        %2703 = vmatpush.bf16.msra.mxu0 0
        %2704 = vmatpush.bf16.msra.mxu0 0
        %2705 = vmatpush.bf16.msra.mxu0 0
        %2706 = vmatpush.bf16.msra.mxu0 %v2697
        %2707 = vmatmul.bf16.gmra.mxu0 %v2694
        %v2708 = vpop.f32.mrf.mxu0
        %v2709 = vadd.f32 0.0, %v2708
        %v2710 = vpop.f32.mrf.mxu0
        %v2711 = vadd.f32 0.0, %v2710
        %2712 = vdwg.mxu0
        %v2713 = vadd.f32 %v2623, %v2709
        %v2714 = vadd.f32 %v2624, %v2711
        %2715 = vrot.lane.b32.xlu0 %v2357, 96
        %v2716 = vpop.permute.xlu0 %2715
        %2717 = vrot.lane.b32.xlu0 %v2357, 32
        %v2718 = vpop.permute.xlu0 %2717
        %v2720 = vsel %vm1303, %v2716, 0
        %v2723 = vsel %vm1303, %v2718, 0
        %2725 = vmatpush.bf16.xpose.msra.mxu0 0
        %2726 = vmatpush.bf16.xpose.msra.mxu0 0
        %2727 = vmatpush.bf16.xpose.msra.mxu0 0
        %2728 = vmatpush.bf16.xpose.msra.mxu0 0
        %2729 = vmatpush.bf16.xpose.msra.mxu0 0
        %2730 = vmatpush.bf16.xpose.msra.mxu0 0
        %2731 = vmatpush.bf16.xpose.msra.mxu0 0
        %2732 = vmatpush.bf16.xpose.msra.mxu0 %v2723
        %2733 = vmatmul.bf16.gmra.mxu0 %v2720
        %v2734 = vpop.f32.mrf.mxu0
        %v2735 = vadd.f32 0.0, %v2734
        %v2736 = vpop.f32.mrf.mxu0
        %v2737 = vadd.f32 0.0, %v2736
        %2738 = vdwg.mxu0
        %v2739 = vsel %vm1499, %v2735, -inf
        %2740 = vmax.xlane.f32.xlu0 %v2739
        %v2741 = vpop.xlane.xlu0 %2740
        %v2742 = vsel %vm1499, %v2737, -inf
        %2743 = vmax.xlane.f32.xlu0 %v2742
        %v2744 = vpop.xlane.xlu0 %2743
        %v2745 = vsub.f32 %v2735, %v2741
        %v2746 = vsub.f32 %v2737, %v2744
        %v2747 = vmul.f32 %v2745, 1.442695
        %v2748 = vpow.pop %v2747
        %v2749 = vmul.f32 %v2746, 1.442695
        %v2750 = vpow.pop %v2749
        %v2751 = vsel %vm1499, %v2748, 0.0
        %2752 = vadd.xlane.f32.xlu0 %v2751
        %v2753 = vpop.xlane.xlu0 %2752
        %v2754 = vsel %vm1499, %v2750, 0.0
        %2755 = vadd.xlane.f32.xlu0 %v2754
        %v2756 = vpop.xlane.xlu0 %2755
        %v2757 = vpack.c.bf16 %v2750, %v2748
        %2758 = vrot.lane.b32.xlu0 %v2403, 96
        %v2759 = vpop.permute.xlu0 %2758
        %v2762 = vsel %vm1499, %v2757, 0
        %2764 = vmatpush.bf16.msra.mxu0 0
        %2765 = vmatpush.bf16.msra.mxu0 0
        %2766 = vmatpush.bf16.msra.mxu0 0
        %2767 = vmatpush.bf16.msra.mxu0 0
        %2768 = vmatpush.bf16.msra.mxu0 0
        %2769 = vmatpush.bf16.msra.mxu0 0
        %2770 = vmatpush.bf16.msra.mxu0 0
        %2771 = vmatpush.bf16.msra.mxu0 %v2759
        %2772 = vmatmul.bf16.gmra.mxu0 %v2762
        %v2773 = vpop.f32.mrf.mxu0
        %v2774 = vadd.f32 0.0, %v2773
        %v2775 = vpop.f32.mrf.mxu0
        %v2776 = vadd.f32 0.0, %v2775
        %2777 = vdwg.mxu0
        %v2778 = vrcp.pop %v2753
        %v2779 = vrcp.pop %v2756
        %v2780 = vmul.f32 %v2774, %v2778
        %v2781 = vmul.f32 %v2776, %v2779
        %v2782 = vpack.c.bf16 %v2781, %v2780
        %v2784 = vsel %vm1303, %v2782, 0
        %v2787 = vsel %vm1618, %v2267, 0
        %2789 = vmatpush.bf16.msra.mxu0 0
        %2790 = vmatpush.bf16.msra.mxu0 0
        %2791 = vmatpush.bf16.msra.mxu0 0
        %2792 = vmatpush.bf16.msra.mxu0 0
        %2793 = vmatpush.bf16.msra.mxu0 0
        %2794 = vmatpush.bf16.msra.mxu0 0
        %2795 = vmatpush.bf16.msra.mxu0 0
        %2796 = vmatpush.bf16.msra.mxu0 %v2787
        %2797 = vmatmul.bf16.gmra.mxu0 %v2784
        %v2798 = vpop.f32.mrf.mxu0
        %v2799 = vadd.f32 0.0, %v2798
        %v2800 = vpop.f32.mrf.mxu0
        %v2801 = vadd.f32 0.0, %v2800
        %2802 = vdwg.mxu0
        %v2803 = vadd.f32 %v2713, %v2799
        %v2804 = vadd.f32 %v2714, %v2801
        %2805 = vrot.lane.b32.xlu0 %v2357, 88
        %v2806 = vpop.permute.xlu0 %2805
        %2807 = vrot.lane.b32.xlu0 %v2357, 24
        %v2808 = vpop.permute.xlu0 %2807
        %v2810 = vsel %vm1303, %v2806, 0
        %v2813 = vsel %vm1303, %v2808, 0
        %2815 = vmatpush.bf16.xpose.msra.mxu0 0
        %2816 = vmatpush.bf16.xpose.msra.mxu0 0
        %2817 = vmatpush.bf16.xpose.msra.mxu0 0
        %2818 = vmatpush.bf16.xpose.msra.mxu0 0
        %2819 = vmatpush.bf16.xpose.msra.mxu0 0
        %2820 = vmatpush.bf16.xpose.msra.mxu0 0
        %2821 = vmatpush.bf16.xpose.msra.mxu0 0
        %2822 = vmatpush.bf16.xpose.msra.mxu0 %v2813
        %2823 = vmatmul.bf16.gmra.mxu0 %v2810
        %v2824 = vpop.f32.mrf.mxu0
        %v2825 = vadd.f32 0.0, %v2824
        %v2826 = vpop.f32.mrf.mxu0
        %v2827 = vadd.f32 0.0, %v2826
        %2828 = vdwg.mxu0
        %v2829 = vsel %vm1499, %v2825, -inf
        %2830 = vmax.xlane.f32.xlu0 %v2829
        %v2831 = vpop.xlane.xlu0 %2830
        %v2832 = vsel %vm1499, %v2827, -inf
        %2833 = vmax.xlane.f32.xlu0 %v2832
        %v2834 = vpop.xlane.xlu0 %2833
        %v2835 = vsub.f32 %v2825, %v2831
        %v2836 = vsub.f32 %v2827, %v2834
        %v2837 = vmul.f32 %v2835, 1.442695
        %v2838 = vpow.pop %v2837
        %v2839 = vmul.f32 %v2836, 1.442695
        %v2840 = vpow.pop %v2839
        %v2841 = vsel %vm1499, %v2838, 0.0
        %2842 = vadd.xlane.f32.xlu0 %v2841
        %v2843 = vpop.xlane.xlu0 %2842
        %v2844 = vsel %vm1499, %v2840, 0.0
        %2845 = vadd.xlane.f32.xlu0 %v2844
        %v2846 = vpop.xlane.xlu0 %2845
        %v2847 = vpack.c.bf16 %v2840, %v2838
        %2848 = vrot.lane.b32.xlu0 %v2403, 88
        %v2849 = vpop.permute.xlu0 %2848
        %v2852 = vsel %vm1499, %v2847, 0
        %2854 = vmatpush.bf16.msra.mxu0 0
        %2855 = vmatpush.bf16.msra.mxu0 0
        %2856 = vmatpush.bf16.msra.mxu0 0
        %2857 = vmatpush.bf16.msra.mxu0 0
        %2858 = vmatpush.bf16.msra.mxu0 0
        %2859 = vmatpush.bf16.msra.mxu0 0
        %2860 = vmatpush.bf16.msra.mxu0 0
        %2861 = vmatpush.bf16.msra.mxu0 %v2849
        %2862 = vmatmul.bf16.gmra.mxu0 %v2852
        %v2863 = vpop.f32.mrf.mxu0
        %v2864 = vadd.f32 0.0, %v2863
        %v2865 = vpop.f32.mrf.mxu0
        %v2866 = vadd.f32 0.0, %v2865
        %2867 = vdwg.mxu0
        %v2868 = vrcp.pop %v2843
        %v2869 = vrcp.pop %v2846
        %v2870 = vmul.f32 %v2864, %v2868
        %v2871 = vmul.f32 %v2866, %v2869
        %v2872 = vpack.c.bf16 %v2871, %v2870
        %v2874 = vsel %vm1303, %v2872, 0
        %v2877 = vsel %vm1618, %v2268, 0
        %2879 = vmatpush.bf16.msra.mxu0 0
        %2880 = vmatpush.bf16.msra.mxu0 0
        %2881 = vmatpush.bf16.msra.mxu0 0
        %2882 = vmatpush.bf16.msra.mxu0 0
        %2883 = vmatpush.bf16.msra.mxu0 0
        %2884 = vmatpush.bf16.msra.mxu0 0
        %2885 = vmatpush.bf16.msra.mxu0 0
        %2886 = vmatpush.bf16.msra.mxu0 %v2877
        %2887 = vmatmul.bf16.gmra.mxu0 %v2874
        %v2888 = vpop.f32.mrf.mxu0
        %v2889 = vadd.f32 0.0, %v2888
        %v2890 = vpop.f32.mrf.mxu0
        %v2891 = vadd.f32 0.0, %v2890
        %2892 = vdwg.mxu0
        %v2893 = vadd.f32 %v2803, %v2889
        %v2894 = vadd.f32 %v2804, %v2891
        %2895 = vrot.lane.b32.xlu0 %v2357, 80
        %v2896 = vpop.permute.xlu0 %2895
        %2897 = vrot.lane.b32.xlu0 %v2357, 16
        %v2898 = vpop.permute.xlu0 %2897
        %v2900 = vsel %vm1303, %v2896, 0
        %v2903 = vsel %vm1303, %v2898, 0
        %2905 = vmatpush.bf16.xpose.msra.mxu0 0
        %2906 = vmatpush.bf16.xpose.msra.mxu0 0
        %2907 = vmatpush.bf16.xpose.msra.mxu0 0
        %2908 = vmatpush.bf16.xpose.msra.mxu0 0
        %2909 = vmatpush.bf16.xpose.msra.mxu0 0
        %2910 = vmatpush.bf16.xpose.msra.mxu0 0
        %2911 = vmatpush.bf16.xpose.msra.mxu0 0
        %2912 = vmatpush.bf16.xpose.msra.mxu0 %v2903
        %2913 = vmatmul.bf16.gmra.mxu0 %v2900
        %v2914 = vpop.f32.mrf.mxu0
        %v2915 = vadd.f32 0.0, %v2914
        %v2916 = vpop.f32.mrf.mxu0
        %v2917 = vadd.f32 0.0, %v2916
        %2918 = vdwg.mxu0
        %v2919 = vsel %vm1499, %v2915, -inf
        %2920 = vmax.xlane.f32.xlu0 %v2919
        %v2921 = vpop.xlane.xlu0 %2920
        %v2922 = vsel %vm1499, %v2917, -inf
        %2923 = vmax.xlane.f32.xlu0 %v2922
        %v2924 = vpop.xlane.xlu0 %2923
        %v2925 = vsub.f32 %v2915, %v2921
        %v2926 = vsub.f32 %v2917, %v2924
        %v2927 = vmul.f32 %v2925, 1.442695
        %v2928 = vpow.pop %v2927
        %v2929 = vmul.f32 %v2926, 1.442695
        %v2930 = vpow.pop %v2929
        %v2931 = vsel %vm1499, %v2928, 0.0
        %2932 = vadd.xlane.f32.xlu0 %v2931
        %v2933 = vpop.xlane.xlu0 %2932
        %v2934 = vsel %vm1499, %v2930, 0.0
        %2935 = vadd.xlane.f32.xlu0 %v2934
        %v2936 = vpop.xlane.xlu0 %2935
        %v2937 = vpack.c.bf16 %v2930, %v2928
        %2938 = vrot.lane.b32.xlu0 %v2403, 80
        %v2939 = vpop.permute.xlu0 %2938
        %v2942 = vsel %vm1499, %v2937, 0
        %2944 = vmatpush.bf16.msra.mxu0 0
        %2945 = vmatpush.bf16.msra.mxu0 0
        %2946 = vmatpush.bf16.msra.mxu0 0
        %2947 = vmatpush.bf16.msra.mxu0 0
        %2948 = vmatpush.bf16.msra.mxu0 0
        %2949 = vmatpush.bf16.msra.mxu0 0
        %2950 = vmatpush.bf16.msra.mxu0 0
        %2951 = vmatpush.bf16.msra.mxu0 %v2939
        %2952 = vmatmul.bf16.gmra.mxu0 %v2942
        %v2953 = vpop.f32.mrf.mxu0
        %v2954 = vadd.f32 0.0, %v2953
        %v2955 = vpop.f32.mrf.mxu0
        %v2956 = vadd.f32 0.0, %v2955
        %2957 = vdwg.mxu0
        %v2958 = vrcp.pop %v2933
        %v2959 = vrcp.pop %v2936
        %v2960 = vmul.f32 %v2954, %v2958
        %v2961 = vmul.f32 %v2956, %v2959
        %v2962 = vpack.c.bf16 %v2961, %v2960
        %v2964 = vsel %vm1303, %v2962, 0
        %v2967 = vsel %vm1618, %v2269, 0
        %2969 = vmatpush.bf16.msra.mxu0 0
        %2970 = vmatpush.bf16.msra.mxu0 0
        %2971 = vmatpush.bf16.msra.mxu0 0
        %2972 = vmatpush.bf16.msra.mxu0 0
        %2973 = vmatpush.bf16.msra.mxu0 0
        %2974 = vmatpush.bf16.msra.mxu0 0
        %2975 = vmatpush.bf16.msra.mxu0 0
        %2976 = vmatpush.bf16.msra.mxu0 %v2967
        %2977 = vmatmul.bf16.gmra.mxu0 %v2964
        %v2978 = vpop.f32.mrf.mxu0
        %v2979 = vadd.f32 0.0, %v2978
        %v2980 = vpop.f32.mrf.mxu0
        %v2981 = vadd.f32 0.0, %v2980
        %2982 = vdwg.mxu0
        %v2983 = vadd.f32 %v2893, %v2979
        %v2984 = vadd.f32 %v2894, %v2981
        %2985 = vrot.lane.b32.xlu0 %v2357, 72
        %v2986 = vpop.permute.xlu0 %2985
        %2987 = vrot.lane.b32.xlu0 %v2357, 8
        %v2988 = vpop.permute.xlu0 %2987
        %v2990 = vsel %vm1303, %v2986, 0
        %v2993 = vsel %vm1303, %v2988, 0
        %2995 = vmatpush.bf16.xpose.msra.mxu0 0
        %2996 = vmatpush.bf16.xpose.msra.mxu0 0
        %2997 = vmatpush.bf16.xpose.msra.mxu0 0
        %2998 = vmatpush.bf16.xpose.msra.mxu0 0
        %2999 = vmatpush.bf16.xpose.msra.mxu0 0
        %3000 = vmatpush.bf16.xpose.msra.mxu0 0
        %3001 = vmatpush.bf16.xpose.msra.mxu0 0
        %3002 = vmatpush.bf16.xpose.msra.mxu0 %v2993
        %3003 = vmatmul.bf16.gmra.mxu0 %v2990
        %v3004 = vpop.f32.mrf.mxu0
        %v3005 = vadd.f32 0.0, %v3004
        %v3006 = vpop.f32.mrf.mxu0
        %v3007 = vadd.f32 0.0, %v3006
        %3008 = vdwg.mxu0
        %v3009 = vsel %vm1499, %v3005, -inf
        %3010 = vmax.xlane.f32.xlu0 %v3009
        %v3011 = vpop.xlane.xlu0 %3010
        %v3012 = vsel %vm1499, %v3007, -inf
        %3013 = vmax.xlane.f32.xlu0 %v3012
        %v3014 = vpop.xlane.xlu0 %3013
        %v3015 = vsub.f32 %v3005, %v3011
        %v3016 = vsub.f32 %v3007, %v3014
        %v3017 = vmul.f32 %v3015, 1.442695
        %v3018 = vpow.pop %v3017
        %v3019 = vmul.f32 %v3016, 1.442695
        %v3020 = vpow.pop %v3019
        %v3021 = vsel %vm1499, %v3018, 0.0
        %3022 = vadd.xlane.f32.xlu0 %v3021
        %v3023 = vpop.xlane.xlu0 %3022
        %v3024 = vsel %vm1499, %v3020, 0.0
        %3025 = vadd.xlane.f32.xlu0 %v3024
        %v3026 = vpop.xlane.xlu0 %3025
        %v3027 = vpack.c.bf16 %v3020, %v3018
        %3028 = vrot.lane.b32.xlu0 %v2403, 72
        %v3029 = vpop.permute.xlu0 %3028
        %v3032 = vsel %vm1499, %v3027, 0
        %3034 = vmatpush.bf16.msra.mxu0 0
        %3035 = vmatpush.bf16.msra.mxu0 0
        %3036 = vmatpush.bf16.msra.mxu0 0
        %3037 = vmatpush.bf16.msra.mxu0 0
        %3038 = vmatpush.bf16.msra.mxu0 0
        %3039 = vmatpush.bf16.msra.mxu0 0
        %3040 = vmatpush.bf16.msra.mxu0 0
        %3041 = vmatpush.bf16.msra.mxu0 %v3029
        %3042 = vmatmul.bf16.gmra.mxu0 %v3032
        %v3043 = vpop.f32.mrf.mxu0
        %v3044 = vadd.f32 0.0, %v3043
        %v3045 = vpop.f32.mrf.mxu0
        %v3046 = vadd.f32 0.0, %v3045
        %3047 = vdwg.mxu0
        %v3048 = vrcp.pop %v3023
        %v3049 = vrcp.pop %v3026
        %v3050 = vmul.f32 %v3044, %v3048
        %v3051 = vmul.f32 %v3046, %v3049
        %v3052 = vpack.c.bf16 %v3051, %v3050
        %v3054 = vsel %vm1303, %v3052, 0
        %v3057 = vsel %vm1618, %v2270, 0
        %3059 = vmatpush.bf16.msra.mxu0 0
        %3060 = vmatpush.bf16.msra.mxu0 0
        %3061 = vmatpush.bf16.msra.mxu0 0
        %3062 = vmatpush.bf16.msra.mxu0 0
        %3063 = vmatpush.bf16.msra.mxu0 0
        %3064 = vmatpush.bf16.msra.mxu0 0
        %3065 = vmatpush.bf16.msra.mxu0 0
        %3066 = vmatpush.bf16.msra.mxu0 %v3057
        %3067 = vmatmul.bf16.gmra.mxu0 %v3054
        %v3068 = vpop.f32.mrf.mxu0
        %v3069 = vadd.f32 0.0, %v3068
        %v3070 = vpop.f32.mrf.mxu0
        %v3071 = vadd.f32 0.0, %v3070
        %3072 = vdwg.mxu0
        %v3073 = vadd.f32 %v2983, %v3069
        %v3074 = vadd.f32 %v2984, %v3071
        %v3076 = vperm.slane %v2271, 0
        %v3078 = vadd.f32 %v3073, %v3076
        %v3079 = vadd.f32 %v3074, %v3076
        %v3080 = vadd.f32 %v2249, %v3078
        %v3081 = vadd.f32 %v2252, %v3079
        %v3082 = vld [vmem:[#allocation20] sm:$0x1]
        %v3084 = vperm.slane %v3082, 0
        %v3086 = vmul.f32 %v3080, %v3084
        %v3087 = vmul.f32 %v3081, %v3084
        %v3088 = vld [vmem:[#allocation22] sm:$0x1]
        %v3090 = vperm.slane %v3088, 0
        %v3092 = vadd.f32 %v3086, %v3090
        %v3093 = vadd.f32 %v3087, %v3090
        %v3094 = vmax.f32 %v3092, 0.0
        %v3095 = vmax.f32 %v3093, 0.0
        %v3096 = vld [vmem:[#allocation23] sm:$0xff]
        %v3097 = vld [vmem:[#allocation23 + $0x8] sm:$0xff]
        %v3098 = vld [vmem:[#allocation23 + $0x10] sm:$0xff]
        %v3099 = vld [vmem:[#allocation23 + $0x18] sm:$0xff]
        %v3100 = vld [vmem:[#allocation23 + $0x20] sm:$0xff]
        %v3101 = vld [vmem:[#allocation23 + $0x28] sm:$0xff]
        %v3102 = vld [vmem:[#allocation23 + $0x30] sm:$0xff]
        %v3103 = vld [vmem:[#allocation23 + $0x38] sm:$0xff]
        %v3105 = vsel %vm1343, %v3094, 0
        %v3108 = vsel %vm1343, %v3095, 0
        %3110 = vmatpush.msra.mxu0 0.0
        %3111 = vmatpush.msra.mxu0 0.0
        %3112 = vmatpush.msra.mxu0 0.0
        %3113 = vmatpush.msra.mxu0 0.0
        %3114 = vmatpush.msra.mxu0 0.0
        %3115 = vmatpush.msra.mxu0 0.0
        %3116 = vmatpush.msra.mxu0 0.0
        %3117 = vmatpush.msra.mxu0 0.0
        %3118 = vmatpush.msra.mxu0 %v3103
        %3119 = vmatpush.msra.mxu0 %v3102
        %3120 = vmatpush.msra.mxu0 %v3101
        %3121 = vmatpush.msra.mxu0 %v3100
        %3122 = vmatpush.msra.mxu0 %v3099
        %3123 = vmatpush.msra.mxu0 %v3098
        %3124 = vmatpush.msra.mxu0 %v3097
        %3125 = vmatpush.msra.mxu0 %v3096
        %3126 = vmatmul.f32.gmra.mxu0 %v3105
        %v3127 = vpop.f32.mrf.mxu0
        %v3128 = vadd.f32 0.0, %v3127
        %3129 = vmatmul.f32.gmra.mxu0 %v3108
        %v3130 = vpop.f32.mrf.mxu0
        %v3131 = vadd.f32 0.0, %v3130
        %3132 = vdwg.mxu0
        %v3133 = vld [vmem:[#allocation25] sm:$0xff]
        %v3134 = vld [vmem:[#allocation25 + $0x8] sm:$0xf]
        %v3135 = vld [vmem:[#allocation25 + $0xc] sm:$0xff]
        %v3136 = vld [vmem:[#allocation25 + $0x14] sm:$0xf]
        %v3137 = vld [vmem:[#allocation25 + $0x18] sm:$0xff]
        %v3138 = vld [vmem:[#allocation25 + $0x20] sm:$0xf]
        %v3139 = vld [vmem:[#allocation25 + $0x24] sm:$0xff]
        %v3140 = vld [vmem:[#allocation25 + $0x2c] sm:$0xf]
        %v3141 = vld [vmem:[#allocation25 + $0x30] sm:$0xff]
        %v3142 = vld [vmem:[#allocation25 + $0x38] sm:$0xf]
        %v3143 = vld [vmem:[#allocation25 + $0x3c] sm:$0xff]
        %v3144 = vld [vmem:[#allocation25 + $0x44] sm:$0xf]
        %v3145 = vld [vmem:[#allocation25 + $0x48] sm:$0xff]
        %v3146 = vld [vmem:[#allocation25 + $0x50] sm:$0xf]
        %v3147 = vld [vmem:[#allocation25 + $0x54] sm:$0xff]
        %v3148 = vld [vmem:[#allocation25 + $0x5c] sm:$0xf]
        %v3149 = vld [vmem:[#allocation25 + $0x60] sm:$0xff]
        %v3150 = vld [vmem:[#allocation25 + $0x68] sm:$0xf]
        %v3151 = vld [vmem:[#allocation25 + $0x6c] sm:$0xff]
        %v3152 = vld [vmem:[#allocation25 + $0x74] sm:$0xf]
        %v3153 = vld [vmem:[#allocation25 + $0x78] sm:$0xff]
        %v3154 = vld [vmem:[#allocation25 + $0x80] sm:$0xf]
        %v3155 = vld [vmem:[#allocation25 + $0x84] sm:$0xff]
        %v3156 = vld [vmem:[#allocation25 + $0x8c] sm:$0xf]
        %v3157 = vld [vmem:[#allocation25 + $0x90] sm:$0xff]
        %v3158 = vld [vmem:[#allocation25 + $0x98] sm:$0xf]
        %v3159 = vld [vmem:[#allocation25 + $0x9c] sm:$0xff]
        %v3160 = vld [vmem:[#allocation25 + $0xa4] sm:$0xf]
        %v3161 = vld [vmem:[#allocation25 + $0xa8] sm:$0xff]
        %v3162 = vld [vmem:[#allocation25 + $0xb0] sm:$0xf]
        %v3163 = vld [vmem:[#allocation25 + $0xb4] sm:$0xff]
        %v3164 = vld [vmem:[#allocation25 + $0xbc] sm:$0xf]
        %v3165 = vld [vmem:[#allocation26] sm:$0x7]
        %v3166 = vld [vmem:[#allocation28] sm:$0xf]
        %v3167 = vld [vmem:[#allocation28 + $0x4] sm:$0xf]
        %v3168 = vld [vmem:[#allocation28 + $0x8] sm:$0xf]
        %v3169 = vld [vmem:[#allocation28 + $0xc] sm:$0xf]
        %v3170 = vld [vmem:[#allocation28 + $0x10] sm:$0xf]
        %v3171 = vld [vmem:[#allocation28 + $0x14] sm:$0xf]
        %v3172 = vld [vmem:[#allocation28 + $0x18] sm:$0xf]
        %v3173 = vld [vmem:[#allocation28 + $0x1c] sm:$0xf]
        %v3174 = vld [vmem:[#allocation28 + $0x20] sm:$0xf]
        %v3175 = vld [vmem:[#allocation28 + $0x24] sm:$0xf]
        %v3176 = vld [vmem:[#allocation28 + $0x28] sm:$0xf]
        %v3177 = vld [vmem:[#allocation28 + $0x2c] sm:$0xf]
        %v3178 = vld [vmem:[#allocation28 + $0x30] sm:$0xf]
        %v3179 = vld [vmem:[#allocation28 + $0x34] sm:$0xf]
        %v3180 = vld [vmem:[#allocation28 + $0x38] sm:$0xf]
        %v3181 = vld [vmem:[#allocation28 + $0x3c] sm:$0xf]
        %v3182 = vld [vmem:[#allocation29] sm:$0x1]
        %v3183 = vpack.c.bf16 %v3131, %v3128
        %v3185 = vperm.slane %v3165, 0
        %v3186 = vperm.slane %v3165, 1
        %v3187 = vperm.slane %v3165, 2
        %v3223 = vunpack.c.l.b16 %v3133
        %v3224 = vunpack.c.h.b16 %v3133
        %v3225 = vunpack.c.l.b16 %v3134
        %v3226 = vunpack.c.l.b16 %v3135
        %v3227 = vunpack.c.h.b16 %v3135
        %v3228 = vunpack.c.l.b16 %v3136
        %v3229 = vunpack.c.l.b16 %v3137
        %v3230 = vunpack.c.h.b16 %v3137
        %v3231 = vunpack.c.l.b16 %v3138
        %v3232 = vunpack.c.l.b16 %v3139
        %v3233 = vunpack.c.h.b16 %v3139
        %v3234 = vunpack.c.l.b16 %v3140
        %v3235 = vunpack.c.l.b16 %v3141
        %v3236 = vunpack.c.h.b16 %v3141
        %v3237 = vunpack.c.l.b16 %v3142
        %v3238 = vunpack.c.l.b16 %v3143
        %v3239 = vunpack.c.h.b16 %v3143
        %v3240 = vunpack.c.l.b16 %v3144
        %v3241 = vunpack.c.l.b16 %v3145
        %v3242 = vunpack.c.h.b16 %v3145
        %v3243 = vunpack.c.l.b16 %v3146
        %v3244 = vunpack.c.l.b16 %v3147
        %v3245 = vunpack.c.h.b16 %v3147
        %v3246 = vunpack.c.l.b16 %v3148
        %v3247 = vunpack.c.l.b16 %v3149
        %v3248 = vunpack.c.h.b16 %v3149
        %v3249 = vunpack.c.l.b16 %v3150
        %v3250 = vunpack.c.l.b16 %v3151
        %v3251 = vunpack.c.h.b16 %v3151
        %v3252 = vunpack.c.l.b16 %v3152
        %v3253 = vunpack.c.l.b16 %v3153
        %v3254 = vunpack.c.h.b16 %v3153
        %v3255 = vunpack.c.l.b16 %v3154
        %v3256 = vunpack.c.l.b16 %v3155
        %v3257 = vunpack.c.h.b16 %v3155
        %v3258 = vunpack.c.l.b16 %v3156
        %v3259 = vunpack.c.l.b16 %v3157
        %v3260 = vunpack.c.h.b16 %v3157
        %v3261 = vunpack.c.l.b16 %v3158
        %v3262 = vunpack.c.l.b16 %v3159
        %v3263 = vunpack.c.h.b16 %v3159
        %v3264 = vunpack.c.l.b16 %v3160
        %v3265 = vunpack.c.l.b16 %v3161
        %v3266 = vunpack.c.h.b16 %v3161
        %v3267 = vunpack.c.l.b16 %v3162
        %v3268 = vunpack.c.l.b16 %v3163
        %v3269 = vunpack.c.h.b16 %v3163
        %v3270 = vunpack.c.l.b16 %v3164
        %v3271 = vpack.c.b16 %v3226, %v3223
        %v3272 = vpack.c.b16 %v3227, %v3224
        %v3273 = vpack.c.b16 %v3228, %v3225
        %v3274 = vpack.c.b16 %v3232, %v3229
        %v3275 = vpack.c.b16 %v3233, %v3230
        %v3276 = vpack.c.b16 %v3234, %v3231
        %v3277 = vpack.c.b16 %v3238, %v3235
        %v3278 = vpack.c.b16 %v3239, %v3236
        %v3279 = vpack.c.b16 %v3240, %v3237
        %v3280 = vpack.c.b16 %v3244, %v3241
        %v3281 = vpack.c.b16 %v3245, %v3242
        %v3282 = vpack.c.b16 %v3246, %v3243
        %v3283 = vpack.c.b16 %v3250, %v3247
        %v3284 = vpack.c.b16 %v3251, %v3248
        %v3285 = vpack.c.b16 %v3252, %v3249
        %v3286 = vpack.c.b16 %v3256, %v3253
        %v3287 = vpack.c.b16 %v3257, %v3254
        %v3288 = vpack.c.b16 %v3258, %v3255
        %v3289 = vpack.c.b16 %v3262, %v3259
        %v3290 = vpack.c.b16 %v3263, %v3260
        %v3291 = vpack.c.b16 %v3264, %v3261
        %v3292 = vpack.c.b16 %v3268, %v3265
        %v3293 = vpack.c.b16 %v3269, %v3266
        %v3294 = vpack.c.b16 %v3270, %v3267
        %3319 = vmatpush.bf16.msra.mxu0 %v3292
        %3320 = vmatpush.bf16.msra.mxu0 %v3289
        %3321 = vmatpush.bf16.msra.mxu0 %v3286
        %3322 = vmatpush.bf16.msra.mxu0 %v3283
        %3323 = vmatpush.bf16.msra.mxu0 %v3280
        %3324 = vmatpush.bf16.msra.mxu0 %v3277
        %3325 = vmatpush.bf16.msra.mxu0 %v3274
        %3326 = vmatpush.bf16.msra.mxu0 %v3271
        %3327 = vmatmul.bf16.gmra.mxu0 %v3183
        %v3328 = vpop.f32.mrf.mxu0
        %v3329 = vadd.f32 %v3185, %v3328
        %v3330 = vpop.f32.mrf.mxu0
        %v3331 = vadd.f32 %v3185, %v3330
        %3332 = vdwg.mxu0
        %3333 = vmatpush.bf16.msra.mxu0 %v3293
        %3334 = vmatpush.bf16.msra.mxu0 %v3290
        %3335 = vmatpush.bf16.msra.mxu0 %v3287
        %3336 = vmatpush.bf16.msra.mxu0 %v3284
        %3337 = vmatpush.bf16.msra.mxu0 %v3281
        %3338 = vmatpush.bf16.msra.mxu0 %v3278
        %3339 = vmatpush.bf16.msra.mxu0 %v3275
        %3340 = vmatpush.bf16.msra.mxu0 %v3272
        %3341 = vmatmul.bf16.gmra.mxu0 %v3183
        %v3342 = vpop.f32.mrf.mxu0
        %v3343 = vadd.f32 %v3186, %v3342
        %v3344 = vpop.f32.mrf.mxu0
        %v3345 = vadd.f32 %v3186, %v3344
        %3346 = vdwg.mxu0
        %3347 = vmatpush.bf16.msra.mxu0 %v3294
        %3348 = vmatpush.bf16.msra.mxu0 %v3291
        %3349 = vmatpush.bf16.msra.mxu0 %v3288
        %3350 = vmatpush.bf16.msra.mxu0 %v3285
        %3351 = vmatpush.bf16.msra.mxu0 %v3282
        %3352 = vmatpush.bf16.msra.mxu0 %v3279
        %3353 = vmatpush.bf16.msra.mxu0 %v3276
        %3354 = vmatpush.bf16.msra.mxu0 %v3273
        %3355 = vmatmul.bf16.gmra.mxu0 %v3183
        %v3356 = vpop.f32.mrf.mxu0
        %v3357 = vadd.f32 %v3187, %v3356
        %v3358 = vpop.f32.mrf.mxu0
        %v3359 = vadd.f32 %v3187, %v3358
        %3360 = vdwg.mxu0
        %v3361 = vpack.c.bf16 %v3329, %v3329
        %v3362 = vpack.c.bf16 %v3331, %v3331
        %v3363 = vpack.c.bf16 %v3343, %v3343
        %v3364 = vpack.c.bf16 %v3345, %v3345
        %v3365 = vpack.c.bf16 %v3357, %v3357
        %v3366 = vpack.c.bf16 %v3359, %v3359
        %v3369 = vunpack.c.l.b16 %v3361
        %v3370 = vunpack.c.l.b16 %v3362
        %v3371 = vpack.c.b16 %v3370, %v3369
        %v3374 = vunpack.c.l.b16 %v3363
        %v3375 = vunpack.c.l.b16 %v3364
        %v3376 = vpack.c.b16 %v3375, %v3374
        %v3378 = vsel %vm1499, %v3371, 0
        %v3381 = vsel %vm1499, %v3376, 0
        %3383 = vmatpush.bf16.xpose.msra.mxu0 0
        %3384 = vmatpush.bf16.xpose.msra.mxu0 0
        %3385 = vmatpush.bf16.xpose.msra.mxu0 0
        %3386 = vmatpush.bf16.xpose.msra.mxu0 0
        %3387 = vmatpush.bf16.xpose.msra.mxu0 0
        %3388 = vmatpush.bf16.xpose.msra.mxu0 0
        %3389 = vmatpush.bf16.xpose.msra.mxu0 0
        %3390 = vmatpush.bf16.xpose.msra.mxu0 %v3381
        %3391 = vmatmul.bf16.gmra.mxu0 %v3378
        %v3392 = vpop.f32.mrf.mxu0
        %v3393 = vadd.f32 0.0, %v3392
        %v3394 = vpop.f32.mrf.mxu0
        %v3395 = vadd.f32 0.0, %v3394
        %3396 = vdwg.mxu0
        %v3397 = vsel %vm1499, %v3393, -inf
        %3398 = vmax.xlane.f32.xlu0 %v3397
        %v3399 = vpop.xlane.xlu0 %3398
        %v3400 = vsel %vm1499, %v3395, -inf
        %3401 = vmax.xlane.f32.xlu0 %v3400
        %v3402 = vpop.xlane.xlu0 %3401
        %v3403 = vsub.f32 %v3393, %v3399
        %v3404 = vsub.f32 %v3395, %v3402
        %v3405 = vmul.f32 %v3403, 1.442695
        %v3406 = vpow.pop %v3405
        %v3407 = vmul.f32 %v3404, 1.442695
        %v3408 = vpow.pop %v3407
        %v3409 = vsel %vm1499, %v3406, 0.0
        %3410 = vadd.xlane.f32.xlu0 %v3409
        %v3411 = vpop.xlane.xlu0 %3410
        %v3412 = vsel %vm1499, %v3408, 0.0
        %3413 = vadd.xlane.f32.xlu0 %v3412
        %v3414 = vpop.xlane.xlu0 %3413
        %v3415 = vpack.c.bf16 %v3408, %v3406
        %v3418 = vunpack.c.l.b16 %v3365
        %v3419 = vunpack.c.l.b16 %v3366
        %v3420 = vpack.c.b16 %v3419, %v3418
        %v3423 = vsel %vm1499, %v3415, 0
        %3425 = vmatpush.bf16.msra.mxu0 0
        %3426 = vmatpush.bf16.msra.mxu0 0
        %3427 = vmatpush.bf16.msra.mxu0 0
        %3428 = vmatpush.bf16.msra.mxu0 0
        %3429 = vmatpush.bf16.msra.mxu0 0
        %3430 = vmatpush.bf16.msra.mxu0 0
        %3431 = vmatpush.bf16.msra.mxu0 0
        %3432 = vmatpush.bf16.msra.mxu0 %v3420
        %3433 = vmatmul.bf16.gmra.mxu0 %v3423
        %v3434 = vpop.f32.mrf.mxu0
        %v3435 = vadd.f32 0.0, %v3434
        %v3436 = vpop.f32.mrf.mxu0
        %v3437 = vadd.f32 0.0, %v3436
        %3438 = vdwg.mxu0
        %v3439 = vrcp.pop %v3411
        %v3440 = vrcp.pop %v3414
        %v3441 = vmul.f32 %v3435, %v3439
        %v3442 = vmul.f32 %v3437, %v3440
        %v3443 = vpack.c.bf16 %v3442, %v3441
        %3444 = vrot.lane.b32.xlu0 %v3371, 112
        %v3445 = vpop.permute.xlu0 %3444
        %3446 = vrot.lane.b32.xlu0 %v3376, 112
        %v3447 = vpop.permute.xlu0 %3446
        %v3449 = vsel %vm1499, %v3445, 0
        %v3452 = vsel %vm1499, %v3447, 0
        %3454 = vmatpush.bf16.xpose.msra.mxu0 0
        %3455 = vmatpush.bf16.xpose.msra.mxu0 0
        %3456 = vmatpush.bf16.xpose.msra.mxu0 0
        %3457 = vmatpush.bf16.xpose.msra.mxu0 0
        %3458 = vmatpush.bf16.xpose.msra.mxu0 0
        %3459 = vmatpush.bf16.xpose.msra.mxu0 0
        %3460 = vmatpush.bf16.xpose.msra.mxu0 0
        %3461 = vmatpush.bf16.xpose.msra.mxu0 %v3452
        %3462 = vmatmul.bf16.gmra.mxu0 %v3449
        %v3463 = vpop.f32.mrf.mxu0
        %v3464 = vadd.f32 0.0, %v3463
        %v3465 = vpop.f32.mrf.mxu0
        %v3466 = vadd.f32 0.0, %v3465
        %3467 = vdwg.mxu0
        %v3468 = vsel %vm1499, %v3464, -inf
        %3469 = vmax.xlane.f32.xlu0 %v3468
        %v3470 = vpop.xlane.xlu0 %3469
        %v3471 = vsel %vm1499, %v3466, -inf
        %3472 = vmax.xlane.f32.xlu0 %v3471
        %v3473 = vpop.xlane.xlu0 %3472
        %v3474 = vsub.f32 %v3464, %v3470
        %v3475 = vsub.f32 %v3466, %v3473
        %v3476 = vmul.f32 %v3474, 1.442695
        %v3477 = vpow.pop %v3476
        %v3478 = vmul.f32 %v3475, 1.442695
        %v3479 = vpow.pop %v3478
        %v3480 = vsel %vm1499, %v3477, 0.0
        %3481 = vadd.xlane.f32.xlu0 %v3480
        %v3482 = vpop.xlane.xlu0 %3481
        %v3483 = vsel %vm1499, %v3479, 0.0
        %3484 = vadd.xlane.f32.xlu0 %v3483
        %v3485 = vpop.xlane.xlu0 %3484
        %v3486 = vpack.c.bf16 %v3479, %v3477
        %3487 = vrot.lane.b32.xlu0 %v3420, 112
        %v3488 = vpop.permute.xlu0 %3487
        %v3491 = vsel %vm1499, %v3486, 0
        %3493 = vmatpush.bf16.msra.mxu0 0
        %3494 = vmatpush.bf16.msra.mxu0 0
        %3495 = vmatpush.bf16.msra.mxu0 0
        %3496 = vmatpush.bf16.msra.mxu0 0
        %3497 = vmatpush.bf16.msra.mxu0 0
        %3498 = vmatpush.bf16.msra.mxu0 0
        %3499 = vmatpush.bf16.msra.mxu0 0
        %3500 = vmatpush.bf16.msra.mxu0 %v3488
        %3501 = vmatmul.bf16.gmra.mxu0 %v3491
        %v3502 = vpop.f32.mrf.mxu0
        %v3503 = vadd.f32 0.0, %v3502
        %v3504 = vpop.f32.mrf.mxu0
        %v3505 = vadd.f32 0.0, %v3504
        %3506 = vdwg.mxu0
        %v3507 = vrcp.pop %v3482
        %v3508 = vrcp.pop %v3485
        %v3509 = vmul.f32 %v3503, %v3507
        %v3510 = vmul.f32 %v3505, %v3508
        %v3511 = vpack.c.bf16 %v3510, %v3509
        %v3514 = vunpack.c.l.b16 %v3168
        %v3515 = vunpack.c.l.b16 %v3169
        %v3516 = vpack.c.b16 %v3515, %v3514
        %v3519 = vsel %vm1499, %v3511, 0
        %3521 = vmatpush.bf16.msra.mxu0 0
        %3522 = vmatpush.bf16.msra.mxu0 0
        %3523 = vmatpush.bf16.msra.mxu0 0
        %3524 = vmatpush.bf16.msra.mxu0 0
        %3525 = vmatpush.bf16.msra.mxu0 0
        %3526 = vmatpush.bf16.msra.mxu0 0
        %3527 = vmatpush.bf16.msra.mxu0 0
        %3528 = vmatpush.bf16.msra.mxu0 %v3516
        %3529 = vmatmul.bf16.gmra.mxu0 %v3519
        %v3530 = vpop.f32.mrf.mxu0
        %v3531 = vadd.f32 0.0, %v3530
        %v3532 = vpop.f32.mrf.mxu0
        %v3533 = vadd.f32 0.0, %v3532
        %3534 = vdwg.mxu0
        %v3537 = vunpack.c.l.b16 %v3166
        %v3538 = vunpack.c.l.b16 %v3167
        %v3539 = vpack.c.b16 %v3538, %v3537
        %v3542 = vsel %vm1499, %v3443, 0
        %3544 = vmatpush.bf16.msra.mxu0 0
        %3545 = vmatpush.bf16.msra.mxu0 0
        %3546 = vmatpush.bf16.msra.mxu0 0
        %3547 = vmatpush.bf16.msra.mxu0 0
        %3548 = vmatpush.bf16.msra.mxu0 0
        %3549 = vmatpush.bf16.msra.mxu0 0
        %3550 = vmatpush.bf16.msra.mxu0 0
        %3551 = vmatpush.bf16.msra.mxu0 %v3539
        %3552 = vmatmul.bf16.gmra.mxu0 %v3542
        %v3553 = vpop.f32.mrf.mxu0
        %v3554 = vadd.f32 %v3531, %v3553
        %v3555 = vpop.f32.mrf.mxu0
        %v3556 = vadd.f32 %v3533, %v3555
        %3557 = vdwg.mxu0
        %3558 = vrot.lane.b32.xlu0 %v3371, 96
        %v3559 = vpop.permute.xlu0 %3558
        %3560 = vrot.lane.b32.xlu0 %v3376, 96
        %v3561 = vpop.permute.xlu0 %3560
        %v3563 = vsel %vm1499, %v3559, 0
        %v3566 = vsel %vm1499, %v3561, 0
        %3568 = vmatpush.bf16.xpose.msra.mxu0 0
        %3569 = vmatpush.bf16.xpose.msra.mxu0 0
        %3570 = vmatpush.bf16.xpose.msra.mxu0 0
        %3571 = vmatpush.bf16.xpose.msra.mxu0 0
        %3572 = vmatpush.bf16.xpose.msra.mxu0 0
        %3573 = vmatpush.bf16.xpose.msra.mxu0 0
        %3574 = vmatpush.bf16.xpose.msra.mxu0 0
        %3575 = vmatpush.bf16.xpose.msra.mxu0 %v3566
        %3576 = vmatmul.bf16.gmra.mxu0 %v3563
        %v3577 = vpop.f32.mrf.mxu0
        %v3578 = vadd.f32 0.0, %v3577
        %v3579 = vpop.f32.mrf.mxu0
        %v3580 = vadd.f32 0.0, %v3579
        %3581 = vdwg.mxu0
        %v3582 = vsel %vm1499, %v3578, -inf
        %3583 = vmax.xlane.f32.xlu0 %v3582
        %v3584 = vpop.xlane.xlu0 %3583
        %v3585 = vsel %vm1499, %v3580, -inf
        %3586 = vmax.xlane.f32.xlu0 %v3585
        %v3587 = vpop.xlane.xlu0 %3586
        %v3588 = vsub.f32 %v3578, %v3584
        %v3589 = vsub.f32 %v3580, %v3587
        %v3590 = vmul.f32 %v3588, 1.442695
        %v3591 = vpow.pop %v3590
        %v3592 = vmul.f32 %v3589, 1.442695
        %v3593 = vpow.pop %v3592
        %v3594 = vsel %vm1499, %v3591, 0.0
        %3595 = vadd.xlane.f32.xlu0 %v3594
        %v3596 = vpop.xlane.xlu0 %3595
        %v3597 = vsel %vm1499, %v3593, 0.0
        %3598 = vadd.xlane.f32.xlu0 %v3597
        %v3599 = vpop.xlane.xlu0 %3598
        %v3600 = vpack.c.bf16 %v3593, %v3591
        %3601 = vrot.lane.b32.xlu0 %v3420, 96
        %v3602 = vpop.permute.xlu0 %3601
        %v3605 = vsel %vm1499, %v3600, 0
        %3607 = vmatpush.bf16.msra.mxu0 0
        %3608 = vmatpush.bf16.msra.mxu0 0
        %3609 = vmatpush.bf16.msra.mxu0 0
        %3610 = vmatpush.bf16.msra.mxu0 0
        %3611 = vmatpush.bf16.msra.mxu0 0
        %3612 = vmatpush.bf16.msra.mxu0 0
        %3613 = vmatpush.bf16.msra.mxu0 0
        %3614 = vmatpush.bf16.msra.mxu0 %v3602
        %3615 = vmatmul.bf16.gmra.mxu0 %v3605
        %v3616 = vpop.f32.mrf.mxu0
        %v3617 = vadd.f32 0.0, %v3616
        %v3618 = vpop.f32.mrf.mxu0
        %v3619 = vadd.f32 0.0, %v3618
        %3620 = vdwg.mxu0
        %v3621 = vrcp.pop %v3596
        %v3622 = vrcp.pop %v3599
        %v3623 = vmul.f32 %v3617, %v3621
        %v3624 = vmul.f32 %v3619, %v3622
        %v3625 = vpack.c.bf16 %v3624, %v3623
        %v3628 = vunpack.c.l.b16 %v3170
        %v3629 = vunpack.c.l.b16 %v3171
        %v3630 = vpack.c.b16 %v3629, %v3628
        %v3633 = vsel %vm1499, %v3625, 0
        %3635 = vmatpush.bf16.msra.mxu0 0
        %3636 = vmatpush.bf16.msra.mxu0 0
        %3637 = vmatpush.bf16.msra.mxu0 0
        %3638 = vmatpush.bf16.msra.mxu0 0
        %3639 = vmatpush.bf16.msra.mxu0 0
        %3640 = vmatpush.bf16.msra.mxu0 0
        %3641 = vmatpush.bf16.msra.mxu0 0
        %3642 = vmatpush.bf16.msra.mxu0 %v3630
        %3643 = vmatmul.bf16.gmra.mxu0 %v3633
        %v3644 = vpop.f32.mrf.mxu0
        %v3645 = vadd.f32 0.0, %v3644
        %v3646 = vpop.f32.mrf.mxu0
        %v3647 = vadd.f32 0.0, %v3646
        %3648 = vdwg.mxu0
        %v3649 = vadd.f32 %v3554, %v3645
        %v3650 = vadd.f32 %v3556, %v3647
        %3651 = vrot.lane.b32.xlu0 %v3371, 80
        %v3652 = vpop.permute.xlu0 %3651
        %3653 = vrot.lane.b32.xlu0 %v3376, 80
        %v3654 = vpop.permute.xlu0 %3653
        %v3656 = vsel %vm1499, %v3652, 0
        %v3659 = vsel %vm1499, %v3654, 0
        %3661 = vmatpush.bf16.xpose.msra.mxu0 0
        %3662 = vmatpush.bf16.xpose.msra.mxu0 0
        %3663 = vmatpush.bf16.xpose.msra.mxu0 0
        %3664 = vmatpush.bf16.xpose.msra.mxu0 0
        %3665 = vmatpush.bf16.xpose.msra.mxu0 0
        %3666 = vmatpush.bf16.xpose.msra.mxu0 0
        %3667 = vmatpush.bf16.xpose.msra.mxu0 0
        %3668 = vmatpush.bf16.xpose.msra.mxu0 %v3659
        %3669 = vmatmul.bf16.gmra.mxu0 %v3656
        %v3670 = vpop.f32.mrf.mxu0
        %v3671 = vadd.f32 0.0, %v3670
        %v3672 = vpop.f32.mrf.mxu0
        %v3673 = vadd.f32 0.0, %v3672
        %3674 = vdwg.mxu0
        %v3675 = vsel %vm1499, %v3671, -inf
        %3676 = vmax.xlane.f32.xlu0 %v3675
        %v3677 = vpop.xlane.xlu0 %3676
        %v3678 = vsel %vm1499, %v3673, -inf
        %3679 = vmax.xlane.f32.xlu0 %v3678
        %v3680 = vpop.xlane.xlu0 %3679
        %v3681 = vsub.f32 %v3671, %v3677
        %v3682 = vsub.f32 %v3673, %v3680
        %v3683 = vmul.f32 %v3681, 1.442695
        %v3684 = vpow.pop %v3683
        %v3685 = vmul.f32 %v3682, 1.442695
        %v3686 = vpow.pop %v3685
        %v3687 = vsel %vm1499, %v3684, 0.0
        %3688 = vadd.xlane.f32.xlu0 %v3687
        %v3689 = vpop.xlane.xlu0 %3688
        %v3690 = vsel %vm1499, %v3686, 0.0
        %3691 = vadd.xlane.f32.xlu0 %v3690
        %v3692 = vpop.xlane.xlu0 %3691
        %v3693 = vpack.c.bf16 %v3686, %v3684
        %3694 = vrot.lane.b32.xlu0 %v3420, 80
        %v3695 = vpop.permute.xlu0 %3694
        %v3698 = vsel %vm1499, %v3693, 0
        %3700 = vmatpush.bf16.msra.mxu0 0
        %3701 = vmatpush.bf16.msra.mxu0 0
        %3702 = vmatpush.bf16.msra.mxu0 0
        %3703 = vmatpush.bf16.msra.mxu0 0
        %3704 = vmatpush.bf16.msra.mxu0 0
        %3705 = vmatpush.bf16.msra.mxu0 0
        %3706 = vmatpush.bf16.msra.mxu0 0
        %3707 = vmatpush.bf16.msra.mxu0 %v3695
        %3708 = vmatmul.bf16.gmra.mxu0 %v3698
        %v3709 = vpop.f32.mrf.mxu0
        %v3710 = vadd.f32 0.0, %v3709
        %v3711 = vpop.f32.mrf.mxu0
        %v3712 = vadd.f32 0.0, %v3711
        %3713 = vdwg.mxu0
        %v3714 = vrcp.pop %v3689
        %v3715 = vrcp.pop %v3692
        %v3716 = vmul.f32 %v3710, %v3714
        %v3717 = vmul.f32 %v3712, %v3715
        %v3718 = vpack.c.bf16 %v3717, %v3716
        %v3721 = vunpack.c.l.b16 %v3172
        %v3722 = vunpack.c.l.b16 %v3173
        %v3723 = vpack.c.b16 %v3722, %v3721
        %v3726 = vsel %vm1499, %v3718, 0
        %3728 = vmatpush.bf16.msra.mxu0 0
        %3729 = vmatpush.bf16.msra.mxu0 0
        %3730 = vmatpush.bf16.msra.mxu0 0
        %3731 = vmatpush.bf16.msra.mxu0 0
        %3732 = vmatpush.bf16.msra.mxu0 0
        %3733 = vmatpush.bf16.msra.mxu0 0
        %3734 = vmatpush.bf16.msra.mxu0 0
        %3735 = vmatpush.bf16.msra.mxu0 %v3723
        %3736 = vmatmul.bf16.gmra.mxu0 %v3726
        %v3737 = vpop.f32.mrf.mxu0
        %v3738 = vadd.f32 0.0, %v3737
        %v3739 = vpop.f32.mrf.mxu0
        %v3740 = vadd.f32 0.0, %v3739
        %3741 = vdwg.mxu0
        %v3742 = vadd.f32 %v3649, %v3738
        %v3743 = vadd.f32 %v3650, %v3740
        %3744 = vrot.lane.b32.xlu0 %v3371, 64
        %v3745 = vpop.permute.xlu0 %3744
        %3746 = vrot.lane.b32.xlu0 %v3376, 64
        %v3747 = vpop.permute.xlu0 %3746
        %v3749 = vsel %vm1499, %v3745, 0
        %v3752 = vsel %vm1499, %v3747, 0
        %3754 = vmatpush.bf16.xpose.msra.mxu0 0
        %3755 = vmatpush.bf16.xpose.msra.mxu0 0
        %3756 = vmatpush.bf16.xpose.msra.mxu0 0
        %3757 = vmatpush.bf16.xpose.msra.mxu0 0
        %3758 = vmatpush.bf16.xpose.msra.mxu0 0
        %3759 = vmatpush.bf16.xpose.msra.mxu0 0
        %3760 = vmatpush.bf16.xpose.msra.mxu0 0
        %3761 = vmatpush.bf16.xpose.msra.mxu0 %v3752
        %3762 = vmatmul.bf16.gmra.mxu0 %v3749
        %v3763 = vpop.f32.mrf.mxu0
        %v3764 = vadd.f32 0.0, %v3763
        %v3765 = vpop.f32.mrf.mxu0
        %v3766 = vadd.f32 0.0, %v3765
        %3767 = vdwg.mxu0
        %v3768 = vsel %vm1499, %v3764, -inf
        %3769 = vmax.xlane.f32.xlu0 %v3768
        %v3770 = vpop.xlane.xlu0 %3769
        %v3771 = vsel %vm1499, %v3766, -inf
        %3772 = vmax.xlane.f32.xlu0 %v3771
        %v3773 = vpop.xlane.xlu0 %3772
        %v3774 = vsub.f32 %v3764, %v3770
        %v3775 = vsub.f32 %v3766, %v3773
        %v3776 = vmul.f32 %v3774, 1.442695
        %v3777 = vpow.pop %v3776
        %v3778 = vmul.f32 %v3775, 1.442695
        %v3779 = vpow.pop %v3778
        %v3780 = vsel %vm1499, %v3777, 0.0
        %3781 = vadd.xlane.f32.xlu0 %v3780
        %v3782 = vpop.xlane.xlu0 %3781
        %v3783 = vsel %vm1499, %v3779, 0.0
        %3784 = vadd.xlane.f32.xlu0 %v3783
        %v3785 = vpop.xlane.xlu0 %3784
        %v3786 = vpack.c.bf16 %v3779, %v3777
        %3787 = vrot.lane.b32.xlu0 %v3420, 64
        %v3788 = vpop.permute.xlu0 %3787
        %v3791 = vsel %vm1499, %v3786, 0
        %3793 = vmatpush.bf16.msra.mxu0 0
        %3794 = vmatpush.bf16.msra.mxu0 0
        %3795 = vmatpush.bf16.msra.mxu0 0
        %3796 = vmatpush.bf16.msra.mxu0 0
        %3797 = vmatpush.bf16.msra.mxu0 0
        %3798 = vmatpush.bf16.msra.mxu0 0
        %3799 = vmatpush.bf16.msra.mxu0 0
        %3800 = vmatpush.bf16.msra.mxu0 %v3788
        %3801 = vmatmul.bf16.gmra.mxu0 %v3791
        %v3802 = vpop.f32.mrf.mxu0
        %v3803 = vadd.f32 0.0, %v3802
        %v3804 = vpop.f32.mrf.mxu0
        %v3805 = vadd.f32 0.0, %v3804
        %3806 = vdwg.mxu0
        %v3807 = vrcp.pop %v3782
        %v3808 = vrcp.pop %v3785
        %v3809 = vmul.f32 %v3803, %v3807
        %v3810 = vmul.f32 %v3805, %v3808
        %v3811 = vpack.c.bf16 %v3810, %v3809
        %v3814 = vunpack.c.l.b16 %v3174
        %v3815 = vunpack.c.l.b16 %v3175
        %v3816 = vpack.c.b16 %v3815, %v3814
        %v3819 = vsel %vm1499, %v3811, 0
        %3821 = vmatpush.bf16.msra.mxu0 0
        %3822 = vmatpush.bf16.msra.mxu0 0
        %3823 = vmatpush.bf16.msra.mxu0 0
        %3824 = vmatpush.bf16.msra.mxu0 0
        %3825 = vmatpush.bf16.msra.mxu0 0
        %3826 = vmatpush.bf16.msra.mxu0 0
        %3827 = vmatpush.bf16.msra.mxu0 0
        %3828 = vmatpush.bf16.msra.mxu0 %v3816
        %3829 = vmatmul.bf16.gmra.mxu0 %v3819
        %v3830 = vpop.f32.mrf.mxu0
        %v3831 = vadd.f32 0.0, %v3830
        %v3832 = vpop.f32.mrf.mxu0
        %v3833 = vadd.f32 0.0, %v3832
        %3834 = vdwg.mxu0
        %v3835 = vadd.f32 %v3742, %v3831
        %v3836 = vadd.f32 %v3743, %v3833
        %3837 = vrot.lane.b32.xlu0 %v3371, 48
        %v3838 = vpop.permute.xlu0 %3837
        %3839 = vrot.lane.b32.xlu0 %v3376, 48
        %v3840 = vpop.permute.xlu0 %3839
        %v3842 = vsel %vm1499, %v3838, 0
        %v3845 = vsel %vm1499, %v3840, 0
        %3847 = vmatpush.bf16.xpose.msra.mxu0 0
        %3848 = vmatpush.bf16.xpose.msra.mxu0 0
        %3849 = vmatpush.bf16.xpose.msra.mxu0 0
        %3850 = vmatpush.bf16.xpose.msra.mxu0 0
        %3851 = vmatpush.bf16.xpose.msra.mxu0 0
        %3852 = vmatpush.bf16.xpose.msra.mxu0 0
        %3853 = vmatpush.bf16.xpose.msra.mxu0 0
        %3854 = vmatpush.bf16.xpose.msra.mxu0 %v3845
        %3855 = vmatmul.bf16.gmra.mxu0 %v3842
        %v3856 = vpop.f32.mrf.mxu0
        %v3857 = vadd.f32 0.0, %v3856
        %v3858 = vpop.f32.mrf.mxu0
        %v3859 = vadd.f32 0.0, %v3858
        %3860 = vdwg.mxu0
        %v3861 = vsel %vm1499, %v3857, -inf
        %3862 = vmax.xlane.f32.xlu0 %v3861
        %v3863 = vpop.xlane.xlu0 %3862
        %v3864 = vsel %vm1499, %v3859, -inf
        %3865 = vmax.xlane.f32.xlu0 %v3864
        %v3866 = vpop.xlane.xlu0 %3865
        %v3867 = vsub.f32 %v3857, %v3863
        %v3868 = vsub.f32 %v3859, %v3866
        %v3869 = vmul.f32 %v3867, 1.442695
        %v3870 = vpow.pop %v3869
        %v3871 = vmul.f32 %v3868, 1.442695
        %v3872 = vpow.pop %v3871
        %v3873 = vsel %vm1499, %v3870, 0.0
        %3874 = vadd.xlane.f32.xlu0 %v3873
        %v3875 = vpop.xlane.xlu0 %3874
        %v3876 = vsel %vm1499, %v3872, 0.0
        %3877 = vadd.xlane.f32.xlu0 %v3876
        %v3878 = vpop.xlane.xlu0 %3877
        %v3879 = vpack.c.bf16 %v3872, %v3870
        %3880 = vrot.lane.b32.xlu0 %v3420, 48
        %v3881 = vpop.permute.xlu0 %3880
        %v3884 = vsel %vm1499, %v3879, 0
        %3886 = vmatpush.bf16.msra.mxu0 0
        %3887 = vmatpush.bf16.msra.mxu0 0
        %3888 = vmatpush.bf16.msra.mxu0 0
        %3889 = vmatpush.bf16.msra.mxu0 0
        %3890 = vmatpush.bf16.msra.mxu0 0
        %3891 = vmatpush.bf16.msra.mxu0 0
        %3892 = vmatpush.bf16.msra.mxu0 0
        %3893 = vmatpush.bf16.msra.mxu0 %v3881
        %3894 = vmatmul.bf16.gmra.mxu0 %v3884
        %v3895 = vpop.f32.mrf.mxu0
        %v3896 = vadd.f32 0.0, %v3895
        %v3897 = vpop.f32.mrf.mxu0
        %v3898 = vadd.f32 0.0, %v3897
        %3899 = vdwg.mxu0
        %v3900 = vrcp.pop %v3875
        %v3901 = vrcp.pop %v3878
        %v3902 = vmul.f32 %v3896, %v3900
        %v3903 = vmul.f32 %v3898, %v3901
        %v3904 = vpack.c.bf16 %v3903, %v3902
        %v3907 = vunpack.c.l.b16 %v3176
        %v3908 = vunpack.c.l.b16 %v3177
        %v3909 = vpack.c.b16 %v3908, %v3907
        %v3912 = vsel %vm1499, %v3904, 0
        %3914 = vmatpush.bf16.msra.mxu0 0
        %3915 = vmatpush.bf16.msra.mxu0 0
        %3916 = vmatpush.bf16.msra.mxu0 0
        %3917 = vmatpush.bf16.msra.mxu0 0
        %3918 = vmatpush.bf16.msra.mxu0 0
        %3919 = vmatpush.bf16.msra.mxu0 0
        %3920 = vmatpush.bf16.msra.mxu0 0
        %3921 = vmatpush.bf16.msra.mxu0 %v3909
        %3922 = vmatmul.bf16.gmra.mxu0 %v3912
        %v3923 = vpop.f32.mrf.mxu0
        %v3924 = vadd.f32 0.0, %v3923
        %v3925 = vpop.f32.mrf.mxu0
        %v3926 = vadd.f32 0.0, %v3925
        %3927 = vdwg.mxu0
        %v3928 = vadd.f32 %v3835, %v3924
        %v3929 = vadd.f32 %v3836, %v3926
        %3930 = vrot.lane.b32.xlu0 %v3371, 32
        %v3931 = vpop.permute.xlu0 %3930
        %3932 = vrot.lane.b32.xlu0 %v3376, 32
        %v3933 = vpop.permute.xlu0 %3932
        %v3935 = vsel %vm1499, %v3931, 0
        %v3938 = vsel %vm1499, %v3933, 0
        %3940 = vmatpush.bf16.xpose.msra.mxu0 0
        %3941 = vmatpush.bf16.xpose.msra.mxu0 0
        %3942 = vmatpush.bf16.xpose.msra.mxu0 0
        %3943 = vmatpush.bf16.xpose.msra.mxu0 0
        %3944 = vmatpush.bf16.xpose.msra.mxu0 0
        %3945 = vmatpush.bf16.xpose.msra.mxu0 0
        %3946 = vmatpush.bf16.xpose.msra.mxu0 0
        %3947 = vmatpush.bf16.xpose.msra.mxu0 %v3938
        %3948 = vmatmul.bf16.gmra.mxu0 %v3935
        %v3949 = vpop.f32.mrf.mxu0
        %v3950 = vadd.f32 0.0, %v3949
        %v3951 = vpop.f32.mrf.mxu0
        %v3952 = vadd.f32 0.0, %v3951
        %3953 = vdwg.mxu0
        %v3954 = vsel %vm1499, %v3950, -inf
        %3955 = vmax.xlane.f32.xlu0 %v3954
        %v3956 = vpop.xlane.xlu0 %3955
        %v3957 = vsel %vm1499, %v3952, -inf
        %3958 = vmax.xlane.f32.xlu0 %v3957
        %v3959 = vpop.xlane.xlu0 %3958
        %v3960 = vsub.f32 %v3950, %v3956
        %v3961 = vsub.f32 %v3952, %v3959
        %v3962 = vmul.f32 %v3960, 1.442695
        %v3963 = vpow.pop %v3962
        %v3964 = vmul.f32 %v3961, 1.442695
        %v3965 = vpow.pop %v3964
        %v3966 = vsel %vm1499, %v3963, 0.0
        %3967 = vadd.xlane.f32.xlu0 %v3966
        %v3968 = vpop.xlane.xlu0 %3967
        %v3969 = vsel %vm1499, %v3965, 0.0
        %3970 = vadd.xlane.f32.xlu0 %v3969
        %v3971 = vpop.xlane.xlu0 %3970
        %v3972 = vpack.c.bf16 %v3965, %v3963
        %3973 = vrot.lane.b32.xlu0 %v3420, 32
        %v3974 = vpop.permute.xlu0 %3973
        %v3977 = vsel %vm1499, %v3972, 0
        %3979 = vmatpush.bf16.msra.mxu0 0
        %3980 = vmatpush.bf16.msra.mxu0 0
        %3981 = vmatpush.bf16.msra.mxu0 0
        %3982 = vmatpush.bf16.msra.mxu0 0
        %3983 = vmatpush.bf16.msra.mxu0 0
        %3984 = vmatpush.bf16.msra.mxu0 0
        %3985 = vmatpush.bf16.msra.mxu0 0
        %3986 = vmatpush.bf16.msra.mxu0 %v3974
        %3987 = vmatmul.bf16.gmra.mxu0 %v3977
        %v3988 = vpop.f32.mrf.mxu0
        %v3989 = vadd.f32 0.0, %v3988
        %v3990 = vpop.f32.mrf.mxu0
        %v3991 = vadd.f32 0.0, %v3990
        %3992 = vdwg.mxu0
        %v3993 = vrcp.pop %v3968
        %v3994 = vrcp.pop %v3971
        %v3995 = vmul.f32 %v3989, %v3993
        %v3996 = vmul.f32 %v3991, %v3994
        %v3997 = vpack.c.bf16 %v3996, %v3995
        %v4000 = vunpack.c.l.b16 %v3178
        %v4001 = vunpack.c.l.b16 %v3179
        %v4002 = vpack.c.b16 %v4001, %v4000
        %v4005 = vsel %vm1499, %v3997, 0
        %4007 = vmatpush.bf16.msra.mxu0 0
        %4008 = vmatpush.bf16.msra.mxu0 0
        %4009 = vmatpush.bf16.msra.mxu0 0
        %4010 = vmatpush.bf16.msra.mxu0 0
        %4011 = vmatpush.bf16.msra.mxu0 0
        %4012 = vmatpush.bf16.msra.mxu0 0
        %4013 = vmatpush.bf16.msra.mxu0 0
        %4014 = vmatpush.bf16.msra.mxu0 %v4002
        %4015 = vmatmul.bf16.gmra.mxu0 %v4005
        %v4016 = vpop.f32.mrf.mxu0
        %v4017 = vadd.f32 0.0, %v4016
        %v4018 = vpop.f32.mrf.mxu0
        %v4019 = vadd.f32 0.0, %v4018
        %4020 = vdwg.mxu0
        %v4021 = vadd.f32 %v3928, %v4017
        %v4022 = vadd.f32 %v3929, %v4019
        %4023 = vrot.lane.b32.xlu0 %v3371, 16
        %v4024 = vpop.permute.xlu0 %4023
        %4025 = vrot.lane.b32.xlu0 %v3376, 16
        %v4026 = vpop.permute.xlu0 %4025
        %v4028 = vsel %vm1499, %v4024, 0
        %v4031 = vsel %vm1499, %v4026, 0
        %4033 = vmatpush.bf16.xpose.msra.mxu0 0
        %4034 = vmatpush.bf16.xpose.msra.mxu0 0
        %4035 = vmatpush.bf16.xpose.msra.mxu0 0
        %4036 = vmatpush.bf16.xpose.msra.mxu0 0
        %4037 = vmatpush.bf16.xpose.msra.mxu0 0
        %4038 = vmatpush.bf16.xpose.msra.mxu0 0
        %4039 = vmatpush.bf16.xpose.msra.mxu0 0
        %4040 = vmatpush.bf16.xpose.msra.mxu0 %v4031
        %4041 = vmatmul.bf16.gmra.mxu0 %v4028
        %v4042 = vpop.f32.mrf.mxu0
        %v4043 = vadd.f32 0.0, %v4042
        %v4044 = vpop.f32.mrf.mxu0
        %v4045 = vadd.f32 0.0, %v4044
        %4046 = vdwg.mxu0
        %v4047 = vsel %vm1499, %v4043, -inf
        %4048 = vmax.xlane.f32.xlu0 %v4047
        %v4049 = vpop.xlane.xlu0 %4048
        %v4050 = vsel %vm1499, %v4045, -inf
        %4051 = vmax.xlane.f32.xlu0 %v4050
        %v4052 = vpop.xlane.xlu0 %4051
        %v4053 = vsub.f32 %v4043, %v4049
        %v4054 = vsub.f32 %v4045, %v4052
        %v4055 = vmul.f32 %v4053, 1.442695
        %v4056 = vpow.pop %v4055
        %v4057 = vmul.f32 %v4054, 1.442695
        %v4058 = vpow.pop %v4057
        %v4059 = vsel %vm1499, %v4056, 0.0
        %4060 = vadd.xlane.f32.xlu0 %v4059
        %v4061 = vpop.xlane.xlu0 %4060
        %v4062 = vsel %vm1499, %v4058, 0.0
        %4063 = vadd.xlane.f32.xlu0 %v4062
        %v4064 = vpop.xlane.xlu0 %4063
        %v4065 = vpack.c.bf16 %v4058, %v4056
        %4066 = vrot.lane.b32.xlu0 %v3420, 16
        %v4067 = vpop.permute.xlu0 %4066
        %v4070 = vsel %vm1499, %v4065, 0
        %4072 = vmatpush.bf16.msra.mxu0 0
        %4073 = vmatpush.bf16.msra.mxu0 0
        %4074 = vmatpush.bf16.msra.mxu0 0
        %4075 = vmatpush.bf16.msra.mxu0 0
        %4076 = vmatpush.bf16.msra.mxu0 0
        %4077 = vmatpush.bf16.msra.mxu0 0
        %4078 = vmatpush.bf16.msra.mxu0 0
        %4079 = vmatpush.bf16.msra.mxu0 %v4067
        %4080 = vmatmul.bf16.gmra.mxu0 %v4070
        %v4081 = vpop.f32.mrf.mxu0
        %v4082 = vadd.f32 0.0, %v4081
        %v4083 = vpop.f32.mrf.mxu0
        %v4084 = vadd.f32 0.0, %v4083
        %4085 = vdwg.mxu0
        %v4086 = vrcp.pop %v4061
        %v4087 = vrcp.pop %v4064
        %v4088 = vmul.f32 %v4082, %v4086
        %v4089 = vmul.f32 %v4084, %v4087
        %v4090 = vpack.c.bf16 %v4089, %v4088
        %v4093 = vunpack.c.l.b16 %v3180
        %v4094 = vunpack.c.l.b16 %v3181
        %v4095 = vpack.c.b16 %v4094, %v4093
        %v4098 = vsel %vm1499, %v4090, 0
        %4100 = vmatpush.bf16.msra.mxu0 0
        %4101 = vmatpush.bf16.msra.mxu0 0
        %4102 = vmatpush.bf16.msra.mxu0 0
        %4103 = vmatpush.bf16.msra.mxu0 0
        %4104 = vmatpush.bf16.msra.mxu0 0
        %4105 = vmatpush.bf16.msra.mxu0 0
        %4106 = vmatpush.bf16.msra.mxu0 0
        %4107 = vmatpush.bf16.msra.mxu0 %v4095
        %4108 = vmatmul.bf16.gmra.mxu0 %v4098
        %v4109 = vpop.f32.mrf.mxu0
        %v4110 = vadd.f32 0.0, %v4109
        %v4111 = vpop.f32.mrf.mxu0
        %v4112 = vadd.f32 0.0, %v4111
        %4113 = vdwg.mxu0
        %v4114 = vadd.f32 %v4021, %v4110
        %v4115 = vadd.f32 %v4022, %v4112
        %v4117 = vperm.slane %v3182, 0
        %v4119 = vadd.f32 %v4114, %v4117
        %v4120 = vadd.f32 %v4115, %v4117
        %v4121 = vadd.f32 %v3128, %v4119
        %v4122 = vadd.f32 %v3131, %v4120
        %v4123 = vld [vmem:[#allocation31] sm:$0x1]
        %v4125 = vperm.slane %v4123, 0
        %v4127 = vmul.f32 %v4121, %v4125
        %v4128 = vmul.f32 %v4122, %v4125
        %v4129 = vld [vmem:[#allocation32] sm:$0x1]
        %v4131 = vperm.slane %v4129, 0
        %v4133 = vadd.f32 %v4127, %v4131
        %v4134 = vadd.f32 %v4128, %v4131
        %v4135 = vmax.f32 %v4133, 0.0
        %v4136 = vmax.f32 %v4134, 0.0
        %v4137 = vld [vmem:[#allocation34] sm:$0xff]
        %v4138 = vld [vmem:[#allocation34 + $0x8] sm:$0xff]
        %v4139 = vld [vmem:[#allocation34 + $0x10] sm:$0xff]
        %v4140 = vld [vmem:[#allocation34 + $0x18] sm:$0xff]
        %v4141 = vld [vmem:[#allocation34 + $0x20] sm:$0xff]
        %v4142 = vld [vmem:[#allocation34 + $0x28] sm:$0xff]
        %v4143 = vld [vmem:[#allocation34 + $0x30] sm:$0xff]
        %v4144 = vld [vmem:[#allocation34 + $0x38] sm:$0xff]
        %v4145 = vld [vmem:[#allocation34 + $0x40] sm:$0xff]
        %v4146 = vld [vmem:[#allocation34 + $0x48] sm:$0xff]
        %v4147 = vld [vmem:[#allocation34 + $0x50] sm:$0xff]
        %v4148 = vld [vmem:[#allocation34 + $0x58] sm:$0xff]
        %v4149 = vld [vmem:[#allocation34 + $0x60] sm:$0xff]
        %v4150 = vld [vmem:[#allocation34 + $0x68] sm:$0xff]
        %v4151 = vld [vmem:[#allocation34 + $0x70] sm:$0xff]
        %v4152 = vld [vmem:[#allocation34 + $0x78] sm:$0xff]
        %v4153 = vld [vmem:[#allocation35] sm:$0x1]
        %v4155 = vperm.slane %v4153, 0
        %4157 = vmatpush.msra.mxu0 %v4152
        %4158 = vmatpush.msra.mxu0 %v4151
        %4159 = vmatpush.msra.mxu0 %v4150
        %4160 = vmatpush.msra.mxu0 %v4149
        %4161 = vmatpush.msra.mxu0 %v4148
        %4162 = vmatpush.msra.mxu0 %v4147
        %4163 = vmatpush.msra.mxu0 %v4146
        %4164 = vmatpush.msra.mxu0 %v4145
        %4165 = vmatpush.msra.mxu0 %v4144
        %4166 = vmatpush.msra.mxu0 %v4143
        %4167 = vmatpush.msra.mxu0 %v4142
        %4168 = vmatpush.msra.mxu0 %v4141
        %4169 = vmatpush.msra.mxu0 %v4140
        %4170 = vmatpush.msra.mxu0 %v4139
        %4171 = vmatpush.msra.mxu0 %v4138
        %4172 = vmatpush.msra.mxu0 %v4137
        %4173 = vmatmul.f32.gmra.mxu0 %v4135
        %v4174 = vpop.f32.mrf.mxu0
        %v4175 = vadd.f32 %v4155, %v4174
        %4176 = vmatmul.f32.gmra.mxu0 %v4136
        %v4177 = vpop.f32.mrf.mxu0
        %v4178 = vadd.f32 %v4155, %v4177
        %4179 = vdwg.mxu0
        %v4180 = vmax.f32 %v4175, 0.0
        %v4181 = vmax.f32 %v4178, 0.0
        %v4182 = vmax.f32 %v4180, %v4181
        %v4183 = vrot.slane %v4182, 4
        %v4184 = vmax.f32 %v4182, %v4183
        %v4185 = vrot.slane %v4184, 2
        %v4186 = vmax.f32 %v4184, %v4185
        %v4187 = vrot.slane %v4186, 1
        %v4188 = vmax.f32 %v4186, %v4187
        %v4189 = vld [vmem:[%s53] sm:$0xff]
        %v4190 = vld [vmem:[%s53 + $0x8] sm:$0xff]
        %v4191 = vld [vmem:[%s53 + $0x10] sm:$0xff]
        %v4192 = vld [vmem:[%s53 + $0x18] sm:$0xff]
        %v4193 = vld [vmem:[%s53 + $0x20] sm:$0xff]
        %v4194 = vld [vmem:[%s53 + $0x28] sm:$0xff]
        %v4195 = vld [vmem:[%s53 + $0x30] sm:$0xff]
        %v4196 = vld [vmem:[%s53 + $0x38] sm:$0xff]
        %v4197 = vld [vmem:[%s53 + $0x40] sm:$0xff]
        %v4198 = vld [vmem:[%s53 + $0x48] sm:$0xff]
        %v4199 = vld [vmem:[%s53 + $0x50] sm:$0xff]
        %v4200 = vld [vmem:[%s53 + $0x58] sm:$0xff]
        %v4201 = vld [vmem:[%s53 + $0x60] sm:$0xff]
        %v4202 = vld [vmem:[%s53 + $0x68] sm:$0xff]
        %v4203 = vld [vmem:[%s53 + $0x70] sm:$0xff]
        %v4204 = vld [vmem:[%s53 + $0x78] sm:$0xff]
        %v4205 = vld [vmem:[%s53 + $0x80] sm:$0xff]
        %v4206 = vld [vmem:[%s53 + $0x88] sm:$0xff]
        %v4207 = vld [vmem:[%s53 + $0x90] sm:$0xff]
        %v4208 = vld [vmem:[%s53 + $0x98] sm:$0xff]
        %v4209 = vld [vmem:[%s53 + $0xa0] sm:$0xff]
        %v4210 = vld [vmem:[%s53 + $0xa8] sm:$0xff]
        %v4211 = vld [vmem:[%s53 + $0xb0] sm:$0xff]
        %v4212 = vld [vmem:[%s53 + $0xb8] sm:$0xff]
        %v4213 = vld [vmem:[%s53 + $0xc0] sm:$0xff]
        %v4214 = vld [vmem:[%s53 + $0xc8] sm:$0xff]
        %v4215 = vld [vmem:[%s53 + $0xd0] sm:$0xff]
        %v4216 = vld [vmem:[%s53 + $0xd8] sm:$0xff]
        %v4217 = vld [vmem:[%s53 + $0xe0] sm:$0xff]
        %v4218 = vld [vmem:[%s53 + $0xe8] sm:$0xff]
        %v4219 = vld [vmem:[%s53 + $0xf0] sm:$0xff]
        %v4220 = vld [vmem:[%s53 + $0xf8] sm:$0xff]
        %v4221 = vld [vmem:[%s53 + $0x100] sm:$0xff]
        %v4222 = vld [vmem:[%s53 + $0x108] sm:$0xff]
        %v4223 = vld [vmem:[%s53 + $0x110] sm:$0xff]
        %v4224 = vld [vmem:[%s53 + $0x118] sm:$0xff]
        %v4225 = vld [vmem:[%s53 + $0x120] sm:$0xff]
        %v4226 = vld [vmem:[%s53 + $0x128] sm:$0xff]
        %v4227 = vld [vmem:[%s53 + $0x130] sm:$0xff]
        %v4228 = vld [vmem:[%s53 + $0x138] sm:$0xff]
        %v4229 = vld [vmem:[%s53 + $0x140] sm:$0xff]
        %v4230 = vld [vmem:[%s53 + $0x148] sm:$0xff]
        %v4231 = vld [vmem:[%s53 + $0x150] sm:$0xff]
        %v4232 = vld [vmem:[%s53 + $0x158] sm:$0xff]
        %v4233 = vld [vmem:[%s53 + $0x160] sm:$0xff]
        %v4234 = vld [vmem:[%s53 + $0x168] sm:$0xff]
        %v4235 = vld [vmem:[%s53 + $0x170] sm:$0xff]
        %v4236 = vld [vmem:[%s53 + $0x178] sm:$0xff]
        %v4237 = vld [vmem:[%s53 + $0x180] sm:$0xff]
        %v4238 = vld [vmem:[%s53 + $0x188] sm:$0xff]
        %v4239 = vld [vmem:[%s53 + $0x190] sm:$0xff]
        %v4240 = vld [vmem:[%s53 + $0x198] sm:$0xff]
        %v4241 = vld [vmem:[%s53 + $0x1a0] sm:$0xff]
        %v4242 = vld [vmem:[%s53 + $0x1a8] sm:$0xff]
        %v4243 = vld [vmem:[%s53 + $0x1b0] sm:$0xff]
        %v4244 = vld [vmem:[%s53 + $0x1b8] sm:$0xff]
        %v4245 = vld [vmem:[%s53 + $0x1c0] sm:$0xff]
        %v4246 = vld [vmem:[%s53 + $0x1c8] sm:$0xff]
        %v4247 = vld [vmem:[%s53 + $0x1d0] sm:$0xff]
        %v4248 = vld [vmem:[%s53 + $0x1d8] sm:$0xff]
        %v4249 = vld [vmem:[%s53 + $0x1e0] sm:$0xff]
        %v4250 = vld [vmem:[%s53 + $0x1e8] sm:$0xff]
        %v4251 = vld [vmem:[%s53 + $0x1f0] sm:$0xff]
        %v4252 = vld [vmem:[%s53 + $0x1f8] sm:$0xff]
        %v4253 = vld [vmem:[#allocation37] sm:$0xf]
        %v4255 = vperm.slane %v4253, 0
        %v4256 = vperm.slane %v4253, 1
        %v4257 = vperm.slane %v4253, 2
        %v4258 = vperm.slane %v4253, 3
        %4263 = vmatpush.msra.mxu0 %v4249
        %4264 = vmatpush.msra.mxu0 %v4245
        %4265 = vmatpush.msra.mxu0 %v4241
        %4266 = vmatpush.msra.mxu0 %v4237
        %4267 = vmatpush.msra.mxu0 %v4233
        %4268 = vmatpush.msra.mxu0 %v4229
        %4269 = vmatpush.msra.mxu0 %v4225
        %4270 = vmatpush.msra.mxu0 %v4221
        %4271 = vmatpush.msra.mxu0 %v4217
        %4272 = vmatpush.msra.mxu0 %v4213
        %4273 = vmatpush.msra.mxu0 %v4209
        %4274 = vmatpush.msra.mxu0 %v4205
        %4275 = vmatpush.msra.mxu0 %v4201
        %4276 = vmatpush.msra.mxu0 %v4197
        %4277 = vmatpush.msra.mxu0 %v4193
        %4278 = vmatpush.msra.mxu0 %v4189
        %4279 = vmatmul.f32.gmra.mxu0 %v4188
        %v4280 = vpop.f32.mrf.mxu0
        %v4281 = vadd.f32 %v4255, %v4280
        %4282 = vdwg.mxu0
        %4283 = vmatpush.msra.mxu0 %v4250
        %4284 = vmatpush.msra.mxu0 %v4246
        %4285 = vmatpush.msra.mxu0 %v4242
        %4286 = vmatpush.msra.mxu0 %v4238
        %4287 = vmatpush.msra.mxu0 %v4234
        %4288 = vmatpush.msra.mxu0 %v4230
        %4289 = vmatpush.msra.mxu0 %v4226
        %4290 = vmatpush.msra.mxu0 %v4222
        %4291 = vmatpush.msra.mxu0 %v4218
        %4292 = vmatpush.msra.mxu0 %v4214
        %4293 = vmatpush.msra.mxu0 %v4210
        %4294 = vmatpush.msra.mxu0 %v4206
        %4295 = vmatpush.msra.mxu0 %v4202
        %4296 = vmatpush.msra.mxu0 %v4198
        %4297 = vmatpush.msra.mxu0 %v4194
        %4298 = vmatpush.msra.mxu0 %v4190
        %4299 = vmatmul.f32.gmra.mxu0 %v4188
        %v4300 = vpop.f32.mrf.mxu0
        %v4301 = vadd.f32 %v4256, %v4300
        %4302 = vdwg.mxu0
        %4303 = vmatpush.msra.mxu0 %v4251
        %4304 = vmatpush.msra.mxu0 %v4247
        %4305 = vmatpush.msra.mxu0 %v4243
        %4306 = vmatpush.msra.mxu0 %v4239
        %4307 = vmatpush.msra.mxu0 %v4235
        %4308 = vmatpush.msra.mxu0 %v4231
        %4309 = vmatpush.msra.mxu0 %v4227
        %4310 = vmatpush.msra.mxu0 %v4223
        %4311 = vmatpush.msra.mxu0 %v4219
        %4312 = vmatpush.msra.mxu0 %v4215
        %4313 = vmatpush.msra.mxu0 %v4211
        %4314 = vmatpush.msra.mxu0 %v4207
        %4315 = vmatpush.msra.mxu0 %v4203
        %4316 = vmatpush.msra.mxu0 %v4199
        %4317 = vmatpush.msra.mxu0 %v4195
        %4318 = vmatpush.msra.mxu0 %v4191
        %4319 = vmatmul.f32.gmra.mxu0 %v4188
        %v4320 = vpop.f32.mrf.mxu0
        %v4321 = vadd.f32 %v4257, %v4320
        %4322 = vdwg.mxu0
        %4323 = vmatpush.msra.mxu0 %v4252
        %4324 = vmatpush.msra.mxu0 %v4248
        %4325 = vmatpush.msra.mxu0 %v4244
        %4326 = vmatpush.msra.mxu0 %v4240
        %4327 = vmatpush.msra.mxu0 %v4236
        %4328 = vmatpush.msra.mxu0 %v4232
        %4329 = vmatpush.msra.mxu0 %v4228
        %4330 = vmatpush.msra.mxu0 %v4224
        %4331 = vmatpush.msra.mxu0 %v4220
        %4332 = vmatpush.msra.mxu0 %v4216
        %4333 = vmatpush.msra.mxu0 %v4212
        %4334 = vmatpush.msra.mxu0 %v4208
        %4335 = vmatpush.msra.mxu0 %v4204
        %4336 = vmatpush.msra.mxu0 %v4200
        %4337 = vmatpush.msra.mxu0 %v4196
        %4338 = vmatpush.msra.mxu0 %v4192
        %4339 = vmatmul.f32.gmra.mxu0 %v4188
        %v4340 = vpop.f32.mrf.mxu0
        %v4341 = vadd.f32 %v4258, %v4340
        %4342 = vdwg.mxu0
        %v4343 = vmax.f32 %v4281, 0.0
        %v4344 = vmax.f32 %v4301, 0.0
        %v4345 = vmax.f32 %v4321, 0.0
        %v4346 = vmax.f32 %v4341, 0.0
        %v4347 = vld [vmem:[%s57] sm:$0xff]
        %v4348 = vld [vmem:[%s57 + $0x8] sm:$0xff]
        %v4349 = vld [vmem:[%s57 + $0x10] sm:$0xff]
        %v4350 = vld [vmem:[%s57 + $0x18] sm:$0xff]
        %v4351 = vld [vmem:[%s57 + $0x20] sm:$0xff]
        %v4352 = vld [vmem:[%s57 + $0x28] sm:$0xff]
        %v4353 = vld [vmem:[%s57 + $0x30] sm:$0xff]
        %v4354 = vld [vmem:[%s57 + $0x38] sm:$0xff]
        %v4355 = vld [vmem:[%s57 + $0x40] sm:$0xff]
        %v4356 = vld [vmem:[%s57 + $0x48] sm:$0xff]
        %v4357 = vld [vmem:[%s57 + $0x50] sm:$0xff]
        %v4358 = vld [vmem:[%s57 + $0x58] sm:$0xff]
        %v4359 = vld [vmem:[%s57 + $0x60] sm:$0xff]
        %v4360 = vld [vmem:[%s57 + $0x68] sm:$0xff]
        %v4361 = vld [vmem:[%s57 + $0x70] sm:$0xff]
        %v4362 = vld [vmem:[%s57 + $0x78] sm:$0xff]
        %v4363 = vld [vmem:[%s57 + $0x80] sm:$0xff]
        %v4364 = vld [vmem:[%s57 + $0x88] sm:$0xff]
        %v4365 = vld [vmem:[%s57 + $0x90] sm:$0xff]
        %v4366 = vld [vmem:[%s57 + $0x98] sm:$0xff]
        %v4367 = vld [vmem:[%s57 + $0xa0] sm:$0xff]
        %v4368 = vld [vmem:[%s57 + $0xa8] sm:$0xff]
        %v4369 = vld [vmem:[%s57 + $0xb0] sm:$0xff]
        %v4370 = vld [vmem:[%s57 + $0xb8] sm:$0xff]
        %v4371 = vld [vmem:[%s57 + $0xc0] sm:$0xff]
        %v4372 = vld [vmem:[%s57 + $0xc8] sm:$0xff]
        %v4373 = vld [vmem:[%s57 + $0xd0] sm:$0xff]
        %v4374 = vld [vmem:[%s57 + $0xd8] sm:$0xff]
        %v4375 = vld [vmem:[%s57 + $0xe0] sm:$0xff]
        %v4376 = vld [vmem:[%s57 + $0xe8] sm:$0xff]
        %v4377 = vld [vmem:[%s57 + $0xf0] sm:$0xff]
        %v4378 = vld [vmem:[%s57 + $0xf8] sm:$0xff]
        %v4379 = vld [vmem:[%s57 + $0x100] sm:$0xff]
        %v4380 = vld [vmem:[%s57 + $0x108] sm:$0xff]
        %v4381 = vld [vmem:[%s57 + $0x110] sm:$0xff]
        %v4382 = vld [vmem:[%s57 + $0x118] sm:$0xff]
        %v4383 = vld [vmem:[%s57 + $0x120] sm:$0xff]
        %v4384 = vld [vmem:[%s57 + $0x128] sm:$0xff]
        %v4385 = vld [vmem:[%s57 + $0x130] sm:$0xff]
        %v4386 = vld [vmem:[%s57 + $0x138] sm:$0xff]
        %v4387 = vld [vmem:[%s57 + $0x140] sm:$0xff]
        %v4388 = vld [vmem:[%s57 + $0x148] sm:$0xff]
        %v4389 = vld [vmem:[%s57 + $0x150] sm:$0xff]
        %v4390 = vld [vmem:[%s57 + $0x158] sm:$0xff]
        %v4391 = vld [vmem:[%s57 + $0x160] sm:$0xff]
        %v4392 = vld [vmem:[%s57 + $0x168] sm:$0xff]
        %v4393 = vld [vmem:[%s57 + $0x170] sm:$0xff]
        %v4394 = vld [vmem:[%s57 + $0x178] sm:$0xff]
        %v4395 = vld [vmem:[%s57 + $0x180] sm:$0xff]
        %v4396 = vld [vmem:[%s57 + $0x188] sm:$0xff]
        %v4397 = vld [vmem:[%s57 + $0x190] sm:$0xff]
        %v4398 = vld [vmem:[%s57 + $0x198] sm:$0xff]
        %v4399 = vld [vmem:[%s57 + $0x1a0] sm:$0xff]
        %v4400 = vld [vmem:[%s57 + $0x1a8] sm:$0xff]
        %v4401 = vld [vmem:[%s57 + $0x1b0] sm:$0xff]
        %v4402 = vld [vmem:[%s57 + $0x1b8] sm:$0xff]
        %v4403 = vld [vmem:[%s57 + $0x1c0] sm:$0xff]
        %v4404 = vld [vmem:[%s57 + $0x1c8] sm:$0xff]
        %v4405 = vld [vmem:[%s57 + $0x1d0] sm:$0xff]
        %v4406 = vld [vmem:[%s57 + $0x1d8] sm:$0xff]
        %v4407 = vld [vmem:[%s57 + $0x1e0] sm:$0xff]
        %v4408 = vld [vmem:[%s57 + $0x1e8] sm:$0xff]
        %v4409 = vld [vmem:[%s57 + $0x1f0] sm:$0xff]
        %v4410 = vld [vmem:[%s57 + $0x1f8] sm:$0xff]
        %v4411 = vld [vmem:[#allocation38] sm:$0x1]
        %4412 = vmatpush.msra.mxu0 %v4362
        %4413 = vmatpush.msra.mxu0 %v4361
        %4414 = vmatpush.msra.mxu0 %v4360
        %4415 = vmatpush.msra.mxu0 %v4359
        %4416 = vmatpush.msra.mxu0 %v4358
        %4417 = vmatpush.msra.mxu0 %v4357
        %4418 = vmatpush.msra.mxu0 %v4356
        %4419 = vmatpush.msra.mxu0 %v4355
        %4420 = vmatpush.msra.mxu0 %v4354
        %4421 = vmatpush.msra.mxu0 %v4353
        %4422 = vmatpush.msra.mxu0 %v4352
        %4423 = vmatpush.msra.mxu0 %v4351
        %4424 = vmatpush.msra.mxu0 %v4350
        %4425 = vmatpush.msra.mxu0 %v4349
        %4426 = vmatpush.msra.mxu0 %v4348
        %4427 = vmatpush.msra.mxu0 %v4347
        %4428 = vmatmul.f32.gmra.mxu0 %v4343
        %v4429 = vpop.f32.mrf.mxu0
        %v4430 = vadd.f32 %v4411, %v4429
        %4431 = vdwg.mxu0
        %4432 = vmatpush.msra.mxu0 %v4378
        %4433 = vmatpush.msra.mxu0 %v4377
        %4434 = vmatpush.msra.mxu0 %v4376
        %4435 = vmatpush.msra.mxu0 %v4375
        %4436 = vmatpush.msra.mxu0 %v4374
        %4437 = vmatpush.msra.mxu0 %v4373
        %4438 = vmatpush.msra.mxu0 %v4372
        %4439 = vmatpush.msra.mxu0 %v4371
        %4440 = vmatpush.msra.mxu0 %v4370
        %4441 = vmatpush.msra.mxu0 %v4369
        %4442 = vmatpush.msra.mxu0 %v4368
        %4443 = vmatpush.msra.mxu0 %v4367
        %4444 = vmatpush.msra.mxu0 %v4366
        %4445 = vmatpush.msra.mxu0 %v4365
        %4446 = vmatpush.msra.mxu0 %v4364
        %4447 = vmatpush.msra.mxu0 %v4363
        %4448 = vmatmul.f32.gmra.mxu0 %v4344
        %v4449 = vpop.f32.mrf.mxu0
        %v4450 = vadd.f32 %v4430, %v4449
        %4451 = vdwg.mxu0
        %4452 = vmatpush.msra.mxu0 %v4394
        %4453 = vmatpush.msra.mxu0 %v4393
        %4454 = vmatpush.msra.mxu0 %v4392
        %4455 = vmatpush.msra.mxu0 %v4391
        %4456 = vmatpush.msra.mxu0 %v4390
        %4457 = vmatpush.msra.mxu0 %v4389
        %4458 = vmatpush.msra.mxu0 %v4388
        %4459 = vmatpush.msra.mxu0 %v4387
        %4460 = vmatpush.msra.mxu0 %v4386
        %4461 = vmatpush.msra.mxu0 %v4385
        %4462 = vmatpush.msra.mxu0 %v4384
        %4463 = vmatpush.msra.mxu0 %v4383
        %4464 = vmatpush.msra.mxu0 %v4382
        %4465 = vmatpush.msra.mxu0 %v4381
        %4466 = vmatpush.msra.mxu0 %v4380
        %4467 = vmatpush.msra.mxu0 %v4379
        %4468 = vmatmul.f32.gmra.mxu0 %v4345
        %v4469 = vpop.f32.mrf.mxu0
        %v4470 = vadd.f32 %v4450, %v4469
        %4471 = vdwg.mxu0
        %4472 = vmatpush.msra.mxu0 %v4410
        %4473 = vmatpush.msra.mxu0 %v4409
        %4474 = vmatpush.msra.mxu0 %v4408
        %4475 = vmatpush.msra.mxu0 %v4407
        %4476 = vmatpush.msra.mxu0 %v4406
        %4477 = vmatpush.msra.mxu0 %v4405
        %4478 = vmatpush.msra.mxu0 %v4404
        %4479 = vmatpush.msra.mxu0 %v4403
        %4480 = vmatpush.msra.mxu0 %v4402
        %4481 = vmatpush.msra.mxu0 %v4401
        %4482 = vmatpush.msra.mxu0 %v4400
        %4483 = vmatpush.msra.mxu0 %v4399
        %4484 = vmatpush.msra.mxu0 %v4398
        %4485 = vmatpush.msra.mxu0 %v4397
        %4486 = vmatpush.msra.mxu0 %v4396
        %4487 = vmatpush.msra.mxu0 %v4395
        %4488 = vmatmul.f32.gmra.mxu0 %v4346
        %v4489 = vpop.f32.mrf.mxu0
        %v4490 = vadd.f32 %v4470, %v4489
        %4491 = vdwg.mxu0
        %vm4492 = vcmask 122880
        %4493 = vst.msk [vmem:[%s1289] sm:$0x1] %vm4492, %v4490
        %s4494 = sand.u32 %s731, 1
        %s4495 = scalar_lea.sflag [#allocation4], %s4494
        %s4496 = sand.u32 %s731, 1
        %s4497 = scalar_lea.vmem [#allocation40], %s4496
        // Predicated region
        $region237: #{tpu_custom_call.1} parent=139 // pred_check
          %p4498 = pneg %p741
        $region238: #{tpu_custom_call.1} parent=139 // pred_check_branch
          %4500 = sbr.rel (%p4498) target = $region240
        $region239: #{tpu_custom_call.1} parent=139 // pred_region
          %4502 = vsyncadd %s4495, 0
          %s4503 = scalar_lea.hbm %s61, %s88
          %s4505 = sshll.u32 %s4497, 4
          %s4506 = int_to_ptr.vmem [resolvable:$true] %s4505
          %s4507 = sshll.u32 %s4503, 4
          %s4508 = int_to_ptr.hbm [resolvable:$true] %s4507
          %4510 = dma.vmem_to_hbm [thread:$0]  %s4506, 16, %s4508, %s4495
        $region240: #{tpu_custom_call.1} parent=139 // pred_fallthru
          _
      $region140: #{tpu_custom_call.1} parent=5 // pred_fallthru
        _
      %p4511 = scmp.le.s32.totalorder 2, %s83
      // Predicated region
      $region241: #{tpu_custom_call.1} parent=5 // pred_check
        %p4512 = pneg %p4511
      $region242: #{tpu_custom_call.1} parent=5 // pred_check_branch
        %4514 = sbr.rel (%p4512) target = $region244
      $region243: #{tpu_custom_call.1} parent=5 // pred_region
        %s4515 = ssub.s32 %s83, 2
        // Predicated region
        $region245: #{tpu_custom_call.1} parent=243 // pred_check
          %p4516 = pneg %p747
        $region246: #{tpu_custom_call.1} parent=243 // pred_check_branch
          %4518 = sbr.rel (%p4516) target = $region248
        $region247: #{tpu_custom_call.1} parent=243 // pred_region
          %s4519 = sand.u32 %s732, 1
          %s4520 = scalar_lea.sflag [#allocation4], %s4519
          %s4521 = sand.u32 %s732, 1
          %s4522 = scalar_lea.vmem [#allocation40], %s4521
          %4524 = dma.done %s4520, 16
        $region248: #{tpu_custom_call.1} parent=243 // pred_fallthru
          _
      $region244: #{tpu_custom_call.1} parent=5 // pred_fallthru
        _
    $region6: #{tpu_custom_call.1} parent=1 // loop_footer
      %s87 = sadd.s32 1, %s83
    $region7: #{tpu_custom_call.1} parent=1 // loop_footer_branch
      %82 = sbr.rel target = $region3
    $region8: #{tpu_custom_call.1} parent=1 // loop_exit
      _
    %4525 = vsyncpa [#allocation3], 1
    %s4526 = scalar_lea.sflag [#allocation3], 1
    %4527 = vsyncpa %s4526, 1
    %4528 = vsyncpa [#allocation6], 1
    %4529 = vsyncpa [#allocation9], 1
    %4530 = vsyncpa [#allocation12], 1
    %4531 = vsyncpa [#allocation15], 1
    %4532 = vsyncpa [#allocation18], 1
    %4533 = vsyncpa [#allocation21], 1
    %4534 = vsyncpa [#allocation24], 1
    %4535 = vsyncpa [#allocation27], 1
    %4536 = vsyncpa [#allocation30], 1
    %4537 = vsyncpa [#allocation33], 1
    %4538 = vsyncpa [#allocation36], 1
    %4539 = vsyncpa [#allocation39], 1
    %4540 = vsyncpa [#allocation4], 1
    %s4541 = scalar_lea.sflag [#allocation4], 1
    %4542 = vsyncpa %s4541, 1

</llo_original>
